<compile_context>
chip_gen: v7x
topology: tpu7x:2x2x1
jax: 0.10.0
libtpu: 0.0.40
codegen_flags: <defaults>
</compile_context>

<pallas_src>
import functools
import math

import jax
import jax.numpy as jnp
from jax.experimental import pallas as pl
from jax.experimental.pallas import tpu as pltpu


def _round_up(x, m):
    return ((x + m - 1) // m) * m


def _pick_tile(n, candidates):
    for c in candidates:
        if n % c == 0:
            return c
    return n


@functools.lru_cache(maxsize=None)
def _vmem_limit_bytes():
    """~half of physical VMEM, clamped to [32 MiB, 64 MiB]."""
    phys = 128 * 1024 * 1024
    try:
        phys = int(pltpu.get_tpu_info().vmem_capacity_bytes)
    except Exception:
        pass
    return int(min(64 * 1024 * 1024, max(32 * 1024 * 1024, phys // 2)))


_ROW_PAD = 256  # row padding granularity (keeps the N_p^2 inflation small)


# ------------------------------ kernels ------------------------------------ #

def _support_kernel(x_ref, w_ref, o_ref, acc_ref):
    # one (i, k) step of support = X @ W (k streams the input-feature dim)
    k = pl.program_id(1)

    @pl.when(k == 0)
    def _():
        acc_ref[...] = jnp.zeros_like(acc_ref)

    acc_ref[...] += jnp.dot(x_ref[...], w_ref[...],
                            preferred_element_type=jnp.float32)

    @pl.when(k == pl.num_programs(1) - 1)
    def _():
        o_ref[...] = acc_ref[...].astype(o_ref.dtype)


def _make_agg_kernel(tk, sup_resident, apply_relu, has_post_bias):
    """one (i, k) step of  epilogue(adj @ sup + b) @ W_post [+ post_bias]."""

    def kernel(adj_ref, sup_ref, b_ref, w_ref, *rest):
        if has_post_bias:
            pb_ref, out_ref, acc_ref = rest
        else:
            out_ref, acc_ref = rest
        k = pl.program_id(1)

        @pl.when(k == 0)
        def _():
            acc_ref[...] = jnp.zeros_like(acc_ref)

        if sup_resident:
            # sup is fully VMEM-resident; slice the aligned k block.
            start = pl.multiple_of(k * tk, tk)
            sup_blk = sup_ref[pl.ds(start, tk), :]
        else:
            sup_blk = sup_ref[...]

        acc_ref[...] += jnp.dot(adj_ref[...], sup_blk,
                                preferred_element_type=jnp.float32)

        @pl.when(k == pl.num_programs(1) - 1)
        def _():
            h = acc_ref[...] + b_ref[...]           # f32 epilogue, once per row tile
            if apply_relu:
                h = jnp.maximum(h, 0.0)
            y = jnp.dot(h.astype(w_ref.dtype), w_ref[...],
                        preferred_element_type=jnp.float32)
            if has_post_bias:
                y = y + pb_ref[...]
            out_ref[...] = y.astype(out_ref.dtype)

    return kernel


# --------------------------- pallas wrappers -------------------------------- #

def _support_matmul(x, w, *, tm, tk):
    """[N_p, Din_p] @ [Din_p, Dout_p] -> [N_p, Dout_p] in x.dtype (bf16)."""
    n_p, din_p = x.shape
    dout_p = w.shape[1]
    flops = 2 * n_p * din_p * dout_p
    bytes_accessed = (x.size * x.dtype.itemsize + w.size * w.dtype.itemsize
                      + n_p * dout_p * x.dtype.itemsize)
    return pl.pallas_call(
        _support_kernel,
        out_shape=jax.ShapeDtypeStruct((n_p, dout_p), x.dtype),
        grid_spec=pltpu.PrefetchScalarGridSpec(
            num_scalar_prefetch=0,
            grid=(n_p // tm, din_p // tk),
            in_specs=[pl.BlockSpec((tm, tk), lambda i, k: (i, k)),
                      pl.BlockSpec((tk, dout_p), lambda i, k: (k, 0))],
            out_specs=pl.BlockSpec((tm, dout_p), lambda i, k: (i, 0)),
            scratch_shapes=[pltpu.VMEM((tm, dout_p), jnp.float32)]),
        compiler_params=pltpu.CompilerParams(
            dimension_semantics=("parallel", "arbitrary"),
            vmem_limit_bytes=_vmem_limit_bytes()),
        cost_estimate=pl.CostEstimate(flops=flops, transcendentals=0,
                                      bytes_accessed=bytes_accessed),
    )(x, w)


def _aggregate(adj, sup, bias, w_post, *, tm, tk, out_dtype,
               post_bias=None, apply_relu=False):
    """Streamed-adjacency aggregation with fused epilogue.

      out = maybe_relu(adj @ sup + bias) @ w_post [+ post_bias]

    adj      : (N_p, N_p)    compute dtype, streamed in (tm, tk) tiles
    sup      : (N_p, Dsup)   compute dtype, VMEM-resident if it fits, else streamed
    bias     : (1, Dsup)     f32, resident
    w_post   : (Dsup, Dout)  compute dtype, resident
    post_bias: (1, Dout)     f32, resident (classifier only)
    """
    n_p = adj.shape[0]
    dsup = sup.shape[1]
    d_out = w_post.shape[1]
    vmem_limit = _vmem_limit_bytes()

    # Gate the resident-sup path on the VMEM budget (v7x has half the VMEM).
    est = (2 * sup.size * sup.dtype.itemsize                     # sup (2 bufs, conservative)
           + 2 * tm * tk * adj.dtype.itemsize                    # adj double buffer
           + 2 * tm * d_out * jnp.dtype(out_dtype).itemsize      # out double buffer
           + tm * dsup * 4                                       # f32 accumulator
           + w_post.size * w_post.dtype.itemsize
           + (dsup + 2 * d_out) * 4
           + (2 << 20))                                          # slack
    sup_resident = est < int(0.85 * vmem_limit)

    if sup_resident:
        sup_spec = pl.BlockSpec((n_p, dsup), lambda i, k: (0, 0))   # fetched once
    else:
        sup_spec = pl.BlockSpec((tk, dsup), lambda i, k: (k, 0))    # k-streamed fallback

    in_specs = [
        pl.BlockSpec((tm, tk), lambda i, k: (i, k)),       # adj tile (streamed)
        sup_spec,                                          # support
        pl.BlockSpec((1, dsup), lambda i, k: (0, 0)),      # bias (f32)
        pl.BlockSpec((dsup, d_out), lambda i, k: (0, 0)),  # post weight (bf16)
    ]
    operands = [adj, sup, bias, w_post]
    if post_bias is not None:
        in_specs.append(pl.BlockSpec((1, d_out), lambda i, k: (0, 0)))
        operands.append(post_bias)

    kernel = _make_agg_kernel(tk, sup_resident, apply_relu, post_bias is not None)

    sup_reads = 1 if sup_resident else (n_p // tm)
    flops = 2 * n_p * n_p * dsup + 2 * n_p * dsup * d_out
    bytes_accessed = (adj.size * adj.dtype.itemsize
                      + sup_reads * sup.size * sup.dtype.itemsize
                      + w_post.size * w_post.dtype.itemsize
                      + bias.size * 4
                      + (post_bias.size * 4 if post_bias is not None else 0)
                      + n_p * d_out * jnp.dtype(out_dtype).itemsize)

    return pl.pallas_call(
        kernel,
        out_shape=jax.ShapeDtypeStruct((n_p, d_out), out_dtype),
        grid_spec=pltpu.PrefetchScalarGridSpec(
            num_scalar_prefetch=0,
            grid=(n_p // tm, n_p // tk),
            in_specs=in_specs,
            out_specs=pl.BlockSpec((tm, d_out), lambda i, k: (i, 0)),
            scratch_shapes=[pltpu.VMEM((tm, dsup), jnp.float32)]),
        compiler_params=pltpu.CompilerParams(
            dimension_semantics=("parallel", "arbitrary"),
            vmem_limit_bytes=vmem_limit),
        cost_estimate=pl.CostEstimate(flops=flops, transcendentals=0,
                                      bytes_accessed=bytes_accessed),
    )(*operands)


# ----------------------------- GCN forward ---------------------------------- #

def _padded_dims(n, din, hid, emb, ncls):
    n_p = _round_up(max(n, _ROW_PAD), _ROW_PAD)
    din_p = _round_up(din, 128)
    hid_p = _round_up(hid, 128)
    emb_p = _round_up(emb, 128)
    ncls_p = _round_up(ncls, 128)
    tm = _pick_tile(n_p, (512, 256, 128))                 # row tile
    tk = _pick_tile(n_p, (2048, 1024, 512, 256, 128))     # adj reduction tile
    tkd = _pick_tile(din_p, (1024, 512, 256, 128))        # input-feature tile
    return n_p, din_p, hid_p, emb_p, ncls_p, tm, tk, tkd


def _pad2(x, r, c, dtype=None):
    x = jnp.pad(x, ((0, r - x.shape[0]), (0, c - x.shape[1])))
    return x.astype(dtype) if dtype is not None else x


def prepare_adjacency(adj, n, *, compute_dtype=jnp.bfloat16):
    """Pad + bf16-cast the O(N^2) adjacency ONCE; reuse across forward calls."""
    n_p = _padded_dims(n, 1, 1, 1, 1)[0]
    return _pad2(adj, n_p, n_p, compute_dtype)


def gcn_forward_padded(feat, adj_p, w1, b1, w2, b2, wc_t, bc, *,
                       num_nodes, compute_dtype=jnp.bfloat16):
    """GCN forward given a pre-padded / pre-cast adjacency (prepare_adjacency).

    Computed as:
        sup1 = feat @ W1
        sup2 = relu(adj @ sup1 + b1) @ W2       # layer-1 epilogue fuses W2
        out  = (adj @ sup2 + b2) @ Wc + bc      # layer-2 epilogue fuses classifier
    """
    n = num_nodes
    din, hid, emb, ncls = feat.shape[1], w1.shape[1], w2.shape[1], wc_t.shape[1]
    n_p, din_p, hid_p, emb_p, ncls_p, tm, tk, tkd = _padded_dims(n, din, hid, emb, ncls)
    assert adj_p.shape == (n_p, n_p), "adjacency not prepared for this graph size"

    feat_p = _pad2(feat, n_p, din_p, compute_dtype)
    w1_p = _pad2(w1, din_p, hid_p, compute_dtype)
    b1_p = _pad2(b1, 1, hid_p)                   # f32
    w2_p = _pad2(w2, hid_p, emb_p, compute_dtype)
    b2_p = _pad2(b2, 1, emb_p)                   # f32
    wc_p = _pad2(wc_t, emb_p, ncls_p, compute_dtype)
    bc_p = _pad2(bc, 1, ncls_p)                  # f32

    # --- GraphConvolution 1 (+W2 fused in the epilogue) ---
    sup1 = _support_matmul(feat_p, w1_p, tm=tm, tk=tkd)
    sup2 = _aggregate(adj_p, sup1, b1_p, w2_p, tm=tm, tk=tk,
                      out_dtype=compute_dtype, apply_relu=True)
    # NOTE: padded rows of sup2 equal relu(b1) @ W2 (non-zero); this is harmless
    # because the padded *columns* of adj are zero, so those rows never mix in.
    # TODO(synk): F.dropout is identity in eval mode (training=False); training-mode
    # stochastic dropout (pltpu.prng_random_bits mask) intentionally not applied.

    # --- GraphConvolution 2 + classifier fused in the epilogue ---
    out_p = _aggregate(adj_p, sup2, b2_p, wc_p, tm=tm, tk=tk,
                       out_dtype=jnp.float32, post_bias=bc_p, apply_relu=False)

    return out_p[:n, :ncls]


def gcn_forward(feat, adj, w1, b1, w2, b2, wc_t, bc, *, compute_dtype=jnp.bfloat16):
    """Convenience one-shot wrapper (pads the adjacency per call)."""
    adj_p = prepare_adjacency(adj, feat.shape[0], compute_dtype=compute_dtype)
    return gcn_forward_padded(feat, adj_p, w1, b1, w2, b2, wc_t, bc,
                              num_nodes=feat.shape[0], compute_dtype=compute_dtype)


# ------------------------------ reference ----------------------------------- #

def init_params(key, input_dim, hid_dim, emb_dim, num_class):
    """Deterministic parameter init mirroring the PyTorch module's shapes/ranges."""
    k = jax.random.split(key, 6)

    std1 = 1.0 / math.sqrt(hid_dim)
    w1 = jax.random.uniform(k[0], (input_dim, hid_dim), jnp.float32, -std1, std1)
    b1 = jax.random.uniform(k[1], (1, hid_dim), jnp.float32, -std1, std1)

    std2 = 1.0 / math.sqrt(emb_dim)
    w2 = jax.random.uniform(k[2], (hid_dim, emb_dim), jnp.float32, -std2, std2)
    b2 = jax.random.uniform(k[3], (1, emb_dim), jnp.float32, -std2, std2)

    # nn.Linear(emb_dim, num_class): weight (num_class, emb_dim); stored
    # pre-transposed as (emb_dim, num_class) so the kernel does emb @ Wc.
    stdc = 1.0 / math.sqrt(emb_dim)
    wc_t = jax.random.uniform(k[4], (emb_dim, num_class), jnp.float32, -stdc, stdc)
    bc = jax.random.uniform(k[5], (1, num_class), jnp.float32, -stdc, stdc)

    return w1, b1, w2, b2, wc_t, bc


def reference_forward(feat, adj, w1, b1, w2, b2, wc_t, bc):
    h1 = jnp.maximum(adj @ (feat @ w1) + b1, 0.0)
    emb = adj @ (h1 @ w2) + b2
    return emb @ wc_t + bc


if __name__ == "__main__":
    # Small synthetic graph: N nodes, feature dims consistent with the module.
    N, INPUT_DIM, HID_DIM, EMB_DIM, NUM_CLASS = 8, 16, 32, 16, 4

    key = jax.random.PRNGKey(0)
    k_feat, k_adj, k_params = jax.random.split(key, 3)

    feat = jax.random.normal(k_feat, (N, INPUT_DIM), jnp.float32)

    # Symmetric row-normalized adjacency with self loops (typical GCN preprocessing).
    a = (jax.random.uniform(k_adj, (N, N)) > 0.6).astype(jnp.float32)
    a = jnp.maximum(a, a.T) + jnp.eye(N, dtype=jnp.float32)
    deg = jnp.sum(a, axis=1, keepdims=True)
    adj = a / deg

    params = init_params(k_params, INPUT_DIM, HID_DIM, EMB_DIM, NUM_CLASS)

    # Hoisted adjacency pad/cast (done once, reused across forward calls).
    adj_p = prepare_adjacency(adj, N)
    fwd = jax.jit(functools.partial(gcn_forward_padded, num_nodes=N))

    out = fwd(feat, adj_p, *params)
    out = jax.block_until_ready(out)

    ref = reference_forward(feat, adj, *params)
    assert out.shape == (N, NUM_CLASS)
    # bf16 MXU operands (f32 accumulation) -> relaxed tolerance vs. f32 reference.
    assert jnp.allclose(out, ref, atol=5e-2, rtol=5e-2), "mismatch vs. JAX reference"

    print("KERNEL_OK")
</pallas_src>

<mosaic_0001>
module attributes {stable_mosaic.version = 11 : i64} {
  func.func @_support_kernel(%arg0: i32, %arg1: i32, %arg2: memref<256x128xbf16, #tpu.memory_space<vmem>>, %arg3: memref<128x128xbf16, #tpu.memory_space<vmem>>, %arg4: memref<256x128xbf16, #tpu.memory_space<vmem>>, %arg5: memref<256x128xf32, #tpu.memory_space<vmem>>) attributes {dimension_semantics = [#tpu.dimension_semantics<parallel>, #tpu.dimension_semantics<arbitrary>], iteration_bounds = array<i64: 1, 1>, scalar_prefetch = 0 : i64, scratch_operands = 1 : i64, tpu.core_type = #tpu.core_type<tc>, window_params = [{transform_indices = @transform_0, window_bounds = array<i64: 256, 128>}, {transform_indices = @transform_1, window_bounds = array<i64: 128, 128>}, {transform_indices = @transform_2, window_bounds = array<i64: 256, 128>}]} {
    %c0_i32 = arith.constant 0 : i32
    %0 = arith.cmpi eq, %arg1, %c0_i32 : i32
    %1 = arith.extui %0 : i1 to i32
    %c0_i32_0 = arith.constant 0 : i32
    %2 = arith.cmpi ne, %1, %c0_i32_0 : i32
    scf.if %2 {
      %cst_10 = arith.constant 0.000000e+00 : f32
      %12 = vector.broadcast %cst_10 : f32 to vector<256x128xf32>
      %c0_11 = arith.constant 0 : index
      %c0_12 = arith.constant 0 : index
      %13 = vector.load %arg5[%c0_11, %c0_12] : memref<256x128xf32, #tpu.memory_space<vmem>>, vector<256x128xf32>
      tpu.vector_store %arg5[%c0_11, %c0_12], %12 {strides = array<i32>} : memref<256x128xf32, #tpu.memory_space<vmem>>, vector<256x128xf32>,
    } else {
    }
    %c0 = arith.constant 0 : index
    %c0_1 = arith.constant 0 : index
    %3 = vector.load %arg5[%c0, %c0_1] : memref<256x128xf32, #tpu.memory_space<vmem>>, vector<256x128xf32>
    %c0_2 = arith.constant 0 : index
    %c0_3 = arith.constant 0 : index
    %4 = vector.load %arg2[%c0_2, %c0_3] : memref<256x128xbf16, #tpu.memory_space<vmem>>, vector<256x128xbf16>
    %c0_4 = arith.constant 0 : index
    %c0_5 = arith.constant 0 : index
    %5 = vector.load %arg3[%c0_4, %c0_5] : memref<128x128xbf16, #tpu.memory_space<vmem>>, vector<128x128xbf16>
    %cst = arith.constant dense<0.000000e+00> : vector<256x128xf32>
    %6 = tpu.matmul %4, %5, %cst {dimension_numbers = #tpu.dot_dimension_numbers<[1], [0], [0], [1], [0, 0, 1, 1], [], []>} : vector<256x128xbf16>, vector<128x128xbf16>, vector<256x128xf32> -> vector<256x128xf32>
    %7 = arith.addf %3, %6 : vector<256x128xf32>
    %c0_6 = arith.constant 0 : index
    %c0_7 = arith.constant 0 : index
    %8 = vector.load %arg5[%c0_6, %c0_7] : memref<256x128xf32, #tpu.memory_space<vmem>>, vector<256x128xf32>
    tpu.vector_store %arg5[%c0_6, %c0_7], %7 {strides = array<i32>} : memref<256x128xf32, #tpu.memory_space<vmem>>, vector<256x128xf32>,
    %c0_i32_8 = arith.constant 0 : i32
    %9 = arith.cmpi eq, %arg1, %c0_i32_8 : i32
    %10 = arith.extui %9 : i1 to i32
    %c0_i32_9 = arith.constant 0 : i32
    %11 = arith.cmpi ne, %10, %c0_i32_9 : i32
    scf.if %11 {
      %c0_10 = arith.constant 0 : index
      %c0_11 = arith.constant 0 : index
      %12 = vector.load %arg5[%c0_10, %c0_11] : memref<256x128xf32, #tpu.memory_space<vmem>>, vector<256x128xf32>
      %13 = arith.truncf %12 : vector<256x128xf32> to vector<256x128xbf16>
      %c0_12 = arith.constant 0 : index
      %c0_13 = arith.constant 0 : index
      %14 = vector.load %arg4[%c0_12, %c0_13] : memref<256x128xbf16, #tpu.memory_space<vmem>>, vector<256x128xbf16>
      tpu.vector_store %arg4[%c0_12, %c0_13], %13 {strides = array<i32>} : memref<256x128xbf16, #tpu.memory_space<vmem>>, vector<256x128xbf16>,
    } else {
    }
    return
  }
  func.func @transform_0(%arg0: i32, %arg1: i32) -> (i32, i32) {
    %c0_i32 = arith.constant 0 : i32
    return %arg0, %arg1 : i32, i32
  }
  func.func @transform_1(%arg0: i32, %arg1: i32) -> (i32, i32) {
    %c0_i32 = arith.constant 0 : i32
    %c0_i32_0 = arith.constant 0 : i32
    return %arg1, %c0_i32 : i32, i32
  }
  func.func @transform_2(%arg0: i32, %arg1: i32) -> (i32, i32) {
    %c0_i32 = arith.constant 0 : i32
    %c0_i32_0 = arith.constant 0 : i32
    return %arg0, %c0_i32 : i32, i32
  }
}

module attributes {stable_mosaic.version = 11 : i64} {
  func.func @kernel(%arg0: i32, %arg1: i32, %arg2: memref<256x256xbf16, #tpu.memory_space<vmem>>, %arg3: memref<256x128xbf16, #tpu.memory_space<vmem>>, %arg4: memref<1x128xf32, #tpu.memory_space<vmem>>, %arg5: memref<128x128xbf16, #tpu.memory_space<vmem>>, %arg6: memref<256x128xbf16, #tpu.memory_space<vmem>>, %arg7: memref<256x128xf32, #tpu.memory_space<vmem>>) attributes {dimension_semantics = [#tpu.dimension_semantics<parallel>, #tpu.dimension_semantics<arbitrary>], iteration_bounds = array<i64: 1, 1>, scalar_prefetch = 0 : i64, scratch_operands = 1 : i64, tpu.core_type = #tpu.core_type<tc>, window_params = [{transform_indices = @transform_0, window_bounds = array<i64: 256, 256>}, {pipeline_mode = #tpu.pipeline_mode<synchronous>, transform_indices = @transform_1, window_bounds = array<i64: 256, 128>}, {pipeline_mode = #tpu.pipeline_mode<synchronous>, transform_indices = @transform_2, window_bounds = array<i64: 1, 128>}, {pipeline_mode = #tpu.pipeline_mode<synchronous>, transform_indices = @transform_3, window_bounds = array<i64: 128, 128>}, {transform_indices = @transform_4, window_bounds = array<i64: 256, 128>}]} {
    %c0_i32 = arith.constant 0 : i32
    %0 = arith.cmpi eq, %arg1, %c0_i32 : i32
    %1 = arith.extui %0 : i1 to i32
    %c0_i32_0 = arith.constant 0 : i32
    %2 = arith.cmpi ne, %1, %c0_i32_0 : i32
    scf.if %2 {
      %cst_9 = arith.constant 0.000000e+00 : f32
      %15 = vector.broadcast %cst_9 : f32 to vector<256x128xf32>
      %c0_10 = arith.constant 0 : index
      %c0_11 = arith.constant 0 : index
      %16 = vector.load %arg7[%c0_10, %c0_11] : memref<256x128xf32, #tpu.memory_space<vmem>>, vector<256x128xf32>
      tpu.vector_store %arg7[%c0_10, %c0_11], %15 {strides = array<i32>} : memref<256x128xf32, #tpu.memory_space<vmem>>, vector<256x128xf32>,
    } else {
    }
    %c256_i32 = arith.constant 256 : i32
    %3 = arith.muli %arg1, %c256_i32 : i32
    %4 = tpu.assume_multiple %3, 256 : i32
    %5 = arith.index_cast %4 : i32 to index
    %c0 = arith.constant 0 : index
    %6 = vector.load %arg3[%5, %c0] : memref<256x128xbf16, #tpu.memory_space<vmem>>, vector<256x128xbf16>
    %c0_1 = arith.constant 0 : index
    %c0_2 = arith.constant 0 : index
    %7 = vector.load %arg7[%c0_1, %c0_2] : memref<256x128xf32, #tpu.memory_space<vmem>>, vector<256x128xf32>
    %c0_3 = arith.constant 0 : index
    %c0_4 = arith.constant 0 : index
    %8 = vector.load %arg2[%c0_3, %c0_4] : memref<256x256xbf16, #tpu.memory_space<vmem>>, vector<256x256xbf16>
    %cst = arith.constant dense<0.000000e+00> : vector<256x128xf32>
    %9 = tpu.matmul %8, %6, %cst {dimension_numbers = #tpu.dot_dimension_numbers<[1], [0], [0], [1], [0, 0, 1, 1], [], []>} : vector<256x256xbf16>, vector<256x128xbf16>, vector<256x128xf32> -> vector<256x128xf32>
    %10 = arith.addf %7, %9 : vector<256x128xf32>
    %c0_5 = arith.constant 0 : index
    %c0_6 = arith.constant 0 : index
    %11 = vector.load %arg7[%c0_5, %c0_6] : memref<256x128xf32, #tpu.memory_space<vmem>>, vector<256x128xf32>
    tpu.vector_store %arg7[%c0_5, %c0_6], %10 {strides = array<i32>} : memref<256x128xf32, #tpu.memory_space<vmem>>, vector<256x128xf32>,
    %c0_i32_7 = arith.constant 0 : i32
    %12 = arith.cmpi eq, %arg1, %c0_i32_7 : i32
    %13 = arith.extui %12 : i1 to i32
    %c0_i32_8 = arith.constant 0 : i32
    %14 = arith.cmpi ne, %13, %c0_i32_8 : i32
    scf.if %14 {
      %c0_9 = arith.constant 0 : index
      %c0_10 = arith.constant 0 : index
      %15 = vector.load %arg7[%c0_9, %c0_10] : memref<256x128xf32, #tpu.memory_space<vmem>>, vector<256x128xf32>
      %c0_11 = arith.constant 0 : index
      %c0_12 = arith.constant 0 : index
      %16 = vector.load %arg4[%c0_11, %c0_12] : memref<1x128xf32, #tpu.memory_space<vmem>>, vector<1x128xf32>
      %17 = vector.broadcast %16 : vector<1x128xf32> to vector<256x128xf32>
      %18 = arith.addf %15, %17 : vector<256x128xf32>
      %cst_13 = arith.constant 0.000000e+00 : f32
      %19 = vector.broadcast %cst_13 : f32 to vector<256x128xf32>
      %20 = arith.maximumf %18, %19 : vector<256x128xf32>
      %21 = arith.truncf %20 : vector<256x128xf32> to vector<256x128xbf16>
      %c0_14 = arith.constant 0 : index
      %c0_15 = arith.constant 0 : index
      %22 = vector.load %arg5[%c0_14, %c0_15] : memref<128x128xbf16, #tpu.memory_space<vmem>>, vector<128x128xbf16>
      %cst_16 = arith.constant dense<0.000000e+00> : vector<256x128xf32>
      %23 = tpu.matmul %21, %22, %cst_16 {dimension_numbers = #tpu.dot_dimension_numbers<[1], [0], [0], [1], [0, 0, 1, 1], [], []>} : vector<256x128xbf16>, vector<128x128xbf16>, vector<256x128xf32> -> vector<256x128xf32>
      %24 = arith.truncf %23 : vector<256x128xf32> to vector<256x128xbf16>
      %c0_17 = arith.constant 0 : index
      %c0_18 = arith.constant 0 : index
      %25 = vector.load %arg6[%c0_17, %c0_18] : memref<256x128xbf16, #tpu.memory_space<vmem>>, vector<256x128xbf16>
      tpu.vector_store %arg6[%c0_17, %c0_18], %24 {strides = array<i32>} : memref<256x128xbf16, #tpu.memory_space<vmem>>, vector<256x128xbf16>,
    } else {
    }
    return
  }
  func.func @transform_0(%arg0: i32, %arg1: i32) -> (i32, i32) {
    %c0_i32 = arith.constant 0 : i32
    return %arg0, %arg1 : i32, i32
  }
  func.func @transform_1(%arg0: i32, %arg1: i32) -> (i32, i32) {
    %c0_i32 = arith.constant 0 : i32
    %c0_i32_0 = arith.constant 0 : i32
    %c0_i32_1 = arith.constant 0 : i32
    return %c0_i32, %c0_i32_0 : i32, i32
  }
  func.func @transform_2(%arg0: i32, %arg1: i32) -> (i32, i32) {
    %c0_i32 = arith.constant 0 : i32
    %c0_i32_0 = arith.constant 0 : i32
    %c0_i32_1 = arith.constant 0 : i32
    return %c0_i32, %c0_i32_0 : i32, i32
  }
  func.func @transform_3(%arg0: i32, %arg1: i32) -> (i32, i32) {
    %c0_i32 = arith.constant 0 : i32
    %c0_i32_0 = arith.constant 0 : i32
    %c0_i32_1 = arith.constant 0 : i32
    return %c0_i32, %c0_i32_0 : i32, i32
  }
  func.func @transform_4(%arg0: i32, %arg1: i32) -> (i32, i32) {
    %c0_i32 = arith.constant 0 : i32
    %c0_i32_0 = arith.constant 0 : i32
    return %arg0, %c0_i32 : i32, i32
  }
}

module attributes {stable_mosaic.version = 11 : i64} {
  func.func @kernel(%arg0: i32, %arg1: i32, %arg2: memref<256x256xbf16, #tpu.memory_space<vmem>>, %arg3: memref<256x128xbf16, #tpu.memory_space<vmem>>, %arg4: memref<1x128xf32, #tpu.memory_space<vmem>>, %arg5: memref<128x128xbf16, #tpu.memory_space<vmem>>, %arg6: memref<1x128xf32, #tpu.memory_space<vmem>>, %arg7: memref<256x128xf32, #tpu.memory_space<vmem>>, %arg8: memref<256x128xf32, #tpu.memory_space<vmem>>) attributes {dimension_semantics = [#tpu.dimension_semantics<parallel>, #tpu.dimension_semantics<arbitrary>], iteration_bounds = array<i64: 1, 1>, scalar_prefetch = 0 : i64, scratch_operands = 1 : i64, tpu.core_type = #tpu.core_type<tc>, window_params = [{transform_indices = @transform_0, window_bounds = array<i64: 256, 256>}, {pipeline_mode = #tpu.pipeline_mode<synchronous>, transform_indices = @transform_1, window_bounds = array<i64: 256, 128>}, {pipeline_mode = #tpu.pipeline_mode<synchronous>, transform_indices = @transform_2, window_bounds = array<i64: 1, 128>}, {pipeline_mode = #tpu.pipeline_mode<synchronous>, transform_indices = @transform_3, window_bounds = array<i64: 128, 128>}, {pipeline_mode = #tpu.pipeline_mode<synchronous>, transform_indices = @transform_4, window_bounds = array<i64: 1, 128>}, {transform_indices = @transform_5, window_bounds = array<i64: 256, 128>}]} {
    %c0_i32 = arith.constant 0 : i32
    %0 = arith.cmpi eq, %arg1, %c0_i32 : i32
    %1 = arith.extui %0 : i1 to i32
    %c0_i32_0 = arith.constant 0 : i32
    %2 = arith.cmpi ne, %1, %c0_i32_0 : i32
    scf.if %2 {
      %cst_9 = arith.constant 0.000000e+00 : f32
      %15 = vector.broadcast %cst_9 : f32 to vector<256x128xf32>
      %c0_10 = arith.constant 0 : index
      %c0_11 = arith.constant 0 : index
      %16 = vector.load %arg8[%c0_10, %c0_11] : memref<256x128xf32, #tpu.memory_space<vmem>>, vector<256x128xf32>
      tpu.vector_store %arg8[%c0_10, %c0_11], %15 {strides = array<i32>} : memref<256x128xf32, #tpu.memory_space<vmem>>, vector<256x128xf32>,
    } else {
    }
    %c256_i32 = arith.constant 256 : i32
    %3 = arith.muli %arg1, %c256_i32 : i32
    %4 = tpu.assume_multiple %3, 256 : i32
    %5 = arith.index_cast %4 : i32 to index
    %c0 = arith.constant 0 : index
    %6 = vector.load %arg3[%5, %c0] : memref<256x128xbf16, #tpu.memory_space<vmem>>, vector<256x128xbf16>
    %c0_1 = arith.constant 0 : index
    %c0_2 = arith.constant 0 : index
    %7 = vector.load %arg8[%c0_1, %c0_2] : memref<256x128xf32, #tpu.memory_space<vmem>>, vector<256x128xf32>
    %c0_3 = arith.constant 0 : index
    %c0_4 = arith.constant 0 : index
    %8 = vector.load %arg2[%c0_3, %c0_4] : memref<256x256xbf16, #tpu.memory_space<vmem>>, vector<256x256xbf16>
    %cst = arith.constant dense<0.000000e+00> : vector<256x128xf32>
    %9 = tpu.matmul %8, %6, %cst {dimension_numbers = #tpu.dot_dimension_numbers<[1], [0], [0], [1], [0, 0, 1, 1], [], []>} : vector<256x256xbf16>, vector<256x128xbf16>, vector<256x128xf32> -> vector<256x128xf32>
    %10 = arith.addf %7, %9 : vector<256x128xf32>
    %c0_5 = arith.constant 0 : index
    %c0_6 = arith.constant 0 : index
    %11 = vector.load %arg8[%c0_5, %c0_6] : memref<256x128xf32, #tpu.memory_space<vmem>>, vector<256x128xf32>
    tpu.vector_store %arg8[%c0_5, %c0_6], %10 {strides = array<i32>} : memref<256x128xf32, #tpu.memory_space<vmem>>, vector<256x128xf32>,
    %c0_i32_7 = arith.constant 0 : i32
    %12 = arith.cmpi eq, %arg1, %c0_i32_7 : i32
    %13 = arith.extui %12 : i1 to i32
    %c0_i32_8 = arith.constant 0 : i32
    %14 = arith.cmpi ne, %13, %c0_i32_8 : i32
    scf.if %14 {
      %c0_9 = arith.constant 0 : index
      %c0_10 = arith.constant 0 : index
      %15 = vector.load %arg8[%c0_9, %c0_10] : memref<256x128xf32, #tpu.memory_space<vmem>>, vector<256x128xf32>
      %c0_11 = arith.constant 0 : index
      %c0_12 = arith.constant 0 : index
      %16 = vector.load %arg4[%c0_11, %c0_12] : memref<1x128xf32, #tpu.memory_space<vmem>>, vector<1x128xf32>
      %17 = vector.broadcast %16 : vector<1x128xf32> to vector<256x128xf32>
      %18 = arith.addf %15, %17 : vector<256x128xf32>
      %19 = arith.truncf %18 : vector<256x128xf32> to vector<256x128xbf16>
      %c0_13 = arith.constant 0 : index
      %c0_14 = arith.constant 0 : index
      %20 = vector.load %arg5[%c0_13, %c0_14] : memref<128x128xbf16, #tpu.memory_space<vmem>>, vector<128x128xbf16>
      %cst_15 = arith.constant dense<0.000000e+00> : vector<256x128xf32>
      %21 = tpu.matmul %19, %20, %cst_15 {dimension_numbers = #tpu.dot_dimension_numbers<[1], [0], [0], [1], [0, 0, 1, 1], [], []>} : vector<256x128xbf16>, vector<128x128xbf16>, vector<256x128xf32> -> vector<256x128xf32>
      %c0_16 = arith.constant 0 : index
      %c0_17 = arith.constant 0 : index
      %22 = vector.load %arg6[%c0_16, %c0_17] : memref<1x128xf32, #tpu.memory_space<vmem>>, vector<1x128xf32>
      %23 = vector.broadcast %22 : vector<1x128xf32> to vector<256x128xf32>
      %24 = arith.addf %21, %23 : vector<256x128xf32>
      %c0_18 = arith.constant 0 : index
      %c0_19 = arith.constant 0 : index
      %25 = vector.load %arg7[%c0_18, %c0_19] : memref<256x128xf32, #tpu.memory_space<vmem>>, vector<256x128xf32>
      tpu.vector_store %arg7[%c0_18, %c0_19], %24 {strides = array<i32>} : memref<256x128xf32, #tpu.memory_space<vmem>>, vector<256x128xf32>,
    } else {
    }
    return
  }
  func.func @transform_0(%arg0: i32, %arg1: i32) -> (i32, i32) {
    %c0_i32 = arith.constant 0 : i32
    return %arg0, %arg1 : i32, i32
  }
  func.func @transform_1(%arg0: i32, %arg1: i32) -> (i32, i32) {
    %c0_i32 = arith.constant 0 : i32
    %c0_i32_0 = arith.constant 0 : i32
    %c0_i32_1 = arith.constant 0 : i32
    return %c0_i32, %c0_i32_0 : i32, i32
  }
  func.func @transform_2(%arg0: i32, %arg1: i32) -> (i32, i32) {
    %c0_i32 = arith.constant 0 : i32
    %c0_i32_0 = arith.constant 0 : i32
    %c0_i32_1 = arith.constant 0 : i32
    return %c0_i32, %c0_i32_0 : i32, i32
  }
  func.func @transform_3(%arg0: i32, %arg1: i32) -> (i32, i32) {
    %c0_i32 = arith.constant 0 : i32
    %c0_i32_0 = arith.constant 0 : i32
    %c0_i32_1 = arith.constant 0 : i32
    return %c0_i32, %c0_i32_0 : i32, i32
  }
  func.func @transform_4(%arg0: i32, %arg1: i32) -> (i32, i32) {
    %c0_i32 = arith.constant 0 : i32
    %c0_i32_0 = arith.constant 0 : i32
    %c0_i32_1 = arith.constant 0 : i32
    return %c0_i32, %c0_i32_0 : i32, i32
  }
  func.func @transform_5(%arg0: i32, %arg1: i32) -> (i32, i32) {
    %c0_i32 = arith.constant 0 : i32
    %c0_i32_0 = arith.constant 0 : i32
    return %arg0, %c0_i32 : i32, i32
  }
}

</mosaic_0001>

<llo_original>
// kernel: gcn_forward_padded.3
$region0: #{gcn_forward_padded.3}
  #allocation0 [shape = 'u32[]', space=smem, size = 0x4, offset = 0x4, fixed_abs, tag = 'smem constant byte address 0x4 - core index']
  #allocation1 [shape = 'u32[144,128]{1,0:T(1,128)}', space=vmem, size = 0x12000, scoped, tag = 'internal scratch']
  #allocation2 [shape = 'f32[256,128]{1,0:T(8,128)}', space=vmem, size = 0x20000, scoped, tag = 'scratch operand']
  %s0 = inlined_call_operand.hbm [shape: bf16[256,128], index: 0, kind: input, shape index: {}]
  %s1 = inlined_call_operand.hbm [shape: bf16[128,128], index: 1, kind: input, shape index: {}]
  %s2 = inlined_call_operand.hbm [shape: bf16[256,128], index: 2, kind: output, shape index: {}]
  %s3 = sld [smem:[#allocation0]]
  $region34: #{gcn_forward_padded.3} parent=0
    _
  %s5 = ssub.s32 1, %s3
  %s6 = scalar_select 0, %s5, %s3
  $region1: #{gcn_forward_padded.3} parent=0
    #allocation3 [shape = 'u8[65536]{0}', space=vmem, size = 0x10000, scoped, tag = 'input window, operand 0, single buffered']
    #allocation4 [shape = 's32[1]{0}', space=sflag, size = 0x4, scoped, tag = 'scoped memory for gcn_forward_padded.3']
    #allocation5 [shape = 's32[1]{0}', space=sflag, size = 0x4, scoped, tag = 'scoped memory for gcn_forward_padded.3']
    #allocation6 [shape = 'u8[32768]{0}', space=vmem, size = 0x8000, scoped, tag = 'input window, operand 1, single buffered']
    #allocation7 [shape = 's32[1]{0}', space=sflag, size = 0x4, scoped, tag = 'scoped memory for gcn_forward_padded.3']
    #allocation8 [shape = 'u8[65536]{0}', space=vmem, size = 0x10000, scoped, tag = 'output window, operand 0, single buffered']
    %7 = vsyncpa [#allocation4], 0
    %8 = vsyncpa [#allocation7], 0
    %9 = vsyncpa [#allocation5], 0
    // Predicated region
    $region2: #{gcn_forward_padded.3} parent=1 // pred_check
      _
    $region3: #{gcn_forward_padded.3} parent=1 // pred_check_branch
      %11 = sbr.rel (0) target = $region5
    $region4: #{gcn_forward_padded.3} parent=1 // pred_region
      %s13 = ssub.s32 2048, 2048
      %14 = vsyncadd [#allocation4], %s13
      %s15 = sshll.u32 [#allocation3], 4
      %s16 = int_to_ptr.vmem [resolvable:$true] %s15
      %21 = dma.hbm_to_vmem [thread:$0]  %s0, 2048, %s16, [#allocation4], 64, 64, 4
    $region5: #{gcn_forward_padded.3} parent=1 // pred_fallthru
      _
    // Predicated region
    $region6: #{gcn_forward_padded.3} parent=1 // pred_check
      _
    $region7: #{gcn_forward_padded.3} parent=1 // pred_check_branch
      %23 = sbr.rel (0) target = $region9
    $region8: #{gcn_forward_padded.3} parent=1 // pred_region
      %s25 = ssub.s32 1024, 1024
      %26 = vsyncadd [#allocation7], %s25
      %s27 = sshll.u32 [#allocation6], 4
      %s28 = int_to_ptr.vmem [resolvable:$true] %s27
      %33 = dma.hbm_to_vmem [thread:$0]  %s1, 1024, %s28, [#allocation7], 64, 64, 4
    $region9: #{gcn_forward_padded.3} parent=1 // pred_fallthru
      _
    // Predicated region
    $region10: #{gcn_forward_padded.3} parent=1 // pred_check
      _
    $region11: #{gcn_forward_padded.3} parent=1 // pred_check_branch
      %35 = sbr.rel (0) target = $region13
    $region12: #{gcn_forward_padded.3} parent=1 // pred_region
      %36 = dma.done [#allocation4], 2048
    $region13: #{gcn_forward_padded.3} parent=1 // pred_fallthru
      _
    // Predicated region
    $region14: #{gcn_forward_padded.3} parent=1 // pred_check
      _
    $region15: #{gcn_forward_padded.3} parent=1 // pred_check_branch
      %38 = sbr.rel (0) target = $region17
    $region16: #{gcn_forward_padded.3} parent=1 // pred_region
      %39 = dma.done [#allocation7], 1024
    $region17: #{gcn_forward_padded.3} parent=1 // pred_fallthru
      _
    %p41 = scmp.eq.s32.totalorder 0, 0
    // Predicated region
    $region18: #{gcn_forward_padded.3} parent=1 // pred_check
      %p42 = pneg %p41
    $region19: #{gcn_forward_padded.3} parent=1 // pred_check_branch
      %44 = sbr.rel (%p42) target = $region21
    $region20: #{gcn_forward_padded.3} parent=1 // pred_region
      %45 = vst [vmem:[#allocation2] sm:$0xff] 0.0
      %46 = vst [vmem:[#allocation2 + $0x8] sm:$0xff] 0.0
      %47 = vst [vmem:[#allocation2 + $0x10] sm:$0xff] 0.0
      %48 = vst [vmem:[#allocation2 + $0x18] sm:$0xff] 0.0
      %49 = vst [vmem:[#allocation2 + $0x20] sm:$0xff] 0.0
      %50 = vst [vmem:[#allocation2 + $0x28] sm:$0xff] 0.0
      %51 = vst [vmem:[#allocation2 + $0x30] sm:$0xff] 0.0
      %52 = vst [vmem:[#allocation2 + $0x38] sm:$0xff] 0.0
      %53 = vst [vmem:[#allocation2 + $0x40] sm:$0xff] 0.0
      %54 = vst [vmem:[#allocation2 + $0x48] sm:$0xff] 0.0
      %55 = vst [vmem:[#allocation2 + $0x50] sm:$0xff] 0.0
      %56 = vst [vmem:[#allocation2 + $0x58] sm:$0xff] 0.0
      %57 = vst [vmem:[#allocation2 + $0x60] sm:$0xff] 0.0
      %58 = vst [vmem:[#allocation2 + $0x68] sm:$0xff] 0.0
      %59 = vst [vmem:[#allocation2 + $0x70] sm:$0xff] 0.0
      %60 = vst [vmem:[#allocation2 + $0x78] sm:$0xff] 0.0
      %61 = vst [vmem:[#allocation2 + $0x80] sm:$0xff] 0.0
      %62 = vst [vmem:[#allocation2 + $0x88] sm:$0xff] 0.0
      %63 = vst [vmem:[#allocation2 + $0x90] sm:$0xff] 0.0
      %64 = vst [vmem:[#allocation2 + $0x98] sm:$0xff] 0.0
      %65 = vst [vmem:[#allocation2 + $0xa0] sm:$0xff] 0.0
      %66 = vst [vmem:[#allocation2 + $0xa8] sm:$0xff] 0.0
      %67 = vst [vmem:[#allocation2 + $0xb0] sm:$0xff] 0.0
      %68 = vst [vmem:[#allocation2 + $0xb8] sm:$0xff] 0.0
      %69 = vst [vmem:[#allocation2 + $0xc0] sm:$0xff] 0.0
      %70 = vst [vmem:[#allocation2 + $0xc8] sm:$0xff] 0.0
      %71 = vst [vmem:[#allocation2 + $0xd0] sm:$0xff] 0.0
      %72 = vst [vmem:[#allocation2 + $0xd8] sm:$0xff] 0.0
      %73 = vst [vmem:[#allocation2 + $0xe0] sm:$0xff] 0.0
      %74 = vst [vmem:[#allocation2 + $0xe8] sm:$0xff] 0.0
      %75 = vst [vmem:[#allocation2 + $0xf0] sm:$0xff] 0.0
      %76 = vst [vmem:[#allocation2 + $0xf8] sm:$0xff] 0.0
    $region21: #{gcn_forward_padded.3} parent=1 // pred_fallthru
      _
    %v77 = vld [vmem:[#allocation2] sm:$0xff]
    %v78 = vld [vmem:[#allocation2 + $0x8] sm:$0xff]
    %v79 = vld [vmem:[#allocation2 + $0x10] sm:$0xff]
    %v80 = vld [vmem:[#allocation2 + $0x18] sm:$0xff]
    %v81 = vld [vmem:[#allocation2 + $0x20] sm:$0xff]
    %v82 = vld [vmem:[#allocation2 + $0x28] sm:$0xff]
    %v83 = vld [vmem:[#allocation2 + $0x30] sm:$0xff]
    %v84 = vld [vmem:[#allocation2 + $0x38] sm:$0xff]
    %v85 = vld [vmem:[#allocation2 + $0x40] sm:$0xff]
    %v86 = vld [vmem:[#allocation2 + $0x48] sm:$0xff]
    %v87 = vld [vmem:[#allocation2 + $0x50] sm:$0xff]
    %v88 = vld [vmem:[#allocation2 + $0x58] sm:$0xff]
    %v89 = vld [vmem:[#allocation2 + $0x60] sm:$0xff]
    %v90 = vld [vmem:[#allocation2 + $0x68] sm:$0xff]
    %v91 = vld [vmem:[#allocation2 + $0x70] sm:$0xff]
    %v92 = vld [vmem:[#allocation2 + $0x78] sm:$0xff]
    %v93 = vld [vmem:[#allocation2 + $0x80] sm:$0xff]
    %v94 = vld [vmem:[#allocation2 + $0x88] sm:$0xff]
    %v95 = vld [vmem:[#allocation2 + $0x90] sm:$0xff]
    %v96 = vld [vmem:[#allocation2 + $0x98] sm:$0xff]
    %v97 = vld [vmem:[#allocation2 + $0xa0] sm:$0xff]
    %v98 = vld [vmem:[#allocation2 + $0xa8] sm:$0xff]
    %v99 = vld [vmem:[#allocation2 + $0xb0] sm:$0xff]
    %v100 = vld [vmem:[#allocation2 + $0xb8] sm:$0xff]
    %v101 = vld [vmem:[#allocation2 + $0xc0] sm:$0xff]
    %v102 = vld [vmem:[#allocation2 + $0xc8] sm:$0xff]
    %v103 = vld [vmem:[#allocation2 + $0xd0] sm:$0xff]
    %v104 = vld [vmem:[#allocation2 + $0xd8] sm:$0xff]
    %v105 = vld [vmem:[#allocation2 + $0xe0] sm:$0xff]
    %v106 = vld [vmem:[#allocation2 + $0xe8] sm:$0xff]
    %v107 = vld [vmem:[#allocation2 + $0xf0] sm:$0xff]
    %v108 = vld [vmem:[#allocation2 + $0xf8] sm:$0xff]
    %v109 = vld [vmem:[#allocation3] sm:$0xf]
    %v110 = vld [vmem:[#allocation3 + $0x4] sm:$0xf]
    %v111 = vld [vmem:[#allocation3 + $0x8] sm:$0xf]
    %v112 = vld [vmem:[#allocation3 + $0xc] sm:$0xf]
    %v113 = vld [vmem:[#allocation3 + $0x10] sm:$0xf]
    %v114 = vld [vmem:[#allocation3 + $0x14] sm:$0xf]
    %v115 = vld [vmem:[#allocation3 + $0x18] sm:$0xf]
    %v116 = vld [vmem:[#allocation3 + $0x1c] sm:$0xf]
    %v117 = vld [vmem:[#allocation3 + $0x20] sm:$0xf]
    %v118 = vld [vmem:[#allocation3 + $0x24] sm:$0xf]
    %v119 = vld [vmem:[#allocation3 + $0x28] sm:$0xf]
    %v120 = vld [vmem:[#allocation3 + $0x2c] sm:$0xf]
    %v121 = vld [vmem:[#allocation3 + $0x30] sm:$0xf]
    %v122 = vld [vmem:[#allocation3 + $0x34] sm:$0xf]
    %v123 = vld [vmem:[#allocation3 + $0x38] sm:$0xf]
    %v124 = vld [vmem:[#allocation3 + $0x3c] sm:$0xf]
    %v125 = vld [vmem:[#allocation3 + $0x40] sm:$0xf]
    %v126 = vld [vmem:[#allocation3 + $0x44] sm:$0xf]
    %v127 = vld [vmem:[#allocation3 + $0x48] sm:$0xf]
    %v128 = vld [vmem:[#allocation3 + $0x4c] sm:$0xf]
    %v129 = vld [vmem:[#allocation3 + $0x50] sm:$0xf]
    %v130 = vld [vmem:[#allocation3 + $0x54] sm:$0xf]
    %v131 = vld [vmem:[#allocation3 + $0x58] sm:$0xf]
    %v132 = vld [vmem:[#allocation3 + $0x5c] sm:$0xf]
    %v133 = vld [vmem:[#allocation3 + $0x60] sm:$0xf]
    %v134 = vld [vmem:[#allocation3 + $0x64] sm:$0xf]
    %v135 = vld [vmem:[#allocation3 + $0x68] sm:$0xf]
    %v136 = vld [vmem:[#allocation3 + $0x6c] sm:$0xf]
    %v137 = vld [vmem:[#allocation3 + $0x70] sm:$0xf]
    %v138 = vld [vmem:[#allocation3 + $0x74] sm:$0xf]
    %v139 = vld [vmem:[#allocation3 + $0x78] sm:$0xf]
    %v140 = vld [vmem:[#allocation3 + $0x7c] sm:$0xf]
    %v141 = vld [vmem:[#allocation6] sm:$0xf]
    %v142 = vld [vmem:[#allocation6 + $0x4] sm:$0xf]
    %v143 = vld [vmem:[#allocation6 + $0x8] sm:$0xf]
    %v144 = vld [vmem:[#allocation6 + $0xc] sm:$0xf]
    %v145 = vld [vmem:[#allocation6 + $0x10] sm:$0xf]
    %v146 = vld [vmem:[#allocation6 + $0x14] sm:$0xf]
    %v147 = vld [vmem:[#allocation6 + $0x18] sm:$0xf]
    %v148 = vld [vmem:[#allocation6 + $0x1c] sm:$0xf]
    %v149 = vld [vmem:[#allocation6 + $0x20] sm:$0xf]
    %v150 = vld [vmem:[#allocation6 + $0x24] sm:$0xf]
    %v151 = vld [vmem:[#allocation6 + $0x28] sm:$0xf]
    %v152 = vld [vmem:[#allocation6 + $0x2c] sm:$0xf]
    %v153 = vld [vmem:[#allocation6 + $0x30] sm:$0xf]
    %v154 = vld [vmem:[#allocation6 + $0x34] sm:$0xf]
    %v155 = vld [vmem:[#allocation6 + $0x38] sm:$0xf]
    %v156 = vld [vmem:[#allocation6 + $0x3c] sm:$0xf]
    %v189 = vunpack.c.l.b16 %v109
    %v190 = vunpack.c.l.b16 %v110
    %v191 = vunpack.c.l.b16 %v111
    %v192 = vunpack.c.l.b16 %v112
    %v193 = vunpack.c.l.b16 %v113
    %v194 = vunpack.c.l.b16 %v114
    %v195 = vunpack.c.l.b16 %v115
    %v196 = vunpack.c.l.b16 %v116
    %v197 = vunpack.c.l.b16 %v117
    %v198 = vunpack.c.l.b16 %v118
    %v199 = vunpack.c.l.b16 %v119
    %v200 = vunpack.c.l.b16 %v120
    %v201 = vunpack.c.l.b16 %v121
    %v202 = vunpack.c.l.b16 %v122
    %v203 = vunpack.c.l.b16 %v123
    %v204 = vunpack.c.l.b16 %v124
    %v205 = vunpack.c.l.b16 %v125
    %v206 = vunpack.c.l.b16 %v126
    %v207 = vunpack.c.l.b16 %v127
    %v208 = vunpack.c.l.b16 %v128
    %v209 = vunpack.c.l.b16 %v129
    %v210 = vunpack.c.l.b16 %v130
    %v211 = vunpack.c.l.b16 %v131
    %v212 = vunpack.c.l.b16 %v132
    %v213 = vunpack.c.l.b16 %v133
    %v214 = vunpack.c.l.b16 %v134
    %v215 = vunpack.c.l.b16 %v135
    %v216 = vunpack.c.l.b16 %v136
    %v217 = vunpack.c.l.b16 %v137
    %v218 = vunpack.c.l.b16 %v138
    %v219 = vunpack.c.l.b16 %v139
    %v220 = vunpack.c.l.b16 %v140
    %v221 = vpack.c.b16 %v190, %v189
    %v222 = vpack.c.b16 %v192, %v191
    %v223 = vpack.c.b16 %v194, %v193
    %v224 = vpack.c.b16 %v196, %v195
    %v225 = vpack.c.b16 %v198, %v197
    %v226 = vpack.c.b16 %v200, %v199
    %v227 = vpack.c.b16 %v202, %v201
    %v228 = vpack.c.b16 %v204, %v203
    %v229 = vpack.c.b16 %v206, %v205
    %v230 = vpack.c.b16 %v208, %v207
    %v231 = vpack.c.b16 %v210, %v209
    %v232 = vpack.c.b16 %v212, %v211
    %v233 = vpack.c.b16 %v214, %v213
    %v234 = vpack.c.b16 %v216, %v215
    %v235 = vpack.c.b16 %v218, %v217
    %v236 = vpack.c.b16 %v220, %v219
    %v269 = vunpack.c.l.b16 %v141
    %v270 = vunpack.c.l.b16 %v142
    %v271 = vunpack.c.l.b16 %v143
    %v272 = vunpack.c.l.b16 %v144
    %v273 = vunpack.c.l.b16 %v145
    %v274 = vunpack.c.l.b16 %v146
    %v275 = vunpack.c.l.b16 %v147
    %v276 = vunpack.c.l.b16 %v148
    %v277 = vunpack.c.l.b16 %v149
    %v278 = vunpack.c.l.b16 %v150
    %v279 = vunpack.c.l.b16 %v151
    %v280 = vunpack.c.l.b16 %v152
    %v281 = vunpack.c.l.b16 %v153
    %v282 = vunpack.c.l.b16 %v154
    %v283 = vunpack.c.l.b16 %v155
    %v284 = vunpack.c.l.b16 %v156
    %v285 = vpack.c.b16 %v270, %v269
    %v286 = vpack.c.b16 %v272, %v271
    %v287 = vpack.c.b16 %v274, %v273
    %v288 = vpack.c.b16 %v276, %v275
    %v289 = vpack.c.b16 %v278, %v277
    %v290 = vpack.c.b16 %v280, %v279
    %v291 = vpack.c.b16 %v282, %v281
    %v292 = vpack.c.b16 %v284, %v283
    %301 = vmatprep.subr.bf16.mxu0 0
    %302 = vmatpush1.bf16.msra.mxu0 %v285
    %303 = vmatprep.subr.bf16.mxu0 0
    %304 = vmatpush1.bf16.msra.mxu0 %v286
    %305 = vmatprep.subr.bf16.mxu0 0
    %306 = vmatpush1.bf16.msra.mxu0 %v287
    %307 = vmatprep.subr.bf16.mxu0 0
    %308 = vmatpush1.bf16.msra.mxu0 %v288
    %309 = vmatprep.subr.bf16.mxu0 0
    %310 = vmatpush1.bf16.msra.mxu0 %v289
    %311 = vmatprep.subr.bf16.mxu0 0
    %312 = vmatpush1.bf16.msra.mxu0 %v290
    %313 = vmatprep.subr.bf16.mxu0 0
    %314 = vmatpush1.bf16.msra.mxu0 %v291
    %315 = vmatprep.subr.bf16.mxu0 0
    %316 = vmatpush1.bf16.msra.mxu0 %v292
    %317 = vmatprep.subr.bf16.mxu0 0
    %318 = vmatpush1.bf16.msra.mxu0 0
    %319 = vmatprep.subr.bf16.mxu0 0
    %320 = vmatpush1.bf16.msra.mxu0 0
    %321 = vmatprep.subr.bf16.mxu0 0
    %322 = vmatpush1.bf16.msra.mxu0 0
    %323 = vmatprep.subr.bf16.mxu0 0
    %324 = vmatpush1.bf16.msra.mxu0 0
    %325 = vmatprep.subr.bf16.mxu0 0
    %326 = vmatpush1.bf16.msra.mxu0 0
    %327 = vmatprep.subr.bf16.mxu0 0
    %328 = vmatpush1.bf16.msra.mxu0 0
    %329 = vmatprep.subr.bf16.mxu0 0
    %330 = vmatpush1.bf16.msra.mxu0 0
    %331 = vmatprep.subr.bf16.mxu0 0
    %332 = vmatpush1.bf16.msra.mxu0 0
    %333 = vmatprep.mubr.bf16.mxu0 0
    %334 = vmatmul.mubr.bf16.gmra.mrb[0].mxu0 %v221
    %v335 = vpop.f32.mrb[0].mxu0
    %v336 = vadd.f32 0.0, %v335
    %v337 = vpop.f32.mrb[0].mxu0
    %v338 = vpop.f32.mrb[0].mxu0
    %v339 = vadd.f32 0.0, %v338
    %v340 = vpop.f32.mrb[0].mxu0
    %341 = vmatprep.mubr.bf16.mxu0 0
    %342 = vmatmul.mubr.bf16.gmra.mrb[0].mxu0 %v222
    %v343 = vpop.f32.mrb[0].mxu0
    %v344 = vadd.f32 0.0, %v343
    %v345 = vpop.f32.mrb[0].mxu0
    %v346 = vpop.f32.mrb[0].mxu0
    %v347 = vadd.f32 0.0, %v346
    %v348 = vpop.f32.mrb[0].mxu0
    %349 = vmatprep.mubr.bf16.mxu0 0
    %350 = vmatmul.mubr.bf16.gmra.mrb[0].mxu0 %v223
    %v351 = vpop.f32.mrb[0].mxu0
    %v352 = vadd.f32 0.0, %v351
    %v353 = vpop.f32.mrb[0].mxu0
    %v354 = vpop.f32.mrb[0].mxu0
    %v355 = vadd.f32 0.0, %v354
    %v356 = vpop.f32.mrb[0].mxu0
    %357 = vmatprep.mubr.bf16.mxu0 0
    %358 = vmatmul.mubr.bf16.gmra.mrb[0].mxu0 %v224
    %v359 = vpop.f32.mrb[0].mxu0
    %v360 = vadd.f32 0.0, %v359
    %v361 = vpop.f32.mrb[0].mxu0
    %v362 = vpop.f32.mrb[0].mxu0
    %v363 = vadd.f32 0.0, %v362
    %v364 = vpop.f32.mrb[0].mxu0
    %365 = vmatprep.mubr.bf16.mxu0 0
    %366 = vmatmul.mubr.bf16.gmra.mrb[0].mxu0 %v225
    %v367 = vpop.f32.mrb[0].mxu0
    %v368 = vadd.f32 0.0, %v367
    %v369 = vpop.f32.mrb[0].mxu0
    %v370 = vpop.f32.mrb[0].mxu0
    %v371 = vadd.f32 0.0, %v370
    %v372 = vpop.f32.mrb[0].mxu0
    %373 = vmatprep.mubr.bf16.mxu0 0
    %374 = vmatmul.mubr.bf16.gmra.mrb[0].mxu0 %v226
    %v375 = vpop.f32.mrb[0].mxu0
    %v376 = vadd.f32 0.0, %v375
    %v377 = vpop.f32.mrb[0].mxu0
    %v378 = vpop.f32.mrb[0].mxu0
    %v379 = vadd.f32 0.0, %v378
    %v380 = vpop.f32.mrb[0].mxu0
    %381 = vmatprep.mubr.bf16.mxu0 0
    %382 = vmatmul.mubr.bf16.gmra.mrb[0].mxu0 %v227
    %v383 = vpop.f32.mrb[0].mxu0
    %v384 = vadd.f32 0.0, %v383
    %v385 = vpop.f32.mrb[0].mxu0
    %v386 = vpop.f32.mrb[0].mxu0
    %v387 = vadd.f32 0.0, %v386
    %v388 = vpop.f32.mrb[0].mxu0
    %389 = vmatprep.mubr.bf16.mxu0 0
    %390 = vmatmul.mubr.bf16.gmra.mrb[0].mxu0 %v228
    %v391 = vpop.f32.mrb[0].mxu0
    %v392 = vadd.f32 0.0, %v391
    %v393 = vpop.f32.mrb[0].mxu0
    %v394 = vpop.f32.mrb[0].mxu0
    %v395 = vadd.f32 0.0, %v394
    %v396 = vpop.f32.mrb[0].mxu0
    %397 = vmatprep.mubr.bf16.mxu0 0
    %398 = vmatmul.mubr.bf16.gmra.mrb[0].mxu0 %v229
    %v399 = vpop.f32.mrb[0].mxu0
    %v400 = vadd.f32 0.0, %v399
    %v401 = vpop.f32.mrb[0].mxu0
    %v402 = vpop.f32.mrb[0].mxu0
    %v403 = vadd.f32 0.0, %v402
    %v404 = vpop.f32.mrb[0].mxu0
    %405 = vmatprep.mubr.bf16.mxu0 0
    %406 = vmatmul.mubr.bf16.gmra.mrb[0].mxu0 %v230
    %v407 = vpop.f32.mrb[0].mxu0
    %v408 = vadd.f32 0.0, %v407
    %v409 = vpop.f32.mrb[0].mxu0
    %v410 = vpop.f32.mrb[0].mxu0
    %v411 = vadd.f32 0.0, %v410
    %v412 = vpop.f32.mrb[0].mxu0
    %413 = vmatprep.mubr.bf16.mxu0 0
    %414 = vmatmul.mubr.bf16.gmra.mrb[0].mxu0 %v231
    %v415 = vpop.f32.mrb[0].mxu0
    %v416 = vadd.f32 0.0, %v415
    %v417 = vpop.f32.mrb[0].mxu0
    %v418 = vpop.f32.mrb[0].mxu0
    %v419 = vadd.f32 0.0, %v418
    %v420 = vpop.f32.mrb[0].mxu0
    %421 = vmatprep.mubr.bf16.mxu0 0
    %422 = vmatmul.mubr.bf16.gmra.mrb[0].mxu0 %v232
    %v423 = vpop.f32.mrb[0].mxu0
    %v424 = vadd.f32 0.0, %v423
    %v425 = vpop.f32.mrb[0].mxu0
    %v426 = vpop.f32.mrb[0].mxu0
    %v427 = vadd.f32 0.0, %v426
    %v428 = vpop.f32.mrb[0].mxu0
    %429 = vmatprep.mubr.bf16.mxu0 0
    %430 = vmatmul.mubr.bf16.gmra.mrb[0].mxu0 %v233
    %v431 = vpop.f32.mrb[0].mxu0
    %v432 = vadd.f32 0.0, %v431
    %v433 = vpop.f32.mrb[0].mxu0
    %v434 = vpop.f32.mrb[0].mxu0
    %v435 = vadd.f32 0.0, %v434
    %v436 = vpop.f32.mrb[0].mxu0
    %437 = vmatprep.mubr.bf16.mxu0 0
    %438 = vmatmul.mubr.bf16.gmra.mrb[0].mxu0 %v234
    %v439 = vpop.f32.mrb[0].mxu0
    %v440 = vadd.f32 0.0, %v439
    %v441 = vpop.f32.mrb[0].mxu0
    %v442 = vpop.f32.mrb[0].mxu0
    %v443 = vadd.f32 0.0, %v442
    %v444 = vpop.f32.mrb[0].mxu0
    %445 = vmatprep.mubr.bf16.mxu0 0
    %446 = vmatmul.mubr.bf16.gmra.mrb[0].mxu0 %v235
    %v447 = vpop.f32.mrb[0].mxu0
    %v448 = vadd.f32 0.0, %v447
    %v449 = vpop.f32.mrb[0].mxu0
    %v450 = vpop.f32.mrb[0].mxu0
    %v451 = vadd.f32 0.0, %v450
    %v452 = vpop.f32.mrb[0].mxu0
    %453 = vmatprep.mubr.bf16.mxu0 0
    %454 = vmatmul.mubr.bf16.gmra.mrb[0].mxu0 %v236
    %v455 = vpop.f32.mrb[0].mxu0
    %v456 = vadd.f32 0.0, %v455
    %v457 = vpop.f32.mrb[0].mxu0
    %v458 = vpop.f32.mrb[0].mxu0
    %v459 = vadd.f32 0.0, %v458
    %v460 = vpop.f32.mrb[0].mxu0
    %461 = vdwg.mxu0
    %v462 = vadd.f32 %v77, %v336
    %v463 = vadd.f32 %v78, %v339
    %v464 = vadd.f32 %v79, %v344
    %v465 = vadd.f32 %v80, %v347
    %v466 = vadd.f32 %v81, %v352
    %v467 = vadd.f32 %v82, %v355
    %v468 = vadd.f32 %v83, %v360
    %v469 = vadd.f32 %v84, %v363
    %v470 = vadd.f32 %v85, %v368
    %v471 = vadd.f32 %v86, %v371
    %v472 = vadd.f32 %v87, %v376
    %v473 = vadd.f32 %v88, %v379
    %v474 = vadd.f32 %v89, %v384
    %v475 = vadd.f32 %v90, %v387
    %v476 = vadd.f32 %v91, %v392
    %v477 = vadd.f32 %v92, %v395
    %v478 = vadd.f32 %v93, %v400
    %v479 = vadd.f32 %v94, %v403
    %v480 = vadd.f32 %v95, %v408
    %v481 = vadd.f32 %v96, %v411
    %v482 = vadd.f32 %v97, %v416
    %v483 = vadd.f32 %v98, %v419
    %v484 = vadd.f32 %v99, %v424
    %v485 = vadd.f32 %v100, %v427
    %v486 = vadd.f32 %v101, %v432
    %v487 = vadd.f32 %v102, %v435
    %v488 = vadd.f32 %v103, %v440
    %v489 = vadd.f32 %v104, %v443
    %v490 = vadd.f32 %v105, %v448
    %v491 = vadd.f32 %v106, %v451
    %v492 = vadd.f32 %v107, %v456
    %v493 = vadd.f32 %v108, %v459
    %494 = vst [vmem:[#allocation2] sm:$0xff] %v462
    %495 = vst [vmem:[#allocation2 + $0x8] sm:$0xff] %v463
    %496 = vst [vmem:[#allocation2 + $0x10] sm:$0xff] %v464
    %497 = vst [vmem:[#allocation2 + $0x18] sm:$0xff] %v465
    %498 = vst [vmem:[#allocation2 + $0x20] sm:$0xff] %v466
    %499 = vst [vmem:[#allocation2 + $0x28] sm:$0xff] %v467
    %500 = vst [vmem:[#allocation2 + $0x30] sm:$0xff] %v468
    %501 = vst [vmem:[#allocation2 + $0x38] sm:$0xff] %v469
    %502 = vst [vmem:[#allocation2 + $0x40] sm:$0xff] %v470
    %503 = vst [vmem:[#allocation2 + $0x48] sm:$0xff] %v471
    %504 = vst [vmem:[#allocation2 + $0x50] sm:$0xff] %v472
    %505 = vst [vmem:[#allocation2 + $0x58] sm:$0xff] %v473
    %506 = vst [vmem:[#allocation2 + $0x60] sm:$0xff] %v474
    %507 = vst [vmem:[#allocation2 + $0x68] sm:$0xff] %v475
    %508 = vst [vmem:[#allocation2 + $0x70] sm:$0xff] %v476
    %509 = vst [vmem:[#allocation2 + $0x78] sm:$0xff] %v477
    %510 = vst [vmem:[#allocation2 + $0x80] sm:$0xff] %v478
    %511 = vst [vmem:[#allocation2 + $0x88] sm:$0xff] %v479
    %512 = vst [vmem:[#allocation2 + $0x90] sm:$0xff] %v480
    %513 = vst [vmem:[#allocation2 + $0x98] sm:$0xff] %v481
    %514 = vst [vmem:[#allocation2 + $0xa0] sm:$0xff] %v482
    %515 = vst [vmem:[#allocation2 + $0xa8] sm:$0xff] %v483
    %516 = vst [vmem:[#allocation2 + $0xb0] sm:$0xff] %v484
    %517 = vst [vmem:[#allocation2 + $0xb8] sm:$0xff] %v485
    %518 = vst [vmem:[#allocation2 + $0xc0] sm:$0xff] %v486
    %519 = vst [vmem:[#allocation2 + $0xc8] sm:$0xff] %v487
    %520 = vst [vmem:[#allocation2 + $0xd0] sm:$0xff] %v488
    %521 = vst [vmem:[#allocation2 + $0xd8] sm:$0xff] %v489
    %522 = vst [vmem:[#allocation2 + $0xe0] sm:$0xff] %v490
    %523 = vst [vmem:[#allocation2 + $0xe8] sm:$0xff] %v491
    %524 = vst [vmem:[#allocation2 + $0xf0] sm:$0xff] %v492
    %525 = vst [vmem:[#allocation2 + $0xf8] sm:$0xff] %v493
    // Predicated region
    $region22: #{gcn_forward_padded.3} parent=1 // pred_check
      %p526 = pneg %p41
    $region23: #{gcn_forward_padded.3} parent=1 // pred_check_branch
      %528 = sbr.rel (%p526) target = $region25
    $region24: #{gcn_forward_padded.3} parent=1 // pred_region
      %v529 = vld [vmem:[#allocation2] sm:$0xff]
      %v530 = vld [vmem:[#allocation2 + $0x8] sm:$0xff]
      %v531 = vld [vmem:[#allocation2 + $0x10] sm:$0xff]
      %v532 = vld [vmem:[#allocation2 + $0x18] sm:$0xff]
      %v533 = vld [vmem:[#allocation2 + $0x20] sm:$0xff]
      %v534 = vld [vmem:[#allocation2 + $0x28] sm:$0xff]
      %v535 = vld [vmem:[#allocation2 + $0x30] sm:$0xff]
      %v536 = vld [vmem:[#allocation2 + $0x38] sm:$0xff]
      %v537 = vld [vmem:[#allocation2 + $0x40] sm:$0xff]
      %v538 = vld [vmem:[#allocation2 + $0x48] sm:$0xff]
      %v539 = vld [vmem:[#allocation2 + $0x50] sm:$0xff]
      %v540 = vld [vmem:[#allocation2 + $0x58] sm:$0xff]
      %v541 = vld [vmem:[#allocation2 + $0x60] sm:$0xff]
      %v542 = vld [vmem:[#allocation2 + $0x68] sm:$0xff]
      %v543 = vld [vmem:[#allocation2 + $0x70] sm:$0xff]
      %v544 = vld [vmem:[#allocation2 + $0x78] sm:$0xff]
      %v545 = vld [vmem:[#allocation2 + $0x80] sm:$0xff]
      %v546 = vld [vmem:[#allocation2 + $0x88] sm:$0xff]
      %v547 = vld [vmem:[#allocation2 + $0x90] sm:$0xff]
      %v548 = vld [vmem:[#allocation2 + $0x98] sm:$0xff]
      %v549 = vld [vmem:[#allocation2 + $0xa0] sm:$0xff]
      %v550 = vld [vmem:[#allocation2 + $0xa8] sm:$0xff]
      %v551 = vld [vmem:[#allocation2 + $0xb0] sm:$0xff]
      %v552 = vld [vmem:[#allocation2 + $0xb8] sm:$0xff]
      %v553 = vld [vmem:[#allocation2 + $0xc0] sm:$0xff]
      %v554 = vld [vmem:[#allocation2 + $0xc8] sm:$0xff]
      %v555 = vld [vmem:[#allocation2 + $0xd0] sm:$0xff]
      %v556 = vld [vmem:[#allocation2 + $0xd8] sm:$0xff]
      %v557 = vld [vmem:[#allocation2 + $0xe0] sm:$0xff]
      %v558 = vld [vmem:[#allocation2 + $0xe8] sm:$0xff]
      %v559 = vld [vmem:[#allocation2 + $0xf0] sm:$0xff]
      %v560 = vld [vmem:[#allocation2 + $0xf8] sm:$0xff]
      %v561 = vpack.c.bf16 %v530, %v529
      %v562 = vpack.c.bf16 %v532, %v531
      %v563 = vpack.c.bf16 %v534, %v533
      %v564 = vpack.c.bf16 %v536, %v535
      %v565 = vpack.c.bf16 %v538, %v537
      %v566 = vpack.c.bf16 %v540, %v539
      %v567 = vpack.c.bf16 %v542, %v541
      %v568 = vpack.c.bf16 %v544, %v543
      %v569 = vpack.c.bf16 %v546, %v545
      %v570 = vpack.c.bf16 %v548, %v547
      %v571 = vpack.c.bf16 %v550, %v549
      %v572 = vpack.c.bf16 %v552, %v551
      %v573 = vpack.c.bf16 %v554, %v553
      %v574 = vpack.c.bf16 %v556, %v555
      %v575 = vpack.c.bf16 %v558, %v557
      %v576 = vpack.c.bf16 %v560, %v559
      %v593 = vunpack.c.l.b16 %v561
      %v594 = vunpack.c.h.b16 %v561
      %v595 = vunpack.c.l.b16 %v562
      %v596 = vunpack.c.h.b16 %v562
      %v597 = vunpack.c.l.b16 %v563
      %v598 = vunpack.c.h.b16 %v563
      %v599 = vunpack.c.l.b16 %v564
      %v600 = vunpack.c.h.b16 %v564
      %v601 = vunpack.c.l.b16 %v565
      %v602 = vunpack.c.h.b16 %v565
      %v603 = vunpack.c.l.b16 %v566
      %v604 = vunpack.c.h.b16 %v566
      %v605 = vunpack.c.l.b16 %v567
      %v606 = vunpack.c.h.b16 %v567
      %v607 = vunpack.c.l.b16 %v568
      %v608 = vunpack.c.h.b16 %v568
      %v609 = vunpack.c.l.b16 %v569
      %v610 = vunpack.c.h.b16 %v569
      %v611 = vunpack.c.l.b16 %v570
      %v612 = vunpack.c.h.b16 %v570
      %v613 = vunpack.c.l.b16 %v571
      %v614 = vunpack.c.h.b16 %v571
      %v615 = vunpack.c.l.b16 %v572
      %v616 = vunpack.c.h.b16 %v572
      %v617 = vunpack.c.l.b16 %v573
      %v618 = vunpack.c.h.b16 %v573
      %v619 = vunpack.c.l.b16 %v574
      %v620 = vunpack.c.h.b16 %v574
      %v621 = vunpack.c.l.b16 %v575
      %v622 = vunpack.c.h.b16 %v575
      %v623 = vunpack.c.l.b16 %v576
      %v624 = vunpack.c.h.b16 %v576
      %v625 = vpack.c.b16 %v593, %v593
      %v626 = vpack.c.b16 %v594, %v594
      %v627 = vpack.c.b16 %v595, %v595
      %v628 = vpack.c.b16 %v596, %v596
      %v629 = vpack.c.b16 %v597, %v597
      %v630 = vpack.c.b16 %v598, %v598
      %v631 = vpack.c.b16 %v599, %v599
      %v632 = vpack.c.b16 %v600, %v600
      %v633 = vpack.c.b16 %v601, %v601
      %v634 = vpack.c.b16 %v602, %v602
      %v635 = vpack.c.b16 %v603, %v603
      %v636 = vpack.c.b16 %v604, %v604
      %v637 = vpack.c.b16 %v605, %v605
      %v638 = vpack.c.b16 %v606, %v606
      %v639 = vpack.c.b16 %v607, %v607
      %v640 = vpack.c.b16 %v608, %v608
      %v641 = vpack.c.b16 %v609, %v609
      %v642 = vpack.c.b16 %v610, %v610
      %v643 = vpack.c.b16 %v611, %v611
      %v644 = vpack.c.b16 %v612, %v612
      %v645 = vpack.c.b16 %v613, %v613
      %v646 = vpack.c.b16 %v614, %v614
      %v647 = vpack.c.b16 %v615, %v615
      %v648 = vpack.c.b16 %v616, %v616
      %v649 = vpack.c.b16 %v617, %v617
      %v650 = vpack.c.b16 %v618, %v618
      %v651 = vpack.c.b16 %v619, %v619
      %v652 = vpack.c.b16 %v620, %v620
      %v653 = vpack.c.b16 %v621, %v621
      %v654 = vpack.c.b16 %v622, %v622
      %v655 = vpack.c.b16 %v623, %v623
      %v656 = vpack.c.b16 %v624, %v624
      %689 = vst [vmem:[#allocation8] sm:$0xf] %v625
      %690 = vst [vmem:[#allocation8 + $0x4] sm:$0xf] %v626
      %691 = vst [vmem:[#allocation8 + $0x8] sm:$0xf] %v627
      %692 = vst [vmem:[#allocation8 + $0xc] sm:$0xf] %v628
      %693 = vst [vmem:[#allocation8 + $0x10] sm:$0xf] %v629
      %694 = vst [vmem:[#allocation8 + $0x14] sm:$0xf] %v630
      %695 = vst [vmem:[#allocation8 + $0x18] sm:$0xf] %v631
      %696 = vst [vmem:[#allocation8 + $0x1c] sm:$0xf] %v632
      %697 = vst [vmem:[#allocation8 + $0x20] sm:$0xf] %v633
      %698 = vst [vmem:[#allocation8 + $0x24] sm:$0xf] %v634
      %699 = vst [vmem:[#allocation8 + $0x28] sm:$0xf] %v635
      %700 = vst [vmem:[#allocation8 + $0x2c] sm:$0xf] %v636
      %701 = vst [vmem:[#allocation8 + $0x30] sm:$0xf] %v637
      %702 = vst [vmem:[#allocation8 + $0x34] sm:$0xf] %v638
      %703 = vst [vmem:[#allocation8 + $0x38] sm:$0xf] %v639
      %704 = vst [vmem:[#allocation8 + $0x3c] sm:$0xf] %v640
      %705 = vst [vmem:[#allocation8 + $0x40] sm:$0xf] %v641
      %706 = vst [vmem:[#allocation8 + $0x44] sm:$0xf] %v642
      %707 = vst [vmem:[#allocation8 + $0x48] sm:$0xf] %v643
      %708 = vst [vmem:[#allocation8 + $0x4c] sm:$0xf] %v644
      %709 = vst [vmem:[#allocation8 + $0x50] sm:$0xf] %v645
      %710 = vst [vmem:[#allocation8 + $0x54] sm:$0xf] %v646
      %711 = vst [vmem:[#allocation8 + $0x58] sm:$0xf] %v647
      %712 = vst [vmem:[#allocation8 + $0x5c] sm:$0xf] %v648
      %713 = vst [vmem:[#allocation8 + $0x60] sm:$0xf] %v649
      %714 = vst [vmem:[#allocation8 + $0x64] sm:$0xf] %v650
      %715 = vst [vmem:[#allocation8 + $0x68] sm:$0xf] %v651
      %716 = vst [vmem:[#allocation8 + $0x6c] sm:$0xf] %v652
      %717 = vst [vmem:[#allocation8 + $0x70] sm:$0xf] %v653
      %718 = vst [vmem:[#allocation8 + $0x74] sm:$0xf] %v654
      %719 = vst [vmem:[#allocation8 + $0x78] sm:$0xf] %v655
      %720 = vst [vmem:[#allocation8 + $0x7c] sm:$0xf] %v656
    $region25: #{gcn_forward_padded.3} parent=1 // pred_fallthru
      _
    // Predicated region
    $region26: #{gcn_forward_padded.3} parent=1 // pred_check
      _
    $region27: #{gcn_forward_padded.3} parent=1 // pred_check_branch
      %722 = sbr.rel (0) target = $region29
    $region28: #{gcn_forward_padded.3} parent=1 // pred_region
      %s724 = ssub.s32 2048, 2048
      %725 = vsyncadd [#allocation5], %s724
      %s726 = sshll.u32 [#allocation8], 4
      %s727 = int_to_ptr.vmem [resolvable:$true] %s726
      %732 = dma.vmem_to_hbm [thread:$0]  %s727, 2048, %s2, [#allocation5], 64, 64, 4
    $region29: #{gcn_forward_padded.3} parent=1 // pred_fallthru
      _
    // Predicated region
    $region30: #{gcn_forward_padded.3} parent=1 // pred_check
      _
    $region31: #{gcn_forward_padded.3} parent=1 // pred_check_branch
      %734 = sbr.rel (0) target = $region33
    $region32: #{gcn_forward_padded.3} parent=1 // pred_region
      %735 = dma.done [#allocation5], 2048
    $region33: #{gcn_forward_padded.3} parent=1 // pred_fallthru
      _
    %736 = vsyncpa [#allocation4], 1
    %737 = vsyncpa [#allocation7], 1
    %738 = vsyncpa [#allocation5], 1

// kernel: gcn_forward_padded.4
$region0: #{gcn_forward_padded.4}
  #allocation0 [shape = 'u32[]', space=smem, size = 0x4, offset = 0x4, fixed_abs, tag = 'smem constant byte address 0x4 - core index']
  #allocation1 [shape = 'u32[144,128]{1,0:T(1,128)}', space=vmem, size = 0x12000, scoped, tag = 'internal scratch']
  #allocation2 [shape = 'f32[256,128]{1,0:T(8,128)}', space=vmem, size = 0x20000, scoped, tag = 'scratch operand']
  %s0 = inlined_call_operand.hbm [shape: bf16[256,256], index: 0, kind: input, shape index: {}]
  %s1 = inlined_call_operand.hbm [shape: bf16[256,128], index: 1, kind: input, shape index: {}]
  %s2 = inlined_call_operand.hbm [shape: f32[1,128], index: 2, kind: input, shape index: {}]
  %s3 = inlined_call_operand.hbm [shape: bf16[128,128], index: 3, kind: input, shape index: {}]
  %s4 = inlined_call_operand.hbm [shape: bf16[256,128], index: 4, kind: output, shape index: {}]
  %s5 = sld [smem:[#allocation0]]
  $region50: #{gcn_forward_padded.4} parent=0
    _
  %s7 = ssub.s32 1, %s5
  %s8 = scalar_select 0, %s7, %s5
  $region1: #{gcn_forward_padded.4} parent=0
    #allocation3 [shape = 'u8[131072]{0}', space=vmem, size = 0x20000, scoped, tag = 'input window, operand 0, single buffered']
    #allocation4 [shape = 's32[1]{0}', space=sflag, size = 0x4, scoped, tag = 'scoped memory for gcn_forward_padded.4']
    #allocation5 [shape = 's32[1]{0}', space=sflag, size = 0x4, scoped, tag = 'scoped memory for gcn_forward_padded.4']
    #allocation6 [shape = 'u8[65536]{0}', space=vmem, size = 0x10000, scoped, tag = 'input window, operand 1, single buffered']
    #allocation7 [shape = 's32[1]{0}', space=sflag, size = 0x4, scoped, tag = 'scoped memory for gcn_forward_padded.4']
    #allocation8 [shape = 'u8[512]{0}', space=vmem, size = 0x400, scoped, tag = 'input window, operand 2, single buffered']
    #allocation9 [shape = 'u8[32768]{0}', space=vmem, size = 0x8000, scoped, tag = 'input window, operand 3, single buffered']
    #allocation10 [shape = 's32[1]{0}', space=sflag, size = 0x4, scoped, tag = 'scoped memory for gcn_forward_padded.4']
    #allocation11 [shape = 'u8[65536]{0}', space=vmem, size = 0x10000, scoped, tag = 'output window, operand 0, single buffered']
    %9 = vsyncpa [#allocation4], 0
    %10 = vsyncpa [#allocation7], 0
    %11 = vsyncpa [#allocation10], 0
    %12 = vsyncpa [#allocation5], 0
    // Predicated region
    $region2: #{gcn_forward_padded.4} parent=1 // pred_check
      _
    $region3: #{gcn_forward_padded.4} parent=1 // pred_check_branch
      %14 = sbr.rel (0) target = $region5
    $region4: #{gcn_forward_padded.4} parent=1 // pred_region
      %s16 = ssub.s32 4096, 4096
      %17 = vsyncadd [#allocation4], %s16
      %s18 = sshll.u32 [#allocation3], 4
      %s19 = int_to_ptr.vmem [resolvable:$true] %s18
      %24 = dma.hbm_to_vmem [thread:$0]  %s0, 4096, %s19, [#allocation4], 128, 128, 8
    $region5: #{gcn_forward_padded.4} parent=1 // pred_fallthru
      _
    // Predicated region
    $region6: #{gcn_forward_padded.4} parent=1 // pred_check
      _
    $region7: #{gcn_forward_padded.4} parent=1 // pred_check_branch
      %26 = sbr.rel (0) target = $region9
    $region8: #{gcn_forward_padded.4} parent=1 // pred_region
      %s28 = ssub.s32 2048, 2048
      %29 = vsyncadd [#allocation7], %s28
      %s30 = sshll.u32 [#allocation6], 4
      %s31 = int_to_ptr.vmem [resolvable:$true] %s30
      %36 = dma.hbm_to_vmem [thread:$0]  %s1, 2048, %s31, [#allocation7], 64, 64, 4
    $region9: #{gcn_forward_padded.4} parent=1 // pred_fallthru
      _
    // Predicated region
    $region10: #{gcn_forward_padded.4} parent=1 // pred_check
      _
    $region11: #{gcn_forward_padded.4} parent=1 // pred_check_branch
      %38 = sbr.rel (0) target = $region13
    $region12: #{gcn_forward_padded.4} parent=1 // pred_region
      %s40 = ssub.s32 16, 16
      %41 = vsyncadd [#allocation7], %s40
      %s43 = sshll.u32 [#allocation8], 4
      %s44 = int_to_ptr.vmem [resolvable:$true] %s43
      %46 = dma.hbm_to_vmem [thread:$0]  %s2, 16, %s44, [#allocation7]
    $region13: #{gcn_forward_padded.4} parent=1 // pred_fallthru
      _
    // Predicated region
    $region14: #{gcn_forward_padded.4} parent=1 // pred_check
      _
    $region15: #{gcn_forward_padded.4} parent=1 // pred_check_branch
      %48 = sbr.rel (0) target = $region17
    $region16: #{gcn_forward_padded.4} parent=1 // pred_region
      %s50 = ssub.s32 1024, 1024
      %51 = vsyncadd [#allocation10], %s50
      %s52 = sshll.u32 [#allocation9], 4
      %s53 = int_to_ptr.vmem [resolvable:$true] %s52
      %58 = dma.hbm_to_vmem [thread:$0]  %s3, 1024, %s53, [#allocation10], 64, 64, 4
    $region17: #{gcn_forward_padded.4} parent=1 // pred_fallthru
      _
    // Predicated region
    $region18: #{gcn_forward_padded.4} parent=1 // pred_check
      _
    $region19: #{gcn_forward_padded.4} parent=1 // pred_check_branch
      %60 = sbr.rel (0) target = $region21
    $region20: #{gcn_forward_padded.4} parent=1 // pred_region
      %61 = dma.done [#allocation4], 4096
    $region21: #{gcn_forward_padded.4} parent=1 // pred_fallthru
      _
    // Predicated region
    $region22: #{gcn_forward_padded.4} parent=1 // pred_check
      _
    $region23: #{gcn_forward_padded.4} parent=1 // pred_check_branch
      %63 = sbr.rel (0) target = $region25
    $region24: #{gcn_forward_padded.4} parent=1 // pred_region
      %64 = dma.done [#allocation7], 2048
    $region25: #{gcn_forward_padded.4} parent=1 // pred_fallthru
      _
    // Predicated region
    $region26: #{gcn_forward_padded.4} parent=1 // pred_check
      _
    $region27: #{gcn_forward_padded.4} parent=1 // pred_check_branch
      %66 = sbr.rel (0) target = $region29
    $region28: #{gcn_forward_padded.4} parent=1 // pred_region
      %67 = dma.done [#allocation7], 16
    $region29: #{gcn_forward_padded.4} parent=1 // pred_fallthru
      _
    // Predicated region
    $region30: #{gcn_forward_padded.4} parent=1 // pred_check
      _
    $region31: #{gcn_forward_padded.4} parent=1 // pred_check_branch
      %69 = sbr.rel (0) target = $region33
    $region32: #{gcn_forward_padded.4} parent=1 // pred_region
      %70 = dma.done [#allocation10], 1024
    $region33: #{gcn_forward_padded.4} parent=1 // pred_fallthru
      _
    %p72 = scmp.eq.s32.totalorder 0, 0
    // Predicated region
    $region34: #{gcn_forward_padded.4} parent=1 // pred_check
      %p73 = pneg %p72
    $region35: #{gcn_forward_padded.4} parent=1 // pred_check_branch
      %75 = sbr.rel (%p73) target = $region37
    $region36: #{gcn_forward_padded.4} parent=1 // pred_region
      %76 = vst [vmem:[#allocation2] sm:$0xff] 0.0
      %77 = vst [vmem:[#allocation2 + $0x8] sm:$0xff] 0.0
      %78 = vst [vmem:[#allocation2 + $0x10] sm:$0xff] 0.0
      %79 = vst [vmem:[#allocation2 + $0x18] sm:$0xff] 0.0
      %80 = vst [vmem:[#allocation2 + $0x20] sm:$0xff] 0.0
      %81 = vst [vmem:[#allocation2 + $0x28] sm:$0xff] 0.0
      %82 = vst [vmem:[#allocation2 + $0x30] sm:$0xff] 0.0
      %83 = vst [vmem:[#allocation2 + $0x38] sm:$0xff] 0.0
      %84 = vst [vmem:[#allocation2 + $0x40] sm:$0xff] 0.0
      %85 = vst [vmem:[#allocation2 + $0x48] sm:$0xff] 0.0
      %86 = vst [vmem:[#allocation2 + $0x50] sm:$0xff] 0.0
      %87 = vst [vmem:[#allocation2 + $0x58] sm:$0xff] 0.0
      %88 = vst [vmem:[#allocation2 + $0x60] sm:$0xff] 0.0
      %89 = vst [vmem:[#allocation2 + $0x68] sm:$0xff] 0.0
      %90 = vst [vmem:[#allocation2 + $0x70] sm:$0xff] 0.0
      %91 = vst [vmem:[#allocation2 + $0x78] sm:$0xff] 0.0
      %92 = vst [vmem:[#allocation2 + $0x80] sm:$0xff] 0.0
      %93 = vst [vmem:[#allocation2 + $0x88] sm:$0xff] 0.0
      %94 = vst [vmem:[#allocation2 + $0x90] sm:$0xff] 0.0
      %95 = vst [vmem:[#allocation2 + $0x98] sm:$0xff] 0.0
      %96 = vst [vmem:[#allocation2 + $0xa0] sm:$0xff] 0.0
      %97 = vst [vmem:[#allocation2 + $0xa8] sm:$0xff] 0.0
      %98 = vst [vmem:[#allocation2 + $0xb0] sm:$0xff] 0.0
      %99 = vst [vmem:[#allocation2 + $0xb8] sm:$0xff] 0.0
      %100 = vst [vmem:[#allocation2 + $0xc0] sm:$0xff] 0.0
      %101 = vst [vmem:[#allocation2 + $0xc8] sm:$0xff] 0.0
      %102 = vst [vmem:[#allocation2 + $0xd0] sm:$0xff] 0.0
      %103 = vst [vmem:[#allocation2 + $0xd8] sm:$0xff] 0.0
      %104 = vst [vmem:[#allocation2 + $0xe0] sm:$0xff] 0.0
      %105 = vst [vmem:[#allocation2 + $0xe8] sm:$0xff] 0.0
      %106 = vst [vmem:[#allocation2 + $0xf0] sm:$0xff] 0.0
      %107 = vst [vmem:[#allocation2 + $0xf8] sm:$0xff] 0.0
    $region37: #{gcn_forward_padded.4} parent=1 // pred_fallthru
      _
    %s108 = smul.u32 0, 256
    %s109 = sshra.s32 %s108, 3
    %s110 = sand.u32 %s108, 7
    %s111 = smul.addr %s109, 4
    %s112 = scalar_lea.vmem [#allocation6], %s111
    %v113 = vld [vmem:[%s112] sm:$0xf]
    %v114 = vld [vmem:[%s112 + $0x4] sm:$0xf]
    %v115 = vld [vmem:[%s112 + $0x8] sm:$0xf]
    %v116 = vld [vmem:[%s112 + $0xc] sm:$0xf]
    %v117 = vld [vmem:[%s112 + $0x10] sm:$0xf]
    %v118 = vld [vmem:[%s112 + $0x14] sm:$0xf]
    %v119 = vld [vmem:[%s112 + $0x18] sm:$0xf]
    %v120 = vld [vmem:[%s112 + $0x1c] sm:$0xf]
    %v121 = vld [vmem:[%s112 + $0x20] sm:$0xf]
    %v122 = vld [vmem:[%s112 + $0x24] sm:$0xf]
    %v123 = vld [vmem:[%s112 + $0x28] sm:$0xf]
    %v124 = vld [vmem:[%s112 + $0x2c] sm:$0xf]
    %v125 = vld [vmem:[%s112 + $0x30] sm:$0xf]
    %v126 = vld [vmem:[%s112 + $0x34] sm:$0xf]
    %v127 = vld [vmem:[%s112 + $0x38] sm:$0xf]
    %v128 = vld [vmem:[%s112 + $0x3c] sm:$0xf]
    %v129 = vld [vmem:[%s112 + $0x40] sm:$0xf]
    %v130 = vld [vmem:[%s112 + $0x44] sm:$0xf]
    %v131 = vld [vmem:[%s112 + $0x48] sm:$0xf]
    %v132 = vld [vmem:[%s112 + $0x4c] sm:$0xf]
    %v133 = vld [vmem:[%s112 + $0x50] sm:$0xf]
    %v134 = vld [vmem:[%s112 + $0x54] sm:$0xf]
    %v135 = vld [vmem:[%s112 + $0x58] sm:$0xf]
    %v136 = vld [vmem:[%s112 + $0x5c] sm:$0xf]
    %v137 = vld [vmem:[%s112 + $0x60] sm:$0xf]
    %v138 = vld [vmem:[%s112 + $0x64] sm:$0xf]
    %v139 = vld [vmem:[%s112 + $0x68] sm:$0xf]
    %v140 = vld [vmem:[%s112 + $0x6c] sm:$0xf]
    %v141 = vld [vmem:[%s112 + $0x70] sm:$0xf]
    %v142 = vld [vmem:[%s112 + $0x74] sm:$0xf]
    %v143 = vld [vmem:[%s112 + $0x78] sm:$0xf]
    %v144 = vld [vmem:[%s112 + $0x7c] sm:$0xf]
    %v145 = vld [vmem:[#allocation2] sm:$0xff]
    %v146 = vld [vmem:[#allocation2 + $0x8] sm:$0xff]
    %v147 = vld [vmem:[#allocation2 + $0x10] sm:$0xff]
    %v148 = vld [vmem:[#allocation2 + $0x18] sm:$0xff]
    %v149 = vld [vmem:[#allocation2 + $0x20] sm:$0xff]
    %v150 = vld [vmem:[#allocation2 + $0x28] sm:$0xff]
    %v151 = vld [vmem:[#allocation2 + $0x30] sm:$0xff]
    %v152 = vld [vmem:[#allocation2 + $0x38] sm:$0xff]
    %v153 = vld [vmem:[#allocation2 + $0x40] sm:$0xff]
    %v154 = vld [vmem:[#allocation2 + $0x48] sm:$0xff]
    %v155 = vld [vmem:[#allocation2 + $0x50] sm:$0xff]
    %v156 = vld [vmem:[#allocation2 + $0x58] sm:$0xff]
    %v157 = vld [vmem:[#allocation2 + $0x60] sm:$0xff]
    %v158 = vld [vmem:[#allocation2 + $0x68] sm:$0xff]
    %v159 = vld [vmem:[#allocation2 + $0x70] sm:$0xff]
    %v160 = vld [vmem:[#allocation2 + $0x78] sm:$0xff]
    %v161 = vld [vmem:[#allocation2 + $0x80] sm:$0xff]
    %v162 = vld [vmem:[#allocation2 + $0x88] sm:$0xff]
    %v163 = vld [vmem:[#allocation2 + $0x90] sm:$0xff]
    %v164 = vld [vmem:[#allocation2 + $0x98] sm:$0xff]
    %v165 = vld [vmem:[#allocation2 + $0xa0] sm:$0xff]
    %v166 = vld [vmem:[#allocation2 + $0xa8] sm:$0xff]
    %v167 = vld [vmem:[#allocation2 + $0xb0] sm:$0xff]
    %v168 = vld [vmem:[#allocation2 + $0xb8] sm:$0xff]
    %v169 = vld [vmem:[#allocation2 + $0xc0] sm:$0xff]
    %v170 = vld [vmem:[#allocation2 + $0xc8] sm:$0xff]
    %v171 = vld [vmem:[#allocation2 + $0xd0] sm:$0xff]
    %v172 = vld [vmem:[#allocation2 + $0xd8] sm:$0xff]
    %v173 = vld [vmem:[#allocation2 + $0xe0] sm:$0xff]
    %v174 = vld [vmem:[#allocation2 + $0xe8] sm:$0xff]
    %v175 = vld [vmem:[#allocation2 + $0xf0] sm:$0xff]
    %v176 = vld [vmem:[#allocation2 + $0xf8] sm:$0xff]
    %v177 = vld [vmem:[#allocation3] sm:$0xff]
    %v178 = vld [vmem:[#allocation3 + $0x8] sm:$0xff]
    %v179 = vld [vmem:[#allocation3 + $0x10] sm:$0xff]
    %v180 = vld [vmem:[#allocation3 + $0x18] sm:$0xff]
    %v181 = vld [vmem:[#allocation3 + $0x20] sm:$0xff]
    %v182 = vld [vmem:[#allocation3 + $0x28] sm:$0xff]
    %v183 = vld [vmem:[#allocation3 + $0x30] sm:$0xff]
    %v184 = vld [vmem:[#allocation3 + $0x38] sm:$0xff]
    %v185 = vld [vmem:[#allocation3 + $0x40] sm:$0xff]
    %v186 = vld [vmem:[#allocation3 + $0x48] sm:$0xff]
    %v187 = vld [vmem:[#allocation3 + $0x50] sm:$0xff]
    %v188 = vld [vmem:[#allocation3 + $0x58] sm:$0xff]
    %v189 = vld [vmem:[#allocation3 + $0x60] sm:$0xff]
    %v190 = vld [vmem:[#allocation3 + $0x68] sm:$0xff]
    %v191 = vld [vmem:[#allocation3 + $0x70] sm:$0xff]
    %v192 = vld [vmem:[#allocation3 + $0x78] sm:$0xff]
    %v193 = vld [vmem:[#allocation3 + $0x80] sm:$0xff]
    %v194 = vld [vmem:[#allocation3 + $0x88] sm:$0xff]
    %v195 = vld [vmem:[#allocation3 + $0x90] sm:$0xff]
    %v196 = vld [vmem:[#allocation3 + $0x98] sm:$0xff]
    %v197 = vld [vmem:[#allocation3 + $0xa0] sm:$0xff]
    %v198 = vld [vmem:[#allocation3 + $0xa8] sm:$0xff]
    %v199 = vld [vmem:[#allocation3 + $0xb0] sm:$0xff]
    %v200 = vld [vmem:[#allocation3 + $0xb8] sm:$0xff]
    %v201 = vld [vmem:[#allocation3 + $0xc0] sm:$0xff]
    %v202 = vld [vmem:[#allocation3 + $0xc8] sm:$0xff]
    %v203 = vld [vmem:[#allocation3 + $0xd0] sm:$0xff]
    %v204 = vld [vmem:[#allocation3 + $0xd8] sm:$0xff]
    %v205 = vld [vmem:[#allocation3 + $0xe0] sm:$0xff]
    %v206 = vld [vmem:[#allocation3 + $0xe8] sm:$0xff]
    %v207 = vld [vmem:[#allocation3 + $0xf0] sm:$0xff]
    %v208 = vld [vmem:[#allocation3 + $0xf8] sm:$0xff]
    %v241 = vunpack.c.l.b16 %v177
    %v242 = vunpack.c.h.b16 %v177
    %v243 = vunpack.c.l.b16 %v178
    %v244 = vunpack.c.h.b16 %v178
    %v245 = vunpack.c.l.b16 %v179
    %v246 = vunpack.c.h.b16 %v179
    %v247 = vunpack.c.l.b16 %v180
    %v248 = vunpack.c.h.b16 %v180
    %v249 = vunpack.c.l.b16 %v181
    %v250 = vunpack.c.h.b16 %v181
    %v251 = vunpack.c.l.b16 %v182
    %v252 = vunpack.c.h.b16 %v182
    %v253 = vunpack.c.l.b16 %v183
    %v254 = vunpack.c.h.b16 %v183
    %v255 = vunpack.c.l.b16 %v184
    %v256 = vunpack.c.h.b16 %v184
    %v257 = vunpack.c.l.b16 %v185
    %v258 = vunpack.c.h.b16 %v185
    %v259 = vunpack.c.l.b16 %v186
    %v260 = vunpack.c.h.b16 %v186
    %v261 = vunpack.c.l.b16 %v187
    %v262 = vunpack.c.h.b16 %v187
    %v263 = vunpack.c.l.b16 %v188
    %v264 = vunpack.c.h.b16 %v188
    %v265 = vunpack.c.l.b16 %v189
    %v266 = vunpack.c.h.b16 %v189
    %v267 = vunpack.c.l.b16 %v190
    %v268 = vunpack.c.h.b16 %v190
    %v269 = vunpack.c.l.b16 %v191
    %v270 = vunpack.c.h.b16 %v191
    %v271 = vunpack.c.l.b16 %v192
    %v272 = vunpack.c.h.b16 %v192
    %v273 = vunpack.c.l.b16 %v193
    %v274 = vunpack.c.h.b16 %v193
    %v275 = vunpack.c.l.b16 %v194
    %v276 = vunpack.c.h.b16 %v194
    %v277 = vunpack.c.l.b16 %v195
    %v278 = vunpack.c.h.b16 %v195
    %v279 = vunpack.c.l.b16 %v196
    %v280 = vunpack.c.h.b16 %v196
    %v281 = vunpack.c.l.b16 %v197
    %v282 = vunpack.c.h.b16 %v197
    %v283 = vunpack.c.l.b16 %v198
    %v284 = vunpack.c.h.b16 %v198
    %v285 = vunpack.c.l.b16 %v199
    %v286 = vunpack.c.h.b16 %v199
    %v287 = vunpack.c.l.b16 %v200
    %v288 = vunpack.c.h.b16 %v200
    %v289 = vunpack.c.l.b16 %v201
    %v290 = vunpack.c.h.b16 %v201
    %v291 = vunpack.c.l.b16 %v202
    %v292 = vunpack.c.h.b16 %v202
    %v293 = vunpack.c.l.b16 %v203
    %v294 = vunpack.c.h.b16 %v203
    %v295 = vunpack.c.l.b16 %v204
    %v296 = vunpack.c.h.b16 %v204
    %v297 = vunpack.c.l.b16 %v205
    %v298 = vunpack.c.h.b16 %v205
    %v299 = vunpack.c.l.b16 %v206
    %v300 = vunpack.c.h.b16 %v206
    %v301 = vunpack.c.l.b16 %v207
    %v302 = vunpack.c.h.b16 %v207
    %v303 = vunpack.c.l.b16 %v208
    %v304 = vunpack.c.h.b16 %v208
    %v305 = vpack.c.b16 %v243, %v241
    %v306 = vpack.c.b16 %v244, %v242
    %v307 = vpack.c.b16 %v247, %v245
    %v308 = vpack.c.b16 %v248, %v246
    %v309 = vpack.c.b16 %v251, %v249
    %v310 = vpack.c.b16 %v252, %v250
    %v311 = vpack.c.b16 %v255, %v253
    %v312 = vpack.c.b16 %v256, %v254
    %v313 = vpack.c.b16 %v259, %v257
    %v314 = vpack.c.b16 %v260, %v258
    %v315 = vpack.c.b16 %v263, %v261
    %v316 = vpack.c.b16 %v264, %v262
    %v317 = vpack.c.b16 %v267, %v265
    %v318 = vpack.c.b16 %v268, %v266
    %v319 = vpack.c.b16 %v271, %v269
    %v320 = vpack.c.b16 %v272, %v270
    %v321 = vpack.c.b16 %v275, %v273
    %v322 = vpack.c.b16 %v276, %v274
    %v323 = vpack.c.b16 %v279, %v277
    %v324 = vpack.c.b16 %v280, %v278
    %v325 = vpack.c.b16 %v283, %v281
    %v326 = vpack.c.b16 %v284, %v282
    %v327 = vpack.c.b16 %v287, %v285
    %v328 = vpack.c.b16 %v288, %v286
    %v329 = vpack.c.b16 %v291, %v289
    %v330 = vpack.c.b16 %v292, %v290
    %v331 = vpack.c.b16 %v295, %v293
    %v332 = vpack.c.b16 %v296, %v294
    %v333 = vpack.c.b16 %v299, %v297
    %v334 = vpack.c.b16 %v300, %v298
    %v335 = vpack.c.b16 %v303, %v301
    %v336 = vpack.c.b16 %v304, %v302
    %v401 = vunpack.c.l.b16 %v113
    %v402 = vunpack.c.l.b16 %v114
    %v403 = vunpack.c.l.b16 %v115
    %v404 = vunpack.c.l.b16 %v116
    %v405 = vunpack.c.l.b16 %v117
    %v406 = vunpack.c.l.b16 %v118
    %v407 = vunpack.c.l.b16 %v119
    %v408 = vunpack.c.l.b16 %v120
    %v409 = vunpack.c.l.b16 %v121
    %v410 = vunpack.c.l.b16 %v122
    %v411 = vunpack.c.l.b16 %v123
    %v412 = vunpack.c.l.b16 %v124
    %v413 = vunpack.c.l.b16 %v125
    %v414 = vunpack.c.l.b16 %v126
    %v415 = vunpack.c.l.b16 %v127
    %v416 = vunpack.c.l.b16 %v128
    %v417 = vunpack.c.l.b16 %v129
    %v418 = vunpack.c.l.b16 %v130
    %v419 = vunpack.c.l.b16 %v131
    %v420 = vunpack.c.l.b16 %v132
    %v421 = vunpack.c.l.b16 %v133
    %v422 = vunpack.c.l.b16 %v134
    %v423 = vunpack.c.l.b16 %v135
    %v424 = vunpack.c.l.b16 %v136
    %v425 = vunpack.c.l.b16 %v137
    %v426 = vunpack.c.l.b16 %v138
    %v427 = vunpack.c.l.b16 %v139
    %v428 = vunpack.c.l.b16 %v140
    %v429 = vunpack.c.l.b16 %v141
    %v430 = vunpack.c.l.b16 %v142
    %v431 = vunpack.c.l.b16 %v143
    %v432 = vunpack.c.l.b16 %v144
    %v433 = vpack.c.b16 %v402, %v401
    %v434 = vpack.c.b16 %v404, %v403
    %v435 = vpack.c.b16 %v406, %v405
    %v436 = vpack.c.b16 %v408, %v407
    %v437 = vpack.c.b16 %v410, %v409
    %v438 = vpack.c.b16 %v412, %v411
    %v439 = vpack.c.b16 %v414, %v413
    %v440 = vpack.c.b16 %v416, %v415
    %v441 = vpack.c.b16 %v418, %v417
    %v442 = vpack.c.b16 %v420, %v419
    %v443 = vpack.c.b16 %v422, %v421
    %v444 = vpack.c.b16 %v424, %v423
    %v445 = vpack.c.b16 %v426, %v425
    %v446 = vpack.c.b16 %v428, %v427
    %v447 = vpack.c.b16 %v430, %v429
    %v448 = vpack.c.b16 %v432, %v431
    %465 = vmatprep.subr.bf16.mxu0 0
    %466 = vmatpush1.bf16.msra.mxu0 %v433
    %467 = vmatprep.subr.bf16.mxu0 0
    %468 = vmatpush1.bf16.msra.mxu0 %v434
    %469 = vmatprep.subr.bf16.mxu0 0
    %470 = vmatpush1.bf16.msra.mxu0 %v435
    %471 = vmatprep.subr.bf16.mxu0 0
    %472 = vmatpush1.bf16.msra.mxu0 %v436
    %473 = vmatprep.subr.bf16.mxu0 0
    %474 = vmatpush1.bf16.msra.mxu0 %v437
    %475 = vmatprep.subr.bf16.mxu0 0
    %476 = vmatpush1.bf16.msra.mxu0 %v438
    %477 = vmatprep.subr.bf16.mxu0 0
    %478 = vmatpush1.bf16.msra.mxu0 %v439
    %479 = vmatprep.subr.bf16.mxu0 0
    %480 = vmatpush1.bf16.msra.mxu0 %v440
    %481 = vmatprep.subr.bf16.mxu0 0
    %482 = vmatpush1.bf16.msra.mxu0 %v441
    %483 = vmatprep.subr.bf16.mxu0 0
    %484 = vmatpush1.bf16.msra.mxu0 %v442
    %485 = vmatprep.subr.bf16.mxu0 0
    %486 = vmatpush1.bf16.msra.mxu0 %v443
    %487 = vmatprep.subr.bf16.mxu0 0
    %488 = vmatpush1.bf16.msra.mxu0 %v444
    %489 = vmatprep.subr.bf16.mxu0 0
    %490 = vmatpush1.bf16.msra.mxu0 %v445
    %491 = vmatprep.subr.bf16.mxu0 0
    %492 = vmatpush1.bf16.msra.mxu0 %v446
    %493 = vmatprep.subr.bf16.mxu0 0
    %494 = vmatpush1.bf16.msra.mxu0 %v447
    %495 = vmatprep.subr.bf16.mxu0 0
    %496 = vmatpush1.bf16.msra.mxu0 %v448
    %497 = vmatprep.mubr.bf16.mxu0 %v306
    %498 = vmatmul.mubr.bf16.gmra.mrb[0].mxu0 %v305
    %v499 = vpop.f32.mrb[0].mxu0
    %v500 = vadd.f32 0.0, %v499
    %v501 = vpop.f32.mrb[0].mxu0
    %v502 = vpop.f32.mrb[0].mxu0
    %v503 = vadd.f32 0.0, %v502
    %v504 = vpop.f32.mrb[0].mxu0
    %505 = vmatprep.mubr.bf16.mxu0 %v308
    %506 = vmatmul.mubr.bf16.gmra.mrb[0].mxu0 %v307
    %v507 = vpop.f32.mrb[0].mxu0
    %v508 = vadd.f32 0.0, %v507
    %v509 = vpop.f32.mrb[0].mxu0
    %v510 = vpop.f32.mrb[0].mxu0
    %v511 = vadd.f32 0.0, %v510
    %v512 = vpop.f32.mrb[0].mxu0
    %513 = vmatprep.mubr.bf16.mxu0 %v310
    %514 = vmatmul.mubr.bf16.gmra.mrb[0].mxu0 %v309
    %v515 = vpop.f32.mrb[0].mxu0
    %v516 = vadd.f32 0.0, %v515
    %v517 = vpop.f32.mrb[0].mxu0
    %v518 = vpop.f32.mrb[0].mxu0
    %v519 = vadd.f32 0.0, %v518
    %v520 = vpop.f32.mrb[0].mxu0
    %521 = vmatprep.mubr.bf16.mxu0 %v312
    %522 = vmatmul.mubr.bf16.gmra.mrb[0].mxu0 %v311
    %v523 = vpop.f32.mrb[0].mxu0
    %v524 = vadd.f32 0.0, %v523
    %v525 = vpop.f32.mrb[0].mxu0
    %v526 = vpop.f32.mrb[0].mxu0
    %v527 = vadd.f32 0.0, %v526
    %v528 = vpop.f32.mrb[0].mxu0
    %529 = vmatprep.mubr.bf16.mxu0 %v314
    %530 = vmatmul.mubr.bf16.gmra.mrb[0].mxu0 %v313
    %v531 = vpop.f32.mrb[0].mxu0
    %v532 = vadd.f32 0.0, %v531
    %v533 = vpop.f32.mrb[0].mxu0
    %v534 = vpop.f32.mrb[0].mxu0
    %v535 = vadd.f32 0.0, %v534
    %v536 = vpop.f32.mrb[0].mxu0
    %537 = vmatprep.mubr.bf16.mxu0 %v316
    %538 = vmatmul.mubr.bf16.gmra.mrb[0].mxu0 %v315
    %v539 = vpop.f32.mrb[0].mxu0
    %v540 = vadd.f32 0.0, %v539
    %v541 = vpop.f32.mrb[0].mxu0
    %v542 = vpop.f32.mrb[0].mxu0
    %v543 = vadd.f32 0.0, %v542
    %v544 = vpop.f32.mrb[0].mxu0
    %545 = vmatprep.mubr.bf16.mxu0 %v318
    %546 = vmatmul.mubr.bf16.gmra.mrb[0].mxu0 %v317
    %v547 = vpop.f32.mrb[0].mxu0
    %v548 = vadd.f32 0.0, %v547
    %v549 = vpop.f32.mrb[0].mxu0
    %v550 = vpop.f32.mrb[0].mxu0
    %v551 = vadd.f32 0.0, %v550
    %v552 = vpop.f32.mrb[0].mxu0
    %553 = vmatprep.mubr.bf16.mxu0 %v320
    %554 = vmatmul.mubr.bf16.gmra.mrb[0].mxu0 %v319
    %v555 = vpop.f32.mrb[0].mxu0
    %v556 = vadd.f32 0.0, %v555
    %v557 = vpop.f32.mrb[0].mxu0
    %v558 = vpop.f32.mrb[0].mxu0
    %v559 = vadd.f32 0.0, %v558
    %v560 = vpop.f32.mrb[0].mxu0
    %561 = vmatprep.mubr.bf16.mxu0 %v322
    %562 = vmatmul.mubr.bf16.gmra.mrb[0].mxu0 %v321
    %v563 = vpop.f32.mrb[0].mxu0
    %v564 = vadd.f32 0.0, %v563
    %v565 = vpop.f32.mrb[0].mxu0
    %v566 = vpop.f32.mrb[0].mxu0
    %v567 = vadd.f32 0.0, %v566
    %v568 = vpop.f32.mrb[0].mxu0
    %569 = vmatprep.mubr.bf16.mxu0 %v324
    %570 = vmatmul.mubr.bf16.gmra.mrb[0].mxu0 %v323
    %v571 = vpop.f32.mrb[0].mxu0
    %v572 = vadd.f32 0.0, %v571
    %v573 = vpop.f32.mrb[0].mxu0
    %v574 = vpop.f32.mrb[0].mxu0
    %v575 = vadd.f32 0.0, %v574
    %v576 = vpop.f32.mrb[0].mxu0
    %577 = vmatprep.mubr.bf16.mxu0 %v326
    %578 = vmatmul.mubr.bf16.gmra.mrb[0].mxu0 %v325
    %v579 = vpop.f32.mrb[0].mxu0
    %v580 = vadd.f32 0.0, %v579
    %v581 = vpop.f32.mrb[0].mxu0
    %v582 = vpop.f32.mrb[0].mxu0
    %v583 = vadd.f32 0.0, %v582
    %v584 = vpop.f32.mrb[0].mxu0
    %585 = vmatprep.mubr.bf16.mxu0 %v328
    %586 = vmatmul.mubr.bf16.gmra.mrb[0].mxu0 %v327
    %v587 = vpop.f32.mrb[0].mxu0
    %v588 = vadd.f32 0.0, %v587
    %v589 = vpop.f32.mrb[0].mxu0
    %v590 = vpop.f32.mrb[0].mxu0
    %v591 = vadd.f32 0.0, %v590
    %v592 = vpop.f32.mrb[0].mxu0
    %593 = vmatprep.mubr.bf16.mxu0 %v330
    %594 = vmatmul.mubr.bf16.gmra.mrb[0].mxu0 %v329
    %v595 = vpop.f32.mrb[0].mxu0
    %v596 = vadd.f32 0.0, %v595
    %v597 = vpop.f32.mrb[0].mxu0
    %v598 = vpop.f32.mrb[0].mxu0
    %v599 = vadd.f32 0.0, %v598
    %v600 = vpop.f32.mrb[0].mxu0
    %601 = vmatprep.mubr.bf16.mxu0 %v332
    %602 = vmatmul.mubr.bf16.gmra.mrb[0].mxu0 %v331
    %v603 = vpop.f32.mrb[0].mxu0
    %v604 = vadd.f32 0.0, %v603
    %v605 = vpop.f32.mrb[0].mxu0
    %v606 = vpop.f32.mrb[0].mxu0
    %v607 = vadd.f32 0.0, %v606
    %v608 = vpop.f32.mrb[0].mxu0
    %609 = vmatprep.mubr.bf16.mxu0 %v334
    %610 = vmatmul.mubr.bf16.gmra.mrb[0].mxu0 %v333
    %v611 = vpop.f32.mrb[0].mxu0
    %v612 = vadd.f32 0.0, %v611
    %v613 = vpop.f32.mrb[0].mxu0
    %v614 = vpop.f32.mrb[0].mxu0
    %v615 = vadd.f32 0.0, %v614
    %v616 = vpop.f32.mrb[0].mxu0
    %617 = vmatprep.mubr.bf16.mxu0 %v336
    %618 = vmatmul.mubr.bf16.gmra.mrb[0].mxu0 %v335
    %v619 = vpop.f32.mrb[0].mxu0
    %v620 = vadd.f32 0.0, %v619
    %v621 = vpop.f32.mrb[0].mxu0
    %v622 = vpop.f32.mrb[0].mxu0
    %v623 = vadd.f32 0.0, %v622
    %v624 = vpop.f32.mrb[0].mxu0
    %625 = vdwg.mxu0
    %v626 = vadd.f32 %v145, %v500
    %v627 = vadd.f32 %v146, %v503
    %v628 = vadd.f32 %v147, %v508
    %v629 = vadd.f32 %v148, %v511
    %v630 = vadd.f32 %v149, %v516
    %v631 = vadd.f32 %v150, %v519
    %v632 = vadd.f32 %v151, %v524
    %v633 = vadd.f32 %v152, %v527
    %v634 = vadd.f32 %v153, %v532
    %v635 = vadd.f32 %v154, %v535
    %v636 = vadd.f32 %v155, %v540
    %v637 = vadd.f32 %v156, %v543
    %v638 = vadd.f32 %v157, %v548
    %v639 = vadd.f32 %v158, %v551
    %v640 = vadd.f32 %v159, %v556
    %v641 = vadd.f32 %v160, %v559
    %v642 = vadd.f32 %v161, %v564
    %v643 = vadd.f32 %v162, %v567
    %v644 = vadd.f32 %v163, %v572
    %v645 = vadd.f32 %v164, %v575
    %v646 = vadd.f32 %v165, %v580
    %v647 = vadd.f32 %v166, %v583
    %v648 = vadd.f32 %v167, %v588
    %v649 = vadd.f32 %v168, %v591
    %v650 = vadd.f32 %v169, %v596
    %v651 = vadd.f32 %v170, %v599
    %v652 = vadd.f32 %v171, %v604
    %v653 = vadd.f32 %v172, %v607
    %v654 = vadd.f32 %v173, %v612
    %v655 = vadd.f32 %v174, %v615
    %v656 = vadd.f32 %v175, %v620
    %v657 = vadd.f32 %v176, %v623
    %658 = vst [vmem:[#allocation2] sm:$0xff] %v626
    %659 = vst [vmem:[#allocation2 + $0x8] sm:$0xff] %v627
    %660 = vst [vmem:[#allocation2 + $0x10] sm:$0xff] %v628
    %661 = vst [vmem:[#allocation2 + $0x18] sm:$0xff] %v629
    %662 = vst [vmem:[#allocation2 + $0x20] sm:$0xff] %v630
    %663 = vst [vmem:[#allocation2 + $0x28] sm:$0xff] %v631
    %664 = vst [vmem:[#allocation2 + $0x30] sm:$0xff] %v632
    %665 = vst [vmem:[#allocation2 + $0x38] sm:$0xff] %v633
    %666 = vst [vmem:[#allocation2 + $0x40] sm:$0xff] %v634
    %667 = vst [vmem:[#allocation2 + $0x48] sm:$0xff] %v635
    %668 = vst [vmem:[#allocation2 + $0x50] sm:$0xff] %v636
    %669 = vst [vmem:[#allocation2 + $0x58] sm:$0xff] %v637
    %670 = vst [vmem:[#allocation2 + $0x60] sm:$0xff] %v638
    %671 = vst [vmem:[#allocation2 + $0x68] sm:$0xff] %v639
    %672 = vst [vmem:[#allocation2 + $0x70] sm:$0xff] %v640
    %673 = vst [vmem:[#allocation2 + $0x78] sm:$0xff] %v641
    %674 = vst [vmem:[#allocation2 + $0x80] sm:$0xff] %v642
    %675 = vst [vmem:[#allocation2 + $0x88] sm:$0xff] %v643
    %676 = vst [vmem:[#allocation2 + $0x90] sm:$0xff] %v644
    %677 = vst [vmem:[#allocation2 + $0x98] sm:$0xff] %v645
    %678 = vst [vmem:[#allocation2 + $0xa0] sm:$0xff] %v646
    %679 = vst [vmem:[#allocation2 + $0xa8] sm:$0xff] %v647
    %680 = vst [vmem:[#allocation2 + $0xb0] sm:$0xff] %v648
    %681 = vst [vmem:[#allocation2 + $0xb8] sm:$0xff] %v649
    %682 = vst [vmem:[#allocation2 + $0xc0] sm:$0xff] %v650
    %683 = vst [vmem:[#allocation2 + $0xc8] sm:$0xff] %v651
    %684 = vst [vmem:[#allocation2 + $0xd0] sm:$0xff] %v652
    %685 = vst [vmem:[#allocation2 + $0xd8] sm:$0xff] %v653
    %686 = vst [vmem:[#allocation2 + $0xe0] sm:$0xff] %v654
    %687 = vst [vmem:[#allocation2 + $0xe8] sm:$0xff] %v655
    %688 = vst [vmem:[#allocation2 + $0xf0] sm:$0xff] %v656
    %689 = vst [vmem:[#allocation2 + $0xf8] sm:$0xff] %v657
    // Predicated region
    $region38: #{gcn_forward_padded.4} parent=1 // pred_check
      %p690 = pneg %p72
    $region39: #{gcn_forward_padded.4} parent=1 // pred_check_branch
      %692 = sbr.rel (%p690) target = $region41
    $region40: #{gcn_forward_padded.4} parent=1 // pred_region
      %v693 = vld [vmem:[#allocation2] sm:$0xff]
      %v694 = vld [vmem:[#allocation2 + $0x8] sm:$0xff]
      %v695 = vld [vmem:[#allocation2 + $0x10] sm:$0xff]
      %v696 = vld [vmem:[#allocation2 + $0x18] sm:$0xff]
      %v697 = vld [vmem:[#allocation2 + $0x20] sm:$0xff]
      %v698 = vld [vmem:[#allocation2 + $0x28] sm:$0xff]
      %v699 = vld [vmem:[#allocation2 + $0x30] sm:$0xff]
      %v700 = vld [vmem:[#allocation2 + $0x38] sm:$0xff]
      %v701 = vld [vmem:[#allocation2 + $0x40] sm:$0xff]
      %v702 = vld [vmem:[#allocation2 + $0x48] sm:$0xff]
      %v703 = vld [vmem:[#allocation2 + $0x50] sm:$0xff]
      %v704 = vld [vmem:[#allocation2 + $0x58] sm:$0xff]
      %v705 = vld [vmem:[#allocation2 + $0x60] sm:$0xff]
      %v706 = vld [vmem:[#allocation2 + $0x68] sm:$0xff]
      %v707 = vld [vmem:[#allocation2 + $0x70] sm:$0xff]
      %v708 = vld [vmem:[#allocation2 + $0x78] sm:$0xff]
      %v709 = vld [vmem:[#allocation2 + $0x80] sm:$0xff]
      %v710 = vld [vmem:[#allocation2 + $0x88] sm:$0xff]
      %v711 = vld [vmem:[#allocation2 + $0x90] sm:$0xff]
      %v712 = vld [vmem:[#allocation2 + $0x98] sm:$0xff]
      %v713 = vld [vmem:[#allocation2 + $0xa0] sm:$0xff]
      %v714 = vld [vmem:[#allocation2 + $0xa8] sm:$0xff]
      %v715 = vld [vmem:[#allocation2 + $0xb0] sm:$0xff]
      %v716 = vld [vmem:[#allocation2 + $0xb8] sm:$0xff]
      %v717 = vld [vmem:[#allocation2 + $0xc0] sm:$0xff]
      %v718 = vld [vmem:[#allocation2 + $0xc8] sm:$0xff]
      %v719 = vld [vmem:[#allocation2 + $0xd0] sm:$0xff]
      %v720 = vld [vmem:[#allocation2 + $0xd8] sm:$0xff]
      %v721 = vld [vmem:[#allocation2 + $0xe0] sm:$0xff]
      %v722 = vld [vmem:[#allocation2 + $0xe8] sm:$0xff]
      %v723 = vld [vmem:[#allocation2 + $0xf0] sm:$0xff]
      %v724 = vld [vmem:[#allocation2 + $0xf8] sm:$0xff]
      %v725 = vld [vmem:[#allocation8] sm:$0x1]
      %v727 = vlaneseq
      %v728 = vshrl.u32 %v727, 7
      %v729 = vsub.s32 0, %v728
      %v730 = vrot.slane %v725, %v729
      %v732 = vadd.f32 %v693, %v730
      %v733 = vadd.f32 %v694, %v730
      %v734 = vadd.f32 %v695, %v730
      %v735 = vadd.f32 %v696, %v730
      %v736 = vadd.f32 %v697, %v730
      %v737 = vadd.f32 %v698, %v730
      %v738 = vadd.f32 %v699, %v730
      %v739 = vadd.f32 %v700, %v730
      %v740 = vadd.f32 %v701, %v730
      %v741 = vadd.f32 %v702, %v730
      %v742 = vadd.f32 %v703, %v730
      %v743 = vadd.f32 %v704, %v730
      %v744 = vadd.f32 %v705, %v730
      %v745 = vadd.f32 %v706, %v730
      %v746 = vadd.f32 %v707, %v730
      %v747 = vadd.f32 %v708, %v730
      %v748 = vadd.f32 %v709, %v730
      %v749 = vadd.f32 %v710, %v730
      %v750 = vadd.f32 %v711, %v730
      %v751 = vadd.f32 %v712, %v730
      %v752 = vadd.f32 %v713, %v730
      %v753 = vadd.f32 %v714, %v730
      %v754 = vadd.f32 %v715, %v730
      %v755 = vadd.f32 %v716, %v730
      %v756 = vadd.f32 %v717, %v730
      %v757 = vadd.f32 %v718, %v730
      %v758 = vadd.f32 %v719, %v730
      %v759 = vadd.f32 %v720, %v730
      %v760 = vadd.f32 %v721, %v730
      %v761 = vadd.f32 %v722, %v730
      %v762 = vadd.f32 %v723, %v730
      %v763 = vadd.f32 %v724, %v730
      %v764 = vmax.f32 %v732, 0.0
      %v765 = vmax.f32 %v733, 0.0
      %v766 = vmax.f32 %v734, 0.0
      %v767 = vmax.f32 %v735, 0.0
      %v768 = vmax.f32 %v736, 0.0
      %v769 = vmax.f32 %v737, 0.0
      %v770 = vmax.f32 %v738, 0.0
      %v771 = vmax.f32 %v739, 0.0
      %v772 = vmax.f32 %v740, 0.0
      %v773 = vmax.f32 %v741, 0.0
      %v774 = vmax.f32 %v742, 0.0
      %v775 = vmax.f32 %v743, 0.0
      %v776 = vmax.f32 %v744, 0.0
      %v777 = vmax.f32 %v745, 0.0
      %v778 = vmax.f32 %v746, 0.0
      %v779 = vmax.f32 %v747, 0.0
      %v780 = vmax.f32 %v748, 0.0
      %v781 = vmax.f32 %v749, 0.0
      %v782 = vmax.f32 %v750, 0.0
      %v783 = vmax.f32 %v751, 0.0
      %v784 = vmax.f32 %v752, 0.0
      %v785 = vmax.f32 %v753, 0.0
      %v786 = vmax.f32 %v754, 0.0
      %v787 = vmax.f32 %v755, 0.0
      %v788 = vmax.f32 %v756, 0.0
      %v789 = vmax.f32 %v757, 0.0
      %v790 = vmax.f32 %v758, 0.0
      %v791 = vmax.f32 %v759, 0.0
      %v792 = vmax.f32 %v760, 0.0
      %v793 = vmax.f32 %v761, 0.0
      %v794 = vmax.f32 %v762, 0.0
      %v795 = vmax.f32 %v763, 0.0
      %v796 = vpack.c.bf16 %v765, %v764
      %v797 = vpack.c.bf16 %v767, %v766
      %v798 = vpack.c.bf16 %v769, %v768
      %v799 = vpack.c.bf16 %v771, %v770
      %v800 = vpack.c.bf16 %v773, %v772
      %v801 = vpack.c.bf16 %v775, %v774
      %v802 = vpack.c.bf16 %v777, %v776
      %v803 = vpack.c.bf16 %v779, %v778
      %v804 = vpack.c.bf16 %v781, %v780
      %v805 = vpack.c.bf16 %v783, %v782
      %v806 = vpack.c.bf16 %v785, %v784
      %v807 = vpack.c.bf16 %v787, %v786
      %v808 = vpack.c.bf16 %v789, %v788
      %v809 = vpack.c.bf16 %v791, %v790
      %v810 = vpack.c.bf16 %v793, %v792
      %v811 = vpack.c.bf16 %v795, %v794
      %v812 = vld [vmem:[#allocation9] sm:$0xf]
      %v813 = vld [vmem:[#allocation9 + $0x4] sm:$0xf]
      %v814 = vld [vmem:[#allocation9 + $0x8] sm:$0xf]
      %v815 = vld [vmem:[#allocation9 + $0xc] sm:$0xf]
      %v816 = vld [vmem:[#allocation9 + $0x10] sm:$0xf]
      %v817 = vld [vmem:[#allocation9 + $0x14] sm:$0xf]
      %v818 = vld [vmem:[#allocation9 + $0x18] sm:$0xf]
      %v819 = vld [vmem:[#allocation9 + $0x1c] sm:$0xf]
      %v820 = vld [vmem:[#allocation9 + $0x20] sm:$0xf]
      %v821 = vld [vmem:[#allocation9 + $0x24] sm:$0xf]
      %v822 = vld [vmem:[#allocation9 + $0x28] sm:$0xf]
      %v823 = vld [vmem:[#allocation9 + $0x2c] sm:$0xf]
      %v824 = vld [vmem:[#allocation9 + $0x30] sm:$0xf]
      %v825 = vld [vmem:[#allocation9 + $0x34] sm:$0xf]
      %v826 = vld [vmem:[#allocation9 + $0x38] sm:$0xf]
      %v827 = vld [vmem:[#allocation9 + $0x3c] sm:$0xf]
      %v844 = vunpack.c.l.b16 %v812
      %v845 = vunpack.c.l.b16 %v813
      %v846 = vunpack.c.l.b16 %v814
      %v847 = vunpack.c.l.b16 %v815
      %v848 = vunpack.c.l.b16 %v816
      %v849 = vunpack.c.l.b16 %v817
      %v850 = vunpack.c.l.b16 %v818
      %v851 = vunpack.c.l.b16 %v819
      %v852 = vunpack.c.l.b16 %v820
      %v853 = vunpack.c.l.b16 %v821
      %v854 = vunpack.c.l.b16 %v822
      %v855 = vunpack.c.l.b16 %v823
      %v856 = vunpack.c.l.b16 %v824
      %v857 = vunpack.c.l.b16 %v825
      %v858 = vunpack.c.l.b16 %v826
      %v859 = vunpack.c.l.b16 %v827
      %v860 = vpack.c.b16 %v845, %v844
      %v861 = vpack.c.b16 %v847, %v846
      %v862 = vpack.c.b16 %v849, %v848
      %v863 = vpack.c.b16 %v851, %v850
      %v864 = vpack.c.b16 %v853, %v852
      %v865 = vpack.c.b16 %v855, %v854
      %v866 = vpack.c.b16 %v857, %v856
      %v867 = vpack.c.b16 %v859, %v858
      %876 = vmatprep.subr.bf16.mxu0 0
      %877 = vmatpush1.bf16.msra.mxu0 %v860
      %878 = vmatprep.subr.bf16.mxu0 0
      %879 = vmatpush1.bf16.msra.mxu0 %v861
      %880 = vmatprep.subr.bf16.mxu0 0
      %881 = vmatpush1.bf16.msra.mxu0 %v862
      %882 = vmatprep.subr.bf16.mxu0 0
      %883 = vmatpush1.bf16.msra.mxu0 %v863
      %884 = vmatprep.subr.bf16.mxu0 0
      %885 = vmatpush1.bf16.msra.mxu0 %v864
      %886 = vmatprep.subr.bf16.mxu0 0
      %887 = vmatpush1.bf16.msra.mxu0 %v865
      %888 = vmatprep.subr.bf16.mxu0 0
      %889 = vmatpush1.bf16.msra.mxu0 %v866
      %890 = vmatprep.subr.bf16.mxu0 0
      %891 = vmatpush1.bf16.msra.mxu0 %v867
      %892 = vmatprep.subr.bf16.mxu0 0
      %893 = vmatpush1.bf16.msra.mxu0 0
      %894 = vmatprep.subr.bf16.mxu0 0
      %895 = vmatpush1.bf16.msra.mxu0 0
      %896 = vmatprep.subr.bf16.mxu0 0
      %897 = vmatpush1.bf16.msra.mxu0 0
      %898 = vmatprep.subr.bf16.mxu0 0
      %899 = vmatpush1.bf16.msra.mxu0 0
      %900 = vmatprep.subr.bf16.mxu0 0
      %901 = vmatpush1.bf16.msra.mxu0 0
      %902 = vmatprep.subr.bf16.mxu0 0
      %903 = vmatpush1.bf16.msra.mxu0 0
      %904 = vmatprep.subr.bf16.mxu0 0
      %905 = vmatpush1.bf16.msra.mxu0 0
      %906 = vmatprep.subr.bf16.mxu0 0
      %907 = vmatpush1.bf16.msra.mxu0 0
      %908 = vmatprep.mubr.bf16.mxu0 0
      %909 = vmatmul.mubr.bf16.gmra.mrb[0].mxu0 %v796
      %v910 = vpop.f32.mrb[0].mxu0
      %v911 = vadd.f32 0.0, %v910
      %v912 = vpop.f32.mrb[0].mxu0
      %v913 = vpop.f32.mrb[0].mxu0
      %v914 = vadd.f32 0.0, %v913
      %v915 = vpop.f32.mrb[0].mxu0
      %916 = vmatprep.mubr.bf16.mxu0 0
      %917 = vmatmul.mubr.bf16.gmra.mrb[0].mxu0 %v797
      %v918 = vpop.f32.mrb[0].mxu0
      %v919 = vadd.f32 0.0, %v918
      %v920 = vpop.f32.mrb[0].mxu0
      %v921 = vpop.f32.mrb[0].mxu0
      %v922 = vadd.f32 0.0, %v921
      %v923 = vpop.f32.mrb[0].mxu0
      %924 = vmatprep.mubr.bf16.mxu0 0
      %925 = vmatmul.mubr.bf16.gmra.mrb[0].mxu0 %v798
      %v926 = vpop.f32.mrb[0].mxu0
      %v927 = vadd.f32 0.0, %v926
      %v928 = vpop.f32.mrb[0].mxu0
      %v929 = vpop.f32.mrb[0].mxu0
      %v930 = vadd.f32 0.0, %v929
      %v931 = vpop.f32.mrb[0].mxu0
      %932 = vmatprep.mubr.bf16.mxu0 0
      %933 = vmatmul.mubr.bf16.gmra.mrb[0].mxu0 %v799
      %v934 = vpop.f32.mrb[0].mxu0
      %v935 = vadd.f32 0.0, %v934
      %v936 = vpop.f32.mrb[0].mxu0
      %v937 = vpop.f32.mrb[0].mxu0
      %v938 = vadd.f32 0.0, %v937
      %v939 = vpop.f32.mrb[0].mxu0
      %940 = vmatprep.mubr.bf16.mxu0 0
      %941 = vmatmul.mubr.bf16.gmra.mrb[0].mxu0 %v800
      %v942 = vpop.f32.mrb[0].mxu0
      %v943 = vadd.f32 0.0, %v942
      %v944 = vpop.f32.mrb[0].mxu0
      %v945 = vpop.f32.mrb[0].mxu0
      %v946 = vadd.f32 0.0, %v945
      %v947 = vpop.f32.mrb[0].mxu0
      %948 = vmatprep.mubr.bf16.mxu0 0
      %949 = vmatmul.mubr.bf16.gmra.mrb[0].mxu0 %v801
      %v950 = vpop.f32.mrb[0].mxu0
      %v951 = vadd.f32 0.0, %v950
      %v952 = vpop.f32.mrb[0].mxu0
      %v953 = vpop.f32.mrb[0].mxu0
      %v954 = vadd.f32 0.0, %v953
      %v955 = vpop.f32.mrb[0].mxu0
      %956 = vmatprep.mubr.bf16.mxu0 0
      %957 = vmatmul.mubr.bf16.gmra.mrb[0].mxu0 %v802
      %v958 = vpop.f32.mrb[0].mxu0
      %v959 = vadd.f32 0.0, %v958
      %v960 = vpop.f32.mrb[0].mxu0
      %v961 = vpop.f32.mrb[0].mxu0
      %v962 = vadd.f32 0.0, %v961
      %v963 = vpop.f32.mrb[0].mxu0
      %964 = vmatprep.mubr.bf16.mxu0 0
      %965 = vmatmul.mubr.bf16.gmra.mrb[0].mxu0 %v803
      %v966 = vpop.f32.mrb[0].mxu0
      %v967 = vadd.f32 0.0, %v966
      %v968 = vpop.f32.mrb[0].mxu0
      %v969 = vpop.f32.mrb[0].mxu0
      %v970 = vadd.f32 0.0, %v969
      %v971 = vpop.f32.mrb[0].mxu0
      %972 = vmatprep.mubr.bf16.mxu0 0
      %973 = vmatmul.mubr.bf16.gmra.mrb[0].mxu0 %v804
      %v974 = vpop.f32.mrb[0].mxu0
      %v975 = vadd.f32 0.0, %v974
      %v976 = vpop.f32.mrb[0].mxu0
      %v977 = vpop.f32.mrb[0].mxu0
      %v978 = vadd.f32 0.0, %v977
      %v979 = vpop.f32.mrb[0].mxu0
      %980 = vmatprep.mubr.bf16.mxu0 0
      %981 = vmatmul.mubr.bf16.gmra.mrb[0].mxu0 %v805
      %v982 = vpop.f32.mrb[0].mxu0
      %v983 = vadd.f32 0.0, %v982
      %v984 = vpop.f32.mrb[0].mxu0
      %v985 = vpop.f32.mrb[0].mxu0
      %v986 = vadd.f32 0.0, %v985
      %v987 = vpop.f32.mrb[0].mxu0
      %988 = vmatprep.mubr.bf16.mxu0 0
      %989 = vmatmul.mubr.bf16.gmra.mrb[0].mxu0 %v806
      %v990 = vpop.f32.mrb[0].mxu0
      %v991 = vadd.f32 0.0, %v990
      %v992 = vpop.f32.mrb[0].mxu0
      %v993 = vpop.f32.mrb[0].mxu0
      %v994 = vadd.f32 0.0, %v993
      %v995 = vpop.f32.mrb[0].mxu0
      %996 = vmatprep.mubr.bf16.mxu0 0
      %997 = vmatmul.mubr.bf16.gmra.mrb[0].mxu0 %v807
      %v998 = vpop.f32.mrb[0].mxu0
      %v999 = vadd.f32 0.0, %v998
      %v1000 = vpop.f32.mrb[0].mxu0
      %v1001 = vpop.f32.mrb[0].mxu0
      %v1002 = vadd.f32 0.0, %v1001
      %v1003 = vpop.f32.mrb[0].mxu0
      %1004 = vmatprep.mubr.bf16.mxu0 0
      %1005 = vmatmul.mubr.bf16.gmra.mrb[0].mxu0 %v808
      %v1006 = vpop.f32.mrb[0].mxu0
      %v1007 = vadd.f32 0.0, %v1006
      %v1008 = vpop.f32.mrb[0].mxu0
      %v1009 = vpop.f32.mrb[0].mxu0
      %v1010 = vadd.f32 0.0, %v1009
      %v1011 = vpop.f32.mrb[0].mxu0
      %1012 = vmatprep.mubr.bf16.mxu0 0
      %1013 = vmatmul.mubr.bf16.gmra.mrb[0].mxu0 %v809
      %v1014 = vpop.f32.mrb[0].mxu0
      %v1015 = vadd.f32 0.0, %v1014
      %v1016 = vpop.f32.mrb[0].mxu0
      %v1017 = vpop.f32.mrb[0].mxu0
      %v1018 = vadd.f32 0.0, %v1017
      %v1019 = vpop.f32.mrb[0].mxu0
      %1020 = vmatprep.mubr.bf16.mxu0 0
      %1021 = vmatmul.mubr.bf16.gmra.mrb[0].mxu0 %v810
      %v1022 = vpop.f32.mrb[0].mxu0
      %v1023 = vadd.f32 0.0, %v1022
      %v1024 = vpop.f32.mrb[0].mxu0
      %v1025 = vpop.f32.mrb[0].mxu0
      %v1026 = vadd.f32 0.0, %v1025
      %v1027 = vpop.f32.mrb[0].mxu0
      %1028 = vmatprep.mubr.bf16.mxu0 0
      %1029 = vmatmul.mubr.bf16.gmra.mrb[0].mxu0 %v811
      %v1030 = vpop.f32.mrb[0].mxu0
      %v1031 = vadd.f32 0.0, %v1030
      %v1032 = vpop.f32.mrb[0].mxu0
      %v1033 = vpop.f32.mrb[0].mxu0
      %v1034 = vadd.f32 0.0, %v1033
      %v1035 = vpop.f32.mrb[0].mxu0
      %1036 = vdwg.mxu0
      %v1037 = vpack.c.bf16 %v914, %v911
      %v1038 = vpack.c.bf16 %v922, %v919
      %v1039 = vpack.c.bf16 %v930, %v927
      %v1040 = vpack.c.bf16 %v938, %v935
      %v1041 = vpack.c.bf16 %v946, %v943
      %v1042 = vpack.c.bf16 %v954, %v951
      %v1043 = vpack.c.bf16 %v962, %v959
      %v1044 = vpack.c.bf16 %v970, %v967
      %v1045 = vpack.c.bf16 %v978, %v975
      %v1046 = vpack.c.bf16 %v986, %v983
      %v1047 = vpack.c.bf16 %v994, %v991
      %v1048 = vpack.c.bf16 %v1002, %v999
      %v1049 = vpack.c.bf16 %v1010, %v1007
      %v1050 = vpack.c.bf16 %v1018, %v1015
      %v1051 = vpack.c.bf16 %v1026, %v1023
      %v1052 = vpack.c.bf16 %v1034, %v1031
      %v1069 = vunpack.c.l.b16 %v1037
      %v1070 = vunpack.c.h.b16 %v1037
      %v1071 = vunpack.c.l.b16 %v1038
      %v1072 = vunpack.c.h.b16 %v1038
      %v1073 = vunpack.c.l.b16 %v1039
      %v1074 = vunpack.c.h.b16 %v1039
      %v1075 = vunpack.c.l.b16 %v1040
      %v1076 = vunpack.c.h.b16 %v1040
      %v1077 = vunpack.c.l.b16 %v1041
      %v1078 = vunpack.c.h.b16 %v1041
      %v1079 = vunpack.c.l.b16 %v1042
      %v1080 = vunpack.c.h.b16 %v1042
      %v1081 = vunpack.c.l.b16 %v1043
      %v1082 = vunpack.c.h.b16 %v1043
      %v1083 = vunpack.c.l.b16 %v1044
      %v1084 = vunpack.c.h.b16 %v1044
      %v1085 = vunpack.c.l.b16 %v1045
      %v1086 = vunpack.c.h.b16 %v1045
      %v1087 = vunpack.c.l.b16 %v1046
      %v1088 = vunpack.c.h.b16 %v1046
      %v1089 = vunpack.c.l.b16 %v1047
      %v1090 = vunpack.c.h.b16 %v1047
      %v1091 = vunpack.c.l.b16 %v1048
      %v1092 = vunpack.c.h.b16 %v1048
      %v1093 = vunpack.c.l.b16 %v1049
      %v1094 = vunpack.c.h.b16 %v1049
      %v1095 = vunpack.c.l.b16 %v1050
      %v1096 = vunpack.c.h.b16 %v1050
      %v1097 = vunpack.c.l.b16 %v1051
      %v1098 = vunpack.c.h.b16 %v1051
      %v1099 = vunpack.c.l.b16 %v1052
      %v1100 = vunpack.c.h.b16 %v1052
      %v1101 = vpack.c.b16 %v1069, %v1069
      %v1102 = vpack.c.b16 %v1070, %v1070
      %v1103 = vpack.c.b16 %v1071, %v1071
      %v1104 = vpack.c.b16 %v1072, %v1072
      %v1105 = vpack.c.b16 %v1073, %v1073
      %v1106 = vpack.c.b16 %v1074, %v1074
      %v1107 = vpack.c.b16 %v1075, %v1075
      %v1108 = vpack.c.b16 %v1076, %v1076
      %v1109 = vpack.c.b16 %v1077, %v1077
      %v1110 = vpack.c.b16 %v1078, %v1078
      %v1111 = vpack.c.b16 %v1079, %v1079
      %v1112 = vpack.c.b16 %v1080, %v1080
      %v1113 = vpack.c.b16 %v1081, %v1081
      %v1114 = vpack.c.b16 %v1082, %v1082
      %v1115 = vpack.c.b16 %v1083, %v1083
      %v1116 = vpack.c.b16 %v1084, %v1084
      %v1117 = vpack.c.b16 %v1085, %v1085
      %v1118 = vpack.c.b16 %v1086, %v1086
      %v1119 = vpack.c.b16 %v1087, %v1087
      %v1120 = vpack.c.b16 %v1088, %v1088
      %v1121 = vpack.c.b16 %v1089, %v1089
      %v1122 = vpack.c.b16 %v1090, %v1090
      %v1123 = vpack.c.b16 %v1091, %v1091
      %v1124 = vpack.c.b16 %v1092, %v1092
      %v1125 = vpack.c.b16 %v1093, %v1093
      %v1126 = vpack.c.b16 %v1094, %v1094
      %v1127 = vpack.c.b16 %v1095, %v1095
      %v1128 = vpack.c.b16 %v1096, %v1096
      %v1129 = vpack.c.b16 %v1097, %v1097
      %v1130 = vpack.c.b16 %v1098, %v1098
      %v1131 = vpack.c.b16 %v1099, %v1099
      %v1132 = vpack.c.b16 %v1100, %v1100
      %1165 = vst [vmem:[#allocation11] sm:$0xf] %v1101
      %1166 = vst [vmem:[#allocation11 + $0x4] sm:$0xf] %v1102
      %1167 = vst [vmem:[#allocation11 + $0x8] sm:$0xf] %v1103
      %1168 = vst [vmem:[#allocation11 + $0xc] sm:$0xf] %v1104
      %1169 = vst [vmem:[#allocation11 + $0x10] sm:$0xf] %v1105
      %1170 = vst [vmem:[#allocation11 + $0x14] sm:$0xf] %v1106
      %1171 = vst [vmem:[#allocation11 + $0x18] sm:$0xf] %v1107
      %1172 = vst [vmem:[#allocation11 + $0x1c] sm:$0xf] %v1108
      %1173 = vst [vmem:[#allocation11 + $0x20] sm:$0xf] %v1109
      %1174 = vst [vmem:[#allocation11 + $0x24] sm:$0xf] %v1110
      %1175 = vst [vmem:[#allocation11 + $0x28] sm:$0xf] %v1111
      %1176 = vst [vmem:[#allocation11 + $0x2c] sm:$0xf] %v1112
      %1177 = vst [vmem:[#allocation11 + $0x30] sm:$0xf] %v1113
      %1178 = vst [vmem:[#allocation11 + $0x34] sm:$0xf] %v1114
      %1179 = vst [vmem:[#allocation11 + $0x38] sm:$0xf] %v1115
      %1180 = vst [vmem:[#allocation11 + $0x3c] sm:$0xf] %v1116
      %1181 = vst [vmem:[#allocation11 + $0x40] sm:$0xf] %v1117
      %1182 = vst [vmem:[#allocation11 + $0x44] sm:$0xf] %v1118
      %1183 = vst [vmem:[#allocation11 + $0x48] sm:$0xf] %v1119
      %1184 = vst [vmem:[#allocation11 + $0x4c] sm:$0xf] %v1120
      %1185 = vst [vmem:[#allocation11 + $0x50] sm:$0xf] %v1121
      %1186 = vst [vmem:[#allocation11 + $0x54] sm:$0xf] %v1122
      %1187 = vst [vmem:[#allocation11 + $0x58] sm:$0xf] %v1123
      %1188 = vst [vmem:[#allocation11 + $0x5c] sm:$0xf] %v1124
      %1189 = vst [vmem:[#allocation11 + $0x60] sm:$0xf] %v1125
      %1190 = vst [vmem:[#allocation11 + $0x64] sm:$0xf] %v1126
      %1191 = vst [vmem:[#allocation11 + $0x68] sm:$0xf] %v1127
      %1192 = vst [vmem:[#allocation11 + $0x6c] sm:$0xf] %v1128
      %1193 = vst [vmem:[#allocation11 + $0x70] sm:$0xf] %v1129
      %1194 = vst [vmem:[#allocation11 + $0x74] sm:$0xf] %v1130
      %1195 = vst [vmem:[#allocation11 + $0x78] sm:$0xf] %v1131
      %1196 = vst [vmem:[#allocation11 + $0x7c] sm:$0xf] %v1132
    $region41: #{gcn_forward_padded.4} parent=1 // pred_fallthru
      _
    // Predicated region
    $region42: #{gcn_forward_padded.4} parent=1 // pred_check
      _
    $region43: #{gcn_forward_padded.4} parent=1 // pred_check_branch
      %1198 = sbr.rel (0) target = $region45
    $region44: #{gcn_forward_padded.4} parent=1 // pred_region
      %s1200 = ssub.s32 2048, 2048
      %1201 = vsyncadd [#allocation5], %s1200
      %s1202 = sshll.u32 [#allocation11], 4
      %s1203 = int_to_ptr.vmem [resolvable:$true] %s1202
      %1208 = dma.vmem_to_hbm [thread:$0]  %s1203, 2048, %s4, [#allocation5], 64, 64, 4
    $region45: #{gcn_forward_padded.4} parent=1 // pred_fallthru
      _
    // Predicated region
    $region46: #{gcn_forward_padded.4} parent=1 // pred_check
      _
    $region47: #{gcn_forward_padded.4} parent=1 // pred_check_branch
      %1210 = sbr.rel (0) target = $region49
    $region48: #{gcn_forward_padded.4} parent=1 // pred_region
      %1211 = dma.done [#allocation5], 2048
    $region49: #{gcn_forward_padded.4} parent=1 // pred_fallthru
      _
    %1212 = vsyncpa [#allocation4], 1
    %1213 = vsyncpa [#allocation7], 1
    %1214 = vsyncpa [#allocation10], 1
    %1215 = vsyncpa [#allocation5], 1

// kernel: gcn_forward_padded.5
$region0: #{gcn_forward_padded.5}
  #allocation0 [shape = 'u32[]', space=smem, size = 0x4, offset = 0x4, fixed_abs, tag = 'smem constant byte address 0x4 - core index']
  #allocation1 [shape = 'u32[144,128]{1,0:T(1,128)}', space=vmem, size = 0x12000, scoped, tag = 'internal scratch']
  #allocation2 [shape = 'f32[256,128]{1,0:T(8,128)}', space=vmem, size = 0x20000, scoped, tag = 'scratch operand']
  %s0 = inlined_call_operand.hbm [shape: bf16[256,256], index: 0, kind: input, shape index: {}]
  %s1 = inlined_call_operand.hbm [shape: bf16[256,128], index: 1, kind: input, shape index: {}]
  %s2 = inlined_call_operand.hbm [shape: f32[1,128], index: 2, kind: input, shape index: {}]
  %s3 = inlined_call_operand.hbm [shape: bf16[128,128], index: 3, kind: input, shape index: {}]
  %s4 = inlined_call_operand.hbm [shape: f32[1,128], index: 4, kind: input, shape index: {}]
  %s5 = inlined_call_operand.hbm [shape: f32[256,128], index: 5, kind: output, shape index: {}]
  %s6 = sld [smem:[#allocation0]]
  $region58: #{gcn_forward_padded.5} parent=0
    _
  %s8 = ssub.s32 1, %s6
  %s9 = scalar_select 0, %s8, %s6
  $region1: #{gcn_forward_padded.5} parent=0
    #allocation3 [shape = 'u8[131072]{0}', space=vmem, size = 0x20000, scoped, tag = 'input window, operand 0, single buffered']
    #allocation4 [shape = 's32[1]{0}', space=sflag, size = 0x4, scoped, tag = 'scoped memory for gcn_forward_padded.5']
    #allocation5 [shape = 's32[1]{0}', space=sflag, size = 0x4, scoped, tag = 'scoped memory for gcn_forward_padded.5']
    #allocation6 [shape = 'u8[65536]{0}', space=vmem, size = 0x10000, scoped, tag = 'input window, operand 1, single buffered']
    #allocation7 [shape = 's32[1]{0}', space=sflag, size = 0x4, scoped, tag = 'scoped memory for gcn_forward_padded.5']
    #allocation8 [shape = 'u8[512]{0}', space=vmem, size = 0x400, scoped, tag = 'input window, operand 2, single buffered']
    #allocation9 [shape = 'u8[32768]{0}', space=vmem, size = 0x8000, scoped, tag = 'input window, operand 3, single buffered']
    #allocation10 [shape = 's32[1]{0}', space=sflag, size = 0x4, scoped, tag = 'scoped memory for gcn_forward_padded.5']
    #allocation11 [shape = 'u8[512]{0}', space=vmem, size = 0x400, scoped, tag = 'input window, operand 4, single buffered']
    #allocation12 [shape = 'u8[131072]{0}', space=vmem, size = 0x20000, scoped, tag = 'output window, operand 0, single buffered']
    %10 = vsyncpa [#allocation4], 0
    %11 = vsyncpa [#allocation7], 0
    %12 = vsyncpa [#allocation10], 0
    %13 = vsyncpa [#allocation5], 0
    // Predicated region
    $region2: #{gcn_forward_padded.5} parent=1 // pred_check
      _
    $region3: #{gcn_forward_padded.5} parent=1 // pred_check_branch
      %15 = sbr.rel (0) target = $region5
    $region4: #{gcn_forward_padded.5} parent=1 // pred_region
      %s17 = ssub.s32 4096, 4096
      %18 = vsyncadd [#allocation4], %s17
      %s19 = sshll.u32 [#allocation3], 4
      %s20 = int_to_ptr.vmem [resolvable:$true] %s19
      %25 = dma.hbm_to_vmem [thread:$0]  %s0, 4096, %s20, [#allocation4], 128, 128, 8
    $region5: #{gcn_forward_padded.5} parent=1 // pred_fallthru
      _
    // Predicated region
    $region6: #{gcn_forward_padded.5} parent=1 // pred_check
      _
    $region7: #{gcn_forward_padded.5} parent=1 // pred_check_branch
      %27 = sbr.rel (0) target = $region9
    $region8: #{gcn_forward_padded.5} parent=1 // pred_region
      %s29 = ssub.s32 2048, 2048
      %30 = vsyncadd [#allocation7], %s29
      %s31 = sshll.u32 [#allocation6], 4
      %s32 = int_to_ptr.vmem [resolvable:$true] %s31
      %37 = dma.hbm_to_vmem [thread:$0]  %s1, 2048, %s32, [#allocation7], 64, 64, 4
    $region9: #{gcn_forward_padded.5} parent=1 // pred_fallthru
      _
    // Predicated region
    $region10: #{gcn_forward_padded.5} parent=1 // pred_check
      _
    $region11: #{gcn_forward_padded.5} parent=1 // pred_check_branch
      %39 = sbr.rel (0) target = $region13
    $region12: #{gcn_forward_padded.5} parent=1 // pred_region
      %s41 = ssub.s32 16, 16
      %42 = vsyncadd [#allocation7], %s41
      %s44 = sshll.u32 [#allocation8], 4
      %s45 = int_to_ptr.vmem [resolvable:$true] %s44
      %47 = dma.hbm_to_vmem [thread:$0]  %s2, 16, %s45, [#allocation7]
    $region13: #{gcn_forward_padded.5} parent=1 // pred_fallthru
      _
    // Predicated region
    $region14: #{gcn_forward_padded.5} parent=1 // pred_check
      _
    $region15: #{gcn_forward_padded.5} parent=1 // pred_check_branch
      %49 = sbr.rel (0) target = $region17
    $region16: #{gcn_forward_padded.5} parent=1 // pred_region
      %s51 = ssub.s32 1024, 1024
      %52 = vsyncadd [#allocation10], %s51
      %s53 = sshll.u32 [#allocation9], 4
      %s54 = int_to_ptr.vmem [resolvable:$true] %s53
      %59 = dma.hbm_to_vmem [thread:$0]  %s3, 1024, %s54, [#allocation10], 64, 64, 4
    $region17: #{gcn_forward_padded.5} parent=1 // pred_fallthru
      _
    // Predicated region
    $region18: #{gcn_forward_padded.5} parent=1 // pred_check
      _
    $region19: #{gcn_forward_padded.5} parent=1 // pred_check_branch
      %61 = sbr.rel (0) target = $region21
    $region20: #{gcn_forward_padded.5} parent=1 // pred_region
      %s63 = ssub.s32 16, 16
      %64 = vsyncadd [#allocation10], %s63
      %s66 = sshll.u32 [#allocation11], 4
      %s67 = int_to_ptr.vmem [resolvable:$true] %s66
      %69 = dma.hbm_to_vmem [thread:$0]  %s4, 16, %s67, [#allocation10]
    $region21: #{gcn_forward_padded.5} parent=1 // pred_fallthru
      _
    // Predicated region
    $region22: #{gcn_forward_padded.5} parent=1 // pred_check
      _
    $region23: #{gcn_forward_padded.5} parent=1 // pred_check_branch
      %71 = sbr.rel (0) target = $region25
    $region24: #{gcn_forward_padded.5} parent=1 // pred_region
      %72 = dma.done [#allocation4], 4096
    $region25: #{gcn_forward_padded.5} parent=1 // pred_fallthru
      _
    // Predicated region
    $region26: #{gcn_forward_padded.5} parent=1 // pred_check
      _
    $region27: #{gcn_forward_padded.5} parent=1 // pred_check_branch
      %74 = sbr.rel (0) target = $region29
    $region28: #{gcn_forward_padded.5} parent=1 // pred_region
      %75 = dma.done [#allocation7], 2048
    $region29: #{gcn_forward_padded.5} parent=1 // pred_fallthru
      _
    // Predicated region
    $region30: #{gcn_forward_padded.5} parent=1 // pred_check
      _
    $region31: #{gcn_forward_padded.5} parent=1 // pred_check_branch
      %77 = sbr.rel (0) target = $region33
    $region32: #{gcn_forward_padded.5} parent=1 // pred_region
      %78 = dma.done [#allocation7], 16
    $region33: #{gcn_forward_padded.5} parent=1 // pred_fallthru
      _
    // Predicated region
    $region34: #{gcn_forward_padded.5} parent=1 // pred_check
      _
    $region35: #{gcn_forward_padded.5} parent=1 // pred_check_branch
      %80 = sbr.rel (0) target = $region37
    $region36: #{gcn_forward_padded.5} parent=1 // pred_region
      %81 = dma.done [#allocation10], 1024
    $region37: #{gcn_forward_padded.5} parent=1 // pred_fallthru
      _
    // Predicated region
    $region38: #{gcn_forward_padded.5} parent=1 // pred_check
      _
    $region39: #{gcn_forward_padded.5} parent=1 // pred_check_branch
      %83 = sbr.rel (0) target = $region41
    $region40: #{gcn_forward_padded.5} parent=1 // pred_region
      %84 = dma.done [#allocation10], 16
    $region41: #{gcn_forward_padded.5} parent=1 // pred_fallthru
      _
    %p86 = scmp.eq.s32.totalorder 0, 0
    // Predicated region
    $region42: #{gcn_forward_padded.5} parent=1 // pred_check
      %p87 = pneg %p86
    $region43: #{gcn_forward_padded.5} parent=1 // pred_check_branch
      %89 = sbr.rel (%p87) target = $region45
    $region44: #{gcn_forward_padded.5} parent=1 // pred_region
      %90 = vst [vmem:[#allocation2] sm:$0xff] 0.0
      %91 = vst [vmem:[#allocation2 + $0x8] sm:$0xff] 0.0
      %92 = vst [vmem:[#allocation2 + $0x10] sm:$0xff] 0.0
      %93 = vst [vmem:[#allocation2 + $0x18] sm:$0xff] 0.0
      %94 = vst [vmem:[#allocation2 + $0x20] sm:$0xff] 0.0
      %95 = vst [vmem:[#allocation2 + $0x28] sm:$0xff] 0.0
      %96 = vst [vmem:[#allocation2 + $0x30] sm:$0xff] 0.0
      %97 = vst [vmem:[#allocation2 + $0x38] sm:$0xff] 0.0
      %98 = vst [vmem:[#allocation2 + $0x40] sm:$0xff] 0.0
      %99 = vst [vmem:[#allocation2 + $0x48] sm:$0xff] 0.0
      %100 = vst [vmem:[#allocation2 + $0x50] sm:$0xff] 0.0
      %101 = vst [vmem:[#allocation2 + $0x58] sm:$0xff] 0.0
      %102 = vst [vmem:[#allocation2 + $0x60] sm:$0xff] 0.0
      %103 = vst [vmem:[#allocation2 + $0x68] sm:$0xff] 0.0
      %104 = vst [vmem:[#allocation2 + $0x70] sm:$0xff] 0.0
      %105 = vst [vmem:[#allocation2 + $0x78] sm:$0xff] 0.0
      %106 = vst [vmem:[#allocation2 + $0x80] sm:$0xff] 0.0
      %107 = vst [vmem:[#allocation2 + $0x88] sm:$0xff] 0.0
      %108 = vst [vmem:[#allocation2 + $0x90] sm:$0xff] 0.0
      %109 = vst [vmem:[#allocation2 + $0x98] sm:$0xff] 0.0
      %110 = vst [vmem:[#allocation2 + $0xa0] sm:$0xff] 0.0
      %111 = vst [vmem:[#allocation2 + $0xa8] sm:$0xff] 0.0
      %112 = vst [vmem:[#allocation2 + $0xb0] sm:$0xff] 0.0
      %113 = vst [vmem:[#allocation2 + $0xb8] sm:$0xff] 0.0
      %114 = vst [vmem:[#allocation2 + $0xc0] sm:$0xff] 0.0
      %115 = vst [vmem:[#allocation2 + $0xc8] sm:$0xff] 0.0
      %116 = vst [vmem:[#allocation2 + $0xd0] sm:$0xff] 0.0
      %117 = vst [vmem:[#allocation2 + $0xd8] sm:$0xff] 0.0
      %118 = vst [vmem:[#allocation2 + $0xe0] sm:$0xff] 0.0
      %119 = vst [vmem:[#allocation2 + $0xe8] sm:$0xff] 0.0
      %120 = vst [vmem:[#allocation2 + $0xf0] sm:$0xff] 0.0
      %121 = vst [vmem:[#allocation2 + $0xf8] sm:$0xff] 0.0
    $region45: #{gcn_forward_padded.5} parent=1 // pred_fallthru
      _
    %s122 = smul.u32 0, 256
    %s123 = sshra.s32 %s122, 3
    %s124 = sand.u32 %s122, 7
    %s125 = smul.addr %s123, 4
    %s126 = scalar_lea.vmem [#allocation6], %s125
    %v127 = vld [vmem:[%s126] sm:$0xf]
    %v128 = vld [vmem:[%s126 + $0x4] sm:$0xf]
    %v129 = vld [vmem:[%s126 + $0x8] sm:$0xf]
    %v130 = vld [vmem:[%s126 + $0xc] sm:$0xf]
    %v131 = vld [vmem:[%s126 + $0x10] sm:$0xf]
    %v132 = vld [vmem:[%s126 + $0x14] sm:$0xf]
    %v133 = vld [vmem:[%s126 + $0x18] sm:$0xf]
    %v134 = vld [vmem:[%s126 + $0x1c] sm:$0xf]
    %v135 = vld [vmem:[%s126 + $0x20] sm:$0xf]
    %v136 = vld [vmem:[%s126 + $0x24] sm:$0xf]
    %v137 = vld [vmem:[%s126 + $0x28] sm:$0xf]
    %v138 = vld [vmem:[%s126 + $0x2c] sm:$0xf]
    %v139 = vld [vmem:[%s126 + $0x30] sm:$0xf]
    %v140 = vld [vmem:[%s126 + $0x34] sm:$0xf]
    %v141 = vld [vmem:[%s126 + $0x38] sm:$0xf]
    %v142 = vld [vmem:[%s126 + $0x3c] sm:$0xf]
    %v143 = vld [vmem:[%s126 + $0x40] sm:$0xf]
    %v144 = vld [vmem:[%s126 + $0x44] sm:$0xf]
    %v145 = vld [vmem:[%s126 + $0x48] sm:$0xf]
    %v146 = vld [vmem:[%s126 + $0x4c] sm:$0xf]
    %v147 = vld [vmem:[%s126 + $0x50] sm:$0xf]
    %v148 = vld [vmem:[%s126 + $0x54] sm:$0xf]
    %v149 = vld [vmem:[%s126 + $0x58] sm:$0xf]
    %v150 = vld [vmem:[%s126 + $0x5c] sm:$0xf]
    %v151 = vld [vmem:[%s126 + $0x60] sm:$0xf]
    %v152 = vld [vmem:[%s126 + $0x64] sm:$0xf]
    %v153 = vld [vmem:[%s126 + $0x68] sm:$0xf]
    %v154 = vld [vmem:[%s126 + $0x6c] sm:$0xf]
    %v155 = vld [vmem:[%s126 + $0x70] sm:$0xf]
    %v156 = vld [vmem:[%s126 + $0x74] sm:$0xf]
    %v157 = vld [vmem:[%s126 + $0x78] sm:$0xf]
    %v158 = vld [vmem:[%s126 + $0x7c] sm:$0xf]
    %v159 = vld [vmem:[#allocation2] sm:$0xff]
    %v160 = vld [vmem:[#allocation2 + $0x8] sm:$0xff]
    %v161 = vld [vmem:[#allocation2 + $0x10] sm:$0xff]
    %v162 = vld [vmem:[#allocation2 + $0x18] sm:$0xff]
    %v163 = vld [vmem:[#allocation2 + $0x20] sm:$0xff]
    %v164 = vld [vmem:[#allocation2 + $0x28] sm:$0xff]
    %v165 = vld [vmem:[#allocation2 + $0x30] sm:$0xff]
    %v166 = vld [vmem:[#allocation2 + $0x38] sm:$0xff]
    %v167 = vld [vmem:[#allocation2 + $0x40] sm:$0xff]
    %v168 = vld [vmem:[#allocation2 + $0x48] sm:$0xff]
    %v169 = vld [vmem:[#allocation2 + $0x50] sm:$0xff]
    %v170 = vld [vmem:[#allocation2 + $0x58] sm:$0xff]
    %v171 = vld [vmem:[#allocation2 + $0x60] sm:$0xff]
    %v172 = vld [vmem:[#allocation2 + $0x68] sm:$0xff]
    %v173 = vld [vmem:[#allocation2 + $0x70] sm:$0xff]
    %v174 = vld [vmem:[#allocation2 + $0x78] sm:$0xff]
    %v175 = vld [vmem:[#allocation2 + $0x80] sm:$0xff]
    %v176 = vld [vmem:[#allocation2 + $0x88] sm:$0xff]
    %v177 = vld [vmem:[#allocation2 + $0x90] sm:$0xff]
    %v178 = vld [vmem:[#allocation2 + $0x98] sm:$0xff]
    %v179 = vld [vmem:[#allocation2 + $0xa0] sm:$0xff]
    %v180 = vld [vmem:[#allocation2 + $0xa8] sm:$0xff]
    %v181 = vld [vmem:[#allocation2 + $0xb0] sm:$0xff]
    %v182 = vld [vmem:[#allocation2 + $0xb8] sm:$0xff]
    %v183 = vld [vmem:[#allocation2 + $0xc0] sm:$0xff]
    %v184 = vld [vmem:[#allocation2 + $0xc8] sm:$0xff]
    %v185 = vld [vmem:[#allocation2 + $0xd0] sm:$0xff]
    %v186 = vld [vmem:[#allocation2 + $0xd8] sm:$0xff]
    %v187 = vld [vmem:[#allocation2 + $0xe0] sm:$0xff]
    %v188 = vld [vmem:[#allocation2 + $0xe8] sm:$0xff]
    %v189 = vld [vmem:[#allocation2 + $0xf0] sm:$0xff]
    %v190 = vld [vmem:[#allocation2 + $0xf8] sm:$0xff]
    %v191 = vld [vmem:[#allocation3] sm:$0xff]
    %v192 = vld [vmem:[#allocation3 + $0x8] sm:$0xff]
    %v193 = vld [vmem:[#allocation3 + $0x10] sm:$0xff]
    %v194 = vld [vmem:[#allocation3 + $0x18] sm:$0xff]
    %v195 = vld [vmem:[#allocation3 + $0x20] sm:$0xff]
    %v196 = vld [vmem:[#allocation3 + $0x28] sm:$0xff]
    %v197 = vld [vmem:[#allocation3 + $0x30] sm:$0xff]
    %v198 = vld [vmem:[#allocation3 + $0x38] sm:$0xff]
    %v199 = vld [vmem:[#allocation3 + $0x40] sm:$0xff]
    %v200 = vld [vmem:[#allocation3 + $0x48] sm:$0xff]
    %v201 = vld [vmem:[#allocation3 + $0x50] sm:$0xff]
    %v202 = vld [vmem:[#allocation3 + $0x58] sm:$0xff]
    %v203 = vld [vmem:[#allocation3 + $0x60] sm:$0xff]
    %v204 = vld [vmem:[#allocation3 + $0x68] sm:$0xff]
    %v205 = vld [vmem:[#allocation3 + $0x70] sm:$0xff]
    %v206 = vld [vmem:[#allocation3 + $0x78] sm:$0xff]
    %v207 = vld [vmem:[#allocation3 + $0x80] sm:$0xff]
    %v208 = vld [vmem:[#allocation3 + $0x88] sm:$0xff]
    %v209 = vld [vmem:[#allocation3 + $0x90] sm:$0xff]
    %v210 = vld [vmem:[#allocation3 + $0x98] sm:$0xff]
    %v211 = vld [vmem:[#allocation3 + $0xa0] sm:$0xff]
    %v212 = vld [vmem:[#allocation3 + $0xa8] sm:$0xff]
    %v213 = vld [vmem:[#allocation3 + $0xb0] sm:$0xff]
    %v214 = vld [vmem:[#allocation3 + $0xb8] sm:$0xff]
    %v215 = vld [vmem:[#allocation3 + $0xc0] sm:$0xff]
    %v216 = vld [vmem:[#allocation3 + $0xc8] sm:$0xff]
    %v217 = vld [vmem:[#allocation3 + $0xd0] sm:$0xff]
    %v218 = vld [vmem:[#allocation3 + $0xd8] sm:$0xff]
    %v219 = vld [vmem:[#allocation3 + $0xe0] sm:$0xff]
    %v220 = vld [vmem:[#allocation3 + $0xe8] sm:$0xff]
    %v221 = vld [vmem:[#allocation3 + $0xf0] sm:$0xff]
    %v222 = vld [vmem:[#allocation3 + $0xf8] sm:$0xff]
    %v255 = vunpack.c.l.b16 %v191
    %v256 = vunpack.c.h.b16 %v191
    %v257 = vunpack.c.l.b16 %v192
    %v258 = vunpack.c.h.b16 %v192
    %v259 = vunpack.c.l.b16 %v193
    %v260 = vunpack.c.h.b16 %v193
    %v261 = vunpack.c.l.b16 %v194
    %v262 = vunpack.c.h.b16 %v194
    %v263 = vunpack.c.l.b16 %v195
    %v264 = vunpack.c.h.b16 %v195
    %v265 = vunpack.c.l.b16 %v196
    %v266 = vunpack.c.h.b16 %v196
    %v267 = vunpack.c.l.b16 %v197
    %v268 = vunpack.c.h.b16 %v197
    %v269 = vunpack.c.l.b16 %v198
    %v270 = vunpack.c.h.b16 %v198
    %v271 = vunpack.c.l.b16 %v199
    %v272 = vunpack.c.h.b16 %v199
    %v273 = vunpack.c.l.b16 %v200
    %v274 = vunpack.c.h.b16 %v200
    %v275 = vunpack.c.l.b16 %v201
    %v276 = vunpack.c.h.b16 %v201
    %v277 = vunpack.c.l.b16 %v202
    %v278 = vunpack.c.h.b16 %v202
    %v279 = vunpack.c.l.b16 %v203
    %v280 = vunpack.c.h.b16 %v203
    %v281 = vunpack.c.l.b16 %v204
    %v282 = vunpack.c.h.b16 %v204
    %v283 = vunpack.c.l.b16 %v205
    %v284 = vunpack.c.h.b16 %v205
    %v285 = vunpack.c.l.b16 %v206
    %v286 = vunpack.c.h.b16 %v206
    %v287 = vunpack.c.l.b16 %v207
    %v288 = vunpack.c.h.b16 %v207
    %v289 = vunpack.c.l.b16 %v208
    %v290 = vunpack.c.h.b16 %v208
    %v291 = vunpack.c.l.b16 %v209
    %v292 = vunpack.c.h.b16 %v209
    %v293 = vunpack.c.l.b16 %v210
    %v294 = vunpack.c.h.b16 %v210
    %v295 = vunpack.c.l.b16 %v211
    %v296 = vunpack.c.h.b16 %v211
    %v297 = vunpack.c.l.b16 %v212
    %v298 = vunpack.c.h.b16 %v212
    %v299 = vunpack.c.l.b16 %v213
    %v300 = vunpack.c.h.b16 %v213
    %v301 = vunpack.c.l.b16 %v214
    %v302 = vunpack.c.h.b16 %v214
    %v303 = vunpack.c.l.b16 %v215
    %v304 = vunpack.c.h.b16 %v215
    %v305 = vunpack.c.l.b16 %v216
    %v306 = vunpack.c.h.b16 %v216
    %v307 = vunpack.c.l.b16 %v217
    %v308 = vunpack.c.h.b16 %v217
    %v309 = vunpack.c.l.b16 %v218
    %v310 = vunpack.c.h.b16 %v218
    %v311 = vunpack.c.l.b16 %v219
    %v312 = vunpack.c.h.b16 %v219
    %v313 = vunpack.c.l.b16 %v220
    %v314 = vunpack.c.h.b16 %v220
    %v315 = vunpack.c.l.b16 %v221
    %v316 = vunpack.c.h.b16 %v221
    %v317 = vunpack.c.l.b16 %v222
    %v318 = vunpack.c.h.b16 %v222
    %v319 = vpack.c.b16 %v257, %v255
    %v320 = vpack.c.b16 %v258, %v256
    %v321 = vpack.c.b16 %v261, %v259
    %v322 = vpack.c.b16 %v262, %v260
    %v323 = vpack.c.b16 %v265, %v263
    %v324 = vpack.c.b16 %v266, %v264
    %v325 = vpack.c.b16 %v269, %v267
    %v326 = vpack.c.b16 %v270, %v268
    %v327 = vpack.c.b16 %v273, %v271
    %v328 = vpack.c.b16 %v274, %v272
    %v329 = vpack.c.b16 %v277, %v275
    %v330 = vpack.c.b16 %v278, %v276
    %v331 = vpack.c.b16 %v281, %v279
    %v332 = vpack.c.b16 %v282, %v280
    %v333 = vpack.c.b16 %v285, %v283
    %v334 = vpack.c.b16 %v286, %v284
    %v335 = vpack.c.b16 %v289, %v287
    %v336 = vpack.c.b16 %v290, %v288
    %v337 = vpack.c.b16 %v293, %v291
    %v338 = vpack.c.b16 %v294, %v292
    %v339 = vpack.c.b16 %v297, %v295
    %v340 = vpack.c.b16 %v298, %v296
    %v341 = vpack.c.b16 %v301, %v299
    %v342 = vpack.c.b16 %v302, %v300
    %v343 = vpack.c.b16 %v305, %v303
    %v344 = vpack.c.b16 %v306, %v304
    %v345 = vpack.c.b16 %v309, %v307
    %v346 = vpack.c.b16 %v310, %v308
    %v347 = vpack.c.b16 %v313, %v311
    %v348 = vpack.c.b16 %v314, %v312
    %v349 = vpack.c.b16 %v317, %v315
    %v350 = vpack.c.b16 %v318, %v316
    %v415 = vunpack.c.l.b16 %v127
    %v416 = vunpack.c.l.b16 %v128
    %v417 = vunpack.c.l.b16 %v129
    %v418 = vunpack.c.l.b16 %v130
    %v419 = vunpack.c.l.b16 %v131
    %v420 = vunpack.c.l.b16 %v132
    %v421 = vunpack.c.l.b16 %v133
    %v422 = vunpack.c.l.b16 %v134
    %v423 = vunpack.c.l.b16 %v135
    %v424 = vunpack.c.l.b16 %v136
    %v425 = vunpack.c.l.b16 %v137
    %v426 = vunpack.c.l.b16 %v138
    %v427 = vunpack.c.l.b16 %v139
    %v428 = vunpack.c.l.b16 %v140
    %v429 = vunpack.c.l.b16 %v141
    %v430 = vunpack.c.l.b16 %v142
    %v431 = vunpack.c.l.b16 %v143
    %v432 = vunpack.c.l.b16 %v144
    %v433 = vunpack.c.l.b16 %v145
    %v434 = vunpack.c.l.b16 %v146
    %v435 = vunpack.c.l.b16 %v147
    %v436 = vunpack.c.l.b16 %v148
    %v437 = vunpack.c.l.b16 %v149
    %v438 = vunpack.c.l.b16 %v150
    %v439 = vunpack.c.l.b16 %v151
    %v440 = vunpack.c.l.b16 %v152
    %v441 = vunpack.c.l.b16 %v153
    %v442 = vunpack.c.l.b16 %v154
    %v443 = vunpack.c.l.b16 %v155
    %v444 = vunpack.c.l.b16 %v156
    %v445 = vunpack.c.l.b16 %v157
    %v446 = vunpack.c.l.b16 %v158
    %v447 = vpack.c.b16 %v416, %v415
    %v448 = vpack.c.b16 %v418, %v417
    %v449 = vpack.c.b16 %v420, %v419
    %v450 = vpack.c.b16 %v422, %v421
    %v451 = vpack.c.b16 %v424, %v423
    %v452 = vpack.c.b16 %v426, %v425
    %v453 = vpack.c.b16 %v428, %v427
    %v454 = vpack.c.b16 %v430, %v429
    %v455 = vpack.c.b16 %v432, %v431
    %v456 = vpack.c.b16 %v434, %v433
    %v457 = vpack.c.b16 %v436, %v435
    %v458 = vpack.c.b16 %v438, %v437
    %v459 = vpack.c.b16 %v440, %v439
    %v460 = vpack.c.b16 %v442, %v441
    %v461 = vpack.c.b16 %v444, %v443
    %v462 = vpack.c.b16 %v446, %v445
    %479 = vmatprep.subr.bf16.mxu0 0
    %480 = vmatpush1.bf16.msra.mxu0 %v447
    %481 = vmatprep.subr.bf16.mxu0 0
    %482 = vmatpush1.bf16.msra.mxu0 %v448
    %483 = vmatprep.subr.bf16.mxu0 0
    %484 = vmatpush1.bf16.msra.mxu0 %v449
    %485 = vmatprep.subr.bf16.mxu0 0
    %486 = vmatpush1.bf16.msra.mxu0 %v450
    %487 = vmatprep.subr.bf16.mxu0 0
    %488 = vmatpush1.bf16.msra.mxu0 %v451
    %489 = vmatprep.subr.bf16.mxu0 0
    %490 = vmatpush1.bf16.msra.mxu0 %v452
    %491 = vmatprep.subr.bf16.mxu0 0
    %492 = vmatpush1.bf16.msra.mxu0 %v453
    %493 = vmatprep.subr.bf16.mxu0 0
    %494 = vmatpush1.bf16.msra.mxu0 %v454
    %495 = vmatprep.subr.bf16.mxu0 0
    %496 = vmatpush1.bf16.msra.mxu0 %v455
    %497 = vmatprep.subr.bf16.mxu0 0
    %498 = vmatpush1.bf16.msra.mxu0 %v456
    %499 = vmatprep.subr.bf16.mxu0 0
    %500 = vmatpush1.bf16.msra.mxu0 %v457
    %501 = vmatprep.subr.bf16.mxu0 0
    %502 = vmatpush1.bf16.msra.mxu0 %v458
    %503 = vmatprep.subr.bf16.mxu0 0
    %504 = vmatpush1.bf16.msra.mxu0 %v459
    %505 = vmatprep.subr.bf16.mxu0 0
    %506 = vmatpush1.bf16.msra.mxu0 %v460
    %507 = vmatprep.subr.bf16.mxu0 0
    %508 = vmatpush1.bf16.msra.mxu0 %v461
    %509 = vmatprep.subr.bf16.mxu0 0
    %510 = vmatpush1.bf16.msra.mxu0 %v462
    %511 = vmatprep.mubr.bf16.mxu0 %v320
    %512 = vmatmul.mubr.bf16.gmra.mrb[0].mxu0 %v319
    %v513 = vpop.f32.mrb[0].mxu0
    %v514 = vadd.f32 0.0, %v513
    %v515 = vpop.f32.mrb[0].mxu0
    %v516 = vpop.f32.mrb[0].mxu0
    %v517 = vadd.f32 0.0, %v516
    %v518 = vpop.f32.mrb[0].mxu0
    %519 = vmatprep.mubr.bf16.mxu0 %v322
    %520 = vmatmul.mubr.bf16.gmra.mrb[0].mxu0 %v321
    %v521 = vpop.f32.mrb[0].mxu0
    %v522 = vadd.f32 0.0, %v521
    %v523 = vpop.f32.mrb[0].mxu0
    %v524 = vpop.f32.mrb[0].mxu0
    %v525 = vadd.f32 0.0, %v524
    %v526 = vpop.f32.mrb[0].mxu0
    %527 = vmatprep.mubr.bf16.mxu0 %v324
    %528 = vmatmul.mubr.bf16.gmra.mrb[0].mxu0 %v323
    %v529 = vpop.f32.mrb[0].mxu0
    %v530 = vadd.f32 0.0, %v529
    %v531 = vpop.f32.mrb[0].mxu0
    %v532 = vpop.f32.mrb[0].mxu0
    %v533 = vadd.f32 0.0, %v532
    %v534 = vpop.f32.mrb[0].mxu0
    %535 = vmatprep.mubr.bf16.mxu0 %v326
    %536 = vmatmul.mubr.bf16.gmra.mrb[0].mxu0 %v325
    %v537 = vpop.f32.mrb[0].mxu0
    %v538 = vadd.f32 0.0, %v537
    %v539 = vpop.f32.mrb[0].mxu0
    %v540 = vpop.f32.mrb[0].mxu0
    %v541 = vadd.f32 0.0, %v540
    %v542 = vpop.f32.mrb[0].mxu0
    %543 = vmatprep.mubr.bf16.mxu0 %v328
    %544 = vmatmul.mubr.bf16.gmra.mrb[0].mxu0 %v327
    %v545 = vpop.f32.mrb[0].mxu0
    %v546 = vadd.f32 0.0, %v545
    %v547 = vpop.f32.mrb[0].mxu0
    %v548 = vpop.f32.mrb[0].mxu0
    %v549 = vadd.f32 0.0, %v548
    %v550 = vpop.f32.mrb[0].mxu0
    %551 = vmatprep.mubr.bf16.mxu0 %v330
    %552 = vmatmul.mubr.bf16.gmra.mrb[0].mxu0 %v329
    %v553 = vpop.f32.mrb[0].mxu0
    %v554 = vadd.f32 0.0, %v553
    %v555 = vpop.f32.mrb[0].mxu0
    %v556 = vpop.f32.mrb[0].mxu0
    %v557 = vadd.f32 0.0, %v556
    %v558 = vpop.f32.mrb[0].mxu0
    %559 = vmatprep.mubr.bf16.mxu0 %v332
    %560 = vmatmul.mubr.bf16.gmra.mrb[0].mxu0 %v331
    %v561 = vpop.f32.mrb[0].mxu0
    %v562 = vadd.f32 0.0, %v561
    %v563 = vpop.f32.mrb[0].mxu0
    %v564 = vpop.f32.mrb[0].mxu0
    %v565 = vadd.f32 0.0, %v564
    %v566 = vpop.f32.mrb[0].mxu0
    %567 = vmatprep.mubr.bf16.mxu0 %v334
    %568 = vmatmul.mubr.bf16.gmra.mrb[0].mxu0 %v333
    %v569 = vpop.f32.mrb[0].mxu0
    %v570 = vadd.f32 0.0, %v569
    %v571 = vpop.f32.mrb[0].mxu0
    %v572 = vpop.f32.mrb[0].mxu0
    %v573 = vadd.f32 0.0, %v572
    %v574 = vpop.f32.mrb[0].mxu0
    %575 = vmatprep.mubr.bf16.mxu0 %v336
    %576 = vmatmul.mubr.bf16.gmra.mrb[0].mxu0 %v335
    %v577 = vpop.f32.mrb[0].mxu0
    %v578 = vadd.f32 0.0, %v577
    %v579 = vpop.f32.mrb[0].mxu0
    %v580 = vpop.f32.mrb[0].mxu0
    %v581 = vadd.f32 0.0, %v580
    %v582 = vpop.f32.mrb[0].mxu0
    %583 = vmatprep.mubr.bf16.mxu0 %v338
    %584 = vmatmul.mubr.bf16.gmra.mrb[0].mxu0 %v337
    %v585 = vpop.f32.mrb[0].mxu0
    %v586 = vadd.f32 0.0, %v585
    %v587 = vpop.f32.mrb[0].mxu0
    %v588 = vpop.f32.mrb[0].mxu0
    %v589 = vadd.f32 0.0, %v588
    %v590 = vpop.f32.mrb[0].mxu0
    %591 = vmatprep.mubr.bf16.mxu0 %v340
    %592 = vmatmul.mubr.bf16.gmra.mrb[0].mxu0 %v339
    %v593 = vpop.f32.mrb[0].mxu0
    %v594 = vadd.f32 0.0, %v593
    %v595 = vpop.f32.mrb[0].mxu0
    %v596 = vpop.f32.mrb[0].mxu0
    %v597 = vadd.f32 0.0, %v596
    %v598 = vpop.f32.mrb[0].mxu0
    %599 = vmatprep.mubr.bf16.mxu0 %v342
    %600 = vmatmul.mubr.bf16.gmra.mrb[0].mxu0 %v341
    %v601 = vpop.f32.mrb[0].mxu0
    %v602 = vadd.f32 0.0, %v601
    %v603 = vpop.f32.mrb[0].mxu0
    %v604 = vpop.f32.mrb[0].mxu0
    %v605 = vadd.f32 0.0, %v604
    %v606 = vpop.f32.mrb[0].mxu0
    %607 = vmatprep.mubr.bf16.mxu0 %v344
    %608 = vmatmul.mubr.bf16.gmra.mrb[0].mxu0 %v343
    %v609 = vpop.f32.mrb[0].mxu0
    %v610 = vadd.f32 0.0, %v609
    %v611 = vpop.f32.mrb[0].mxu0
    %v612 = vpop.f32.mrb[0].mxu0
    %v613 = vadd.f32 0.0, %v612
    %v614 = vpop.f32.mrb[0].mxu0
    %615 = vmatprep.mubr.bf16.mxu0 %v346
    %616 = vmatmul.mubr.bf16.gmra.mrb[0].mxu0 %v345
    %v617 = vpop.f32.mrb[0].mxu0
    %v618 = vadd.f32 0.0, %v617
    %v619 = vpop.f32.mrb[0].mxu0
    %v620 = vpop.f32.mrb[0].mxu0
    %v621 = vadd.f32 0.0, %v620
    %v622 = vpop.f32.mrb[0].mxu0
    %623 = vmatprep.mubr.bf16.mxu0 %v348
    %624 = vmatmul.mubr.bf16.gmra.mrb[0].mxu0 %v347
    %v625 = vpop.f32.mrb[0].mxu0
    %v626 = vadd.f32 0.0, %v625
    %v627 = vpop.f32.mrb[0].mxu0
    %v628 = vpop.f32.mrb[0].mxu0
    %v629 = vadd.f32 0.0, %v628
    %v630 = vpop.f32.mrb[0].mxu0
    %631 = vmatprep.mubr.bf16.mxu0 %v350
    %632 = vmatmul.mubr.bf16.gmra.mrb[0].mxu0 %v349
    %v633 = vpop.f32.mrb[0].mxu0
    %v634 = vadd.f32 0.0, %v633
    %v635 = vpop.f32.mrb[0].mxu0
    %v636 = vpop.f32.mrb[0].mxu0
    %v637 = vadd.f32 0.0, %v636
    %v638 = vpop.f32.mrb[0].mxu0
    %639 = vdwg.mxu0
    %v640 = vadd.f32 %v159, %v514
    %v641 = vadd.f32 %v160, %v517
    %v642 = vadd.f32 %v161, %v522
    %v643 = vadd.f32 %v162, %v525
    %v644 = vadd.f32 %v163, %v530
    %v645 = vadd.f32 %v164, %v533
    %v646 = vadd.f32 %v165, %v538
    %v647 = vadd.f32 %v166, %v541
    %v648 = vadd.f32 %v167, %v546
    %v649 = vadd.f32 %v168, %v549
    %v650 = vadd.f32 %v169, %v554
    %v651 = vadd.f32 %v170, %v557
    %v652 = vadd.f32 %v171, %v562
    %v653 = vadd.f32 %v172, %v565
    %v654 = vadd.f32 %v173, %v570
    %v655 = vadd.f32 %v174, %v573
    %v656 = vadd.f32 %v175, %v578
    %v657 = vadd.f32 %v176, %v581
    %v658 = vadd.f32 %v177, %v586
    %v659 = vadd.f32 %v178, %v589
    %v660 = vadd.f32 %v179, %v594
    %v661 = vadd.f32 %v180, %v597
    %v662 = vadd.f32 %v181, %v602
    %v663 = vadd.f32 %v182, %v605
    %v664 = vadd.f32 %v183, %v610
    %v665 = vadd.f32 %v184, %v613
    %v666 = vadd.f32 %v185, %v618
    %v667 = vadd.f32 %v186, %v621
    %v668 = vadd.f32 %v187, %v626
    %v669 = vadd.f32 %v188, %v629
    %v670 = vadd.f32 %v189, %v634
    %v671 = vadd.f32 %v190, %v637
    %672 = vst [vmem:[#allocation2] sm:$0xff] %v640
    %673 = vst [vmem:[#allocation2 + $0x8] sm:$0xff] %v641
    %674 = vst [vmem:[#allocation2 + $0x10] sm:$0xff] %v642
    %675 = vst [vmem:[#allocation2 + $0x18] sm:$0xff] %v643
    %676 = vst [vmem:[#allocation2 + $0x20] sm:$0xff] %v644
    %677 = vst [vmem:[#allocation2 + $0x28] sm:$0xff] %v645
    %678 = vst [vmem:[#allocation2 + $0x30] sm:$0xff] %v646
    %679 = vst [vmem:[#allocation2 + $0x38] sm:$0xff] %v647
    %680 = vst [vmem:[#allocation2 + $0x40] sm:$0xff] %v648
    %681 = vst [vmem:[#allocation2 + $0x48] sm:$0xff] %v649
    %682 = vst [vmem:[#allocation2 + $0x50] sm:$0xff] %v650
    %683 = vst [vmem:[#allocation2 + $0x58] sm:$0xff] %v651
    %684 = vst [vmem:[#allocation2 + $0x60] sm:$0xff] %v652
    %685 = vst [vmem:[#allocation2 + $0x68] sm:$0xff] %v653
    %686 = vst [vmem:[#allocation2 + $0x70] sm:$0xff] %v654
    %687 = vst [vmem:[#allocation2 + $0x78] sm:$0xff] %v655
    %688 = vst [vmem:[#allocation2 + $0x80] sm:$0xff] %v656
    %689 = vst [vmem:[#allocation2 + $0x88] sm:$0xff] %v657
    %690 = vst [vmem:[#allocation2 + $0x90] sm:$0xff] %v658
    %691 = vst [vmem:[#allocation2 + $0x98] sm:$0xff] %v659
    %692 = vst [vmem:[#allocation2 + $0xa0] sm:$0xff] %v660
    %693 = vst [vmem:[#allocation2 + $0xa8] sm:$0xff] %v661
    %694 = vst [vmem:[#allocation2 + $0xb0] sm:$0xff] %v662
    %695 = vst [vmem:[#allocation2 + $0xb8] sm:$0xff] %v663
    %696 = vst [vmem:[#allocation2 + $0xc0] sm:$0xff] %v664
    %697 = vst [vmem:[#allocation2 + $0xc8] sm:$0xff] %v665
    %698 = vst [vmem:[#allocation2 + $0xd0] sm:$0xff] %v666
    %699 = vst [vmem:[#allocation2 + $0xd8] sm:$0xff] %v667
    %700 = vst [vmem:[#allocation2 + $0xe0] sm:$0xff] %v668
    %701 = vst [vmem:[#allocation2 + $0xe8] sm:$0xff] %v669
    %702 = vst [vmem:[#allocation2 + $0xf0] sm:$0xff] %v670
    %703 = vst [vmem:[#allocation2 + $0xf8] sm:$0xff] %v671
    // Predicated region
    $region46: #{gcn_forward_padded.5} parent=1 // pred_check
      %p704 = pneg %p86
    $region47: #{gcn_forward_padded.5} parent=1 // pred_check_branch
      %706 = sbr.rel (%p704) target = $region49
    $region48: #{gcn_forward_padded.5} parent=1 // pred_region
      %v707 = vld [vmem:[#allocation2] sm:$0xff]
      %v708 = vld [vmem:[#allocation2 + $0x8] sm:$0xff]
      %v709 = vld [vmem:[#allocation2 + $0x10] sm:$0xff]
      %v710 = vld [vmem:[#allocation2 + $0x18] sm:$0xff]
      %v711 = vld [vmem:[#allocation2 + $0x20] sm:$0xff]
      %v712 = vld [vmem:[#allocation2 + $0x28] sm:$0xff]
      %v713 = vld [vmem:[#allocation2 + $0x30] sm:$0xff]
      %v714 = vld [vmem:[#allocation2 + $0x38] sm:$0xff]
      %v715 = vld [vmem:[#allocation2 + $0x40] sm:$0xff]
      %v716 = vld [vmem:[#allocation2 + $0x48] sm:$0xff]
      %v717 = vld [vmem:[#allocation2 + $0x50] sm:$0xff]
      %v718 = vld [vmem:[#allocation2 + $0x58] sm:$0xff]
      %v719 = vld [vmem:[#allocation2 + $0x60] sm:$0xff]
      %v720 = vld [vmem:[#allocation2 + $0x68] sm:$0xff]
      %v721 = vld [vmem:[#allocation2 + $0x70] sm:$0xff]
      %v722 = vld [vmem:[#allocation2 + $0x78] sm:$0xff]
      %v723 = vld [vmem:[#allocation2 + $0x80] sm:$0xff]
      %v724 = vld [vmem:[#allocation2 + $0x88] sm:$0xff]
      %v725 = vld [vmem:[#allocation2 + $0x90] sm:$0xff]
      %v726 = vld [vmem:[#allocation2 + $0x98] sm:$0xff]
      %v727 = vld [vmem:[#allocation2 + $0xa0] sm:$0xff]
      %v728 = vld [vmem:[#allocation2 + $0xa8] sm:$0xff]
      %v729 = vld [vmem:[#allocation2 + $0xb0] sm:$0xff]
      %v730 = vld [vmem:[#allocation2 + $0xb8] sm:$0xff]
      %v731 = vld [vmem:[#allocation2 + $0xc0] sm:$0xff]
      %v732 = vld [vmem:[#allocation2 + $0xc8] sm:$0xff]
      %v733 = vld [vmem:[#allocation2 + $0xd0] sm:$0xff]
      %v734 = vld [vmem:[#allocation2 + $0xd8] sm:$0xff]
      %v735 = vld [vmem:[#allocation2 + $0xe0] sm:$0xff]
      %v736 = vld [vmem:[#allocation2 + $0xe8] sm:$0xff]
      %v737 = vld [vmem:[#allocation2 + $0xf0] sm:$0xff]
      %v738 = vld [vmem:[#allocation2 + $0xf8] sm:$0xff]
      %v739 = vld [vmem:[#allocation8] sm:$0x1]
      %v741 = vlaneseq
      %v742 = vshrl.u32 %v741, 7
      %v743 = vsub.s32 0, %v742
      %v744 = vrot.slane %v739, %v743
      %v746 = vadd.f32 %v707, %v744
      %v747 = vadd.f32 %v708, %v744
      %v748 = vadd.f32 %v709, %v744
      %v749 = vadd.f32 %v710, %v744
      %v750 = vadd.f32 %v711, %v744
      %v751 = vadd.f32 %v712, %v744
      %v752 = vadd.f32 %v713, %v744
      %v753 = vadd.f32 %v714, %v744
      %v754 = vadd.f32 %v715, %v744
      %v755 = vadd.f32 %v716, %v744
      %v756 = vadd.f32 %v717, %v744
      %v757 = vadd.f32 %v718, %v744
      %v758 = vadd.f32 %v719, %v744
      %v759 = vadd.f32 %v720, %v744
      %v760 = vadd.f32 %v721, %v744
      %v761 = vadd.f32 %v722, %v744
      %v762 = vadd.f32 %v723, %v744
      %v763 = vadd.f32 %v724, %v744
      %v764 = vadd.f32 %v725, %v744
      %v765 = vadd.f32 %v726, %v744
      %v766 = vadd.f32 %v727, %v744
      %v767 = vadd.f32 %v728, %v744
      %v768 = vadd.f32 %v729, %v744
      %v769 = vadd.f32 %v730, %v744
      %v770 = vadd.f32 %v731, %v744
      %v771 = vadd.f32 %v732, %v744
      %v772 = vadd.f32 %v733, %v744
      %v773 = vadd.f32 %v734, %v744
      %v774 = vadd.f32 %v735, %v744
      %v775 = vadd.f32 %v736, %v744
      %v776 = vadd.f32 %v737, %v744
      %v777 = vadd.f32 %v738, %v744
      %v778 = vpack.c.bf16 %v747, %v746
      %v779 = vpack.c.bf16 %v749, %v748
      %v780 = vpack.c.bf16 %v751, %v750
      %v781 = vpack.c.bf16 %v753, %v752
      %v782 = vpack.c.bf16 %v755, %v754
      %v783 = vpack.c.bf16 %v757, %v756
      %v784 = vpack.c.bf16 %v759, %v758
      %v785 = vpack.c.bf16 %v761, %v760
      %v786 = vpack.c.bf16 %v763, %v762
      %v787 = vpack.c.bf16 %v765, %v764
      %v788 = vpack.c.bf16 %v767, %v766
      %v789 = vpack.c.bf16 %v769, %v768
      %v790 = vpack.c.bf16 %v771, %v770
      %v791 = vpack.c.bf16 %v773, %v772
      %v792 = vpack.c.bf16 %v775, %v774
      %v793 = vpack.c.bf16 %v777, %v776
      %v794 = vld [vmem:[#allocation9] sm:$0xf]
      %v795 = vld [vmem:[#allocation9 + $0x4] sm:$0xf]
      %v796 = vld [vmem:[#allocation9 + $0x8] sm:$0xf]
      %v797 = vld [vmem:[#allocation9 + $0xc] sm:$0xf]
      %v798 = vld [vmem:[#allocation9 + $0x10] sm:$0xf]
      %v799 = vld [vmem:[#allocation9 + $0x14] sm:$0xf]
      %v800 = vld [vmem:[#allocation9 + $0x18] sm:$0xf]
      %v801 = vld [vmem:[#allocation9 + $0x1c] sm:$0xf]
      %v802 = vld [vmem:[#allocation9 + $0x20] sm:$0xf]
      %v803 = vld [vmem:[#allocation9 + $0x24] sm:$0xf]
      %v804 = vld [vmem:[#allocation9 + $0x28] sm:$0xf]
      %v805 = vld [vmem:[#allocation9 + $0x2c] sm:$0xf]
      %v806 = vld [vmem:[#allocation9 + $0x30] sm:$0xf]
      %v807 = vld [vmem:[#allocation9 + $0x34] sm:$0xf]
      %v808 = vld [vmem:[#allocation9 + $0x38] sm:$0xf]
      %v809 = vld [vmem:[#allocation9 + $0x3c] sm:$0xf]
      %v810 = vld [vmem:[#allocation11] sm:$0x1]
      %v812 = vlaneseq
      %v813 = vshrl.u32 %v812, 7
      %v814 = vsub.s32 0, %v813
      %v815 = vrot.slane %v810, %v814
      %v833 = vunpack.c.l.b16 %v794
      %v834 = vunpack.c.l.b16 %v795
      %v835 = vunpack.c.l.b16 %v796
      %v836 = vunpack.c.l.b16 %v797
      %v837 = vunpack.c.l.b16 %v798
      %v838 = vunpack.c.l.b16 %v799
      %v839 = vunpack.c.l.b16 %v800
      %v840 = vunpack.c.l.b16 %v801
      %v841 = vunpack.c.l.b16 %v802
      %v842 = vunpack.c.l.b16 %v803
      %v843 = vunpack.c.l.b16 %v804
      %v844 = vunpack.c.l.b16 %v805
      %v845 = vunpack.c.l.b16 %v806
      %v846 = vunpack.c.l.b16 %v807
      %v847 = vunpack.c.l.b16 %v808
      %v848 = vunpack.c.l.b16 %v809
      %v849 = vpack.c.b16 %v834, %v833
      %v850 = vpack.c.b16 %v836, %v835
      %v851 = vpack.c.b16 %v838, %v837
      %v852 = vpack.c.b16 %v840, %v839
      %v853 = vpack.c.b16 %v842, %v841
      %v854 = vpack.c.b16 %v844, %v843
      %v855 = vpack.c.b16 %v846, %v845
      %v856 = vpack.c.b16 %v848, %v847
      %865 = vmatprep.subr.bf16.mxu0 0
      %866 = vmatpush1.bf16.msra.mxu0 %v849
      %867 = vmatprep.subr.bf16.mxu0 0
      %868 = vmatpush1.bf16.msra.mxu0 %v850
      %869 = vmatprep.subr.bf16.mxu0 0
      %870 = vmatpush1.bf16.msra.mxu0 %v851
      %871 = vmatprep.subr.bf16.mxu0 0
      %872 = vmatpush1.bf16.msra.mxu0 %v852
      %873 = vmatprep.subr.bf16.mxu0 0
      %874 = vmatpush1.bf16.msra.mxu0 %v853
      %875 = vmatprep.subr.bf16.mxu0 0
      %876 = vmatpush1.bf16.msra.mxu0 %v854
      %877 = vmatprep.subr.bf16.mxu0 0
      %878 = vmatpush1.bf16.msra.mxu0 %v855
      %879 = vmatprep.subr.bf16.mxu0 0
      %880 = vmatpush1.bf16.msra.mxu0 %v856
      %881 = vmatprep.subr.bf16.mxu0 0
      %882 = vmatpush1.bf16.msra.mxu0 0
      %883 = vmatprep.subr.bf16.mxu0 0
      %884 = vmatpush1.bf16.msra.mxu0 0
      %885 = vmatprep.subr.bf16.mxu0 0
      %886 = vmatpush1.bf16.msra.mxu0 0
      %887 = vmatprep.subr.bf16.mxu0 0
      %888 = vmatpush1.bf16.msra.mxu0 0
      %889 = vmatprep.subr.bf16.mxu0 0
      %890 = vmatpush1.bf16.msra.mxu0 0
      %891 = vmatprep.subr.bf16.mxu0 0
      %892 = vmatpush1.bf16.msra.mxu0 0
      %893 = vmatprep.subr.bf16.mxu0 0
      %894 = vmatpush1.bf16.msra.mxu0 0
      %895 = vmatprep.subr.bf16.mxu0 0
      %896 = vmatpush1.bf16.msra.mxu0 0
      %897 = vmatprep.mubr.bf16.mxu0 0
      %898 = vmatmul.mubr.bf16.gmra.mrb[0].mxu0 %v778
      %v899 = vpop.f32.mrb[0].mxu0
      %v900 = vadd.f32 %v815, %v899
      %v901 = vpop.f32.mrb[0].mxu0
      %v902 = vpop.f32.mrb[0].mxu0
      %v903 = vadd.f32 %v815, %v902
      %v904 = vpop.f32.mrb[0].mxu0
      %905 = vmatprep.mubr.bf16.mxu0 0
      %906 = vmatmul.mubr.bf16.gmra.mrb[0].mxu0 %v779
      %v907 = vpop.f32.mrb[0].mxu0
      %v908 = vadd.f32 %v815, %v907
      %v909 = vpop.f32.mrb[0].mxu0
      %v910 = vpop.f32.mrb[0].mxu0
      %v911 = vadd.f32 %v815, %v910
      %v912 = vpop.f32.mrb[0].mxu0
      %913 = vmatprep.mubr.bf16.mxu0 0
      %914 = vmatmul.mubr.bf16.gmra.mrb[0].mxu0 %v780
      %v915 = vpop.f32.mrb[0].mxu0
      %v916 = vadd.f32 %v815, %v915
      %v917 = vpop.f32.mrb[0].mxu0
      %v918 = vpop.f32.mrb[0].mxu0
      %v919 = vadd.f32 %v815, %v918
      %v920 = vpop.f32.mrb[0].mxu0
      %921 = vmatprep.mubr.bf16.mxu0 0
      %922 = vmatmul.mubr.bf16.gmra.mrb[0].mxu0 %v781
      %v923 = vpop.f32.mrb[0].mxu0
      %v924 = vadd.f32 %v815, %v923
      %v925 = vpop.f32.mrb[0].mxu0
      %v926 = vpop.f32.mrb[0].mxu0
      %v927 = vadd.f32 %v815, %v926
      %v928 = vpop.f32.mrb[0].mxu0
      %929 = vmatprep.mubr.bf16.mxu0 0
      %930 = vmatmul.mubr.bf16.gmra.mrb[0].mxu0 %v782
      %v931 = vpop.f32.mrb[0].mxu0
      %v932 = vadd.f32 %v815, %v931
      %v933 = vpop.f32.mrb[0].mxu0
      %v934 = vpop.f32.mrb[0].mxu0
      %v935 = vadd.f32 %v815, %v934
      %v936 = vpop.f32.mrb[0].mxu0
      %937 = vmatprep.mubr.bf16.mxu0 0
      %938 = vmatmul.mubr.bf16.gmra.mrb[0].mxu0 %v783
      %v939 = vpop.f32.mrb[0].mxu0
      %v940 = vadd.f32 %v815, %v939
      %v941 = vpop.f32.mrb[0].mxu0
      %v942 = vpop.f32.mrb[0].mxu0
      %v943 = vadd.f32 %v815, %v942
      %v944 = vpop.f32.mrb[0].mxu0
      %945 = vmatprep.mubr.bf16.mxu0 0
      %946 = vmatmul.mubr.bf16.gmra.mrb[0].mxu0 %v784
      %v947 = vpop.f32.mrb[0].mxu0
      %v948 = vadd.f32 %v815, %v947
      %v949 = vpop.f32.mrb[0].mxu0
      %v950 = vpop.f32.mrb[0].mxu0
      %v951 = vadd.f32 %v815, %v950
      %v952 = vpop.f32.mrb[0].mxu0
      %953 = vmatprep.mubr.bf16.mxu0 0
      %954 = vmatmul.mubr.bf16.gmra.mrb[0].mxu0 %v785
      %v955 = vpop.f32.mrb[0].mxu0
      %v956 = vadd.f32 %v815, %v955
      %v957 = vpop.f32.mrb[0].mxu0
      %v958 = vpop.f32.mrb[0].mxu0
      %v959 = vadd.f32 %v815, %v958
      %v960 = vpop.f32.mrb[0].mxu0
      %961 = vmatprep.mubr.bf16.mxu0 0
      %962 = vmatmul.mubr.bf16.gmra.mrb[0].mxu0 %v786
      %v963 = vpop.f32.mrb[0].mxu0
      %v964 = vadd.f32 %v815, %v963
      %v965 = vpop.f32.mrb[0].mxu0
      %v966 = vpop.f32.mrb[0].mxu0
      %v967 = vadd.f32 %v815, %v966
      %v968 = vpop.f32.mrb[0].mxu0
      %969 = vmatprep.mubr.bf16.mxu0 0
      %970 = vmatmul.mubr.bf16.gmra.mrb[0].mxu0 %v787
      %v971 = vpop.f32.mrb[0].mxu0
      %v972 = vadd.f32 %v815, %v971
      %v973 = vpop.f32.mrb[0].mxu0
      %v974 = vpop.f32.mrb[0].mxu0
      %v975 = vadd.f32 %v815, %v974
      %v976 = vpop.f32.mrb[0].mxu0
      %977 = vmatprep.mubr.bf16.mxu0 0
      %978 = vmatmul.mubr.bf16.gmra.mrb[0].mxu0 %v788
      %v979 = vpop.f32.mrb[0].mxu0
      %v980 = vadd.f32 %v815, %v979
      %v981 = vpop.f32.mrb[0].mxu0
      %v982 = vpop.f32.mrb[0].mxu0
      %v983 = vadd.f32 %v815, %v982
      %v984 = vpop.f32.mrb[0].mxu0
      %985 = vmatprep.mubr.bf16.mxu0 0
      %986 = vmatmul.mubr.bf16.gmra.mrb[0].mxu0 %v789
      %v987 = vpop.f32.mrb[0].mxu0
      %v988 = vadd.f32 %v815, %v987
      %v989 = vpop.f32.mrb[0].mxu0
      %v990 = vpop.f32.mrb[0].mxu0
      %v991 = vadd.f32 %v815, %v990
      %v992 = vpop.f32.mrb[0].mxu0
      %993 = vmatprep.mubr.bf16.mxu0 0
      %994 = vmatmul.mubr.bf16.gmra.mrb[0].mxu0 %v790
      %v995 = vpop.f32.mrb[0].mxu0
      %v996 = vadd.f32 %v815, %v995
      %v997 = vpop.f32.mrb[0].mxu0
      %v998 = vpop.f32.mrb[0].mxu0
      %v999 = vadd.f32 %v815, %v998
      %v1000 = vpop.f32.mrb[0].mxu0
      %1001 = vmatprep.mubr.bf16.mxu0 0
      %1002 = vmatmul.mubr.bf16.gmra.mrb[0].mxu0 %v791
      %v1003 = vpop.f32.mrb[0].mxu0
      %v1004 = vadd.f32 %v815, %v1003
      %v1005 = vpop.f32.mrb[0].mxu0
      %v1006 = vpop.f32.mrb[0].mxu0
      %v1007 = vadd.f32 %v815, %v1006
      %v1008 = vpop.f32.mrb[0].mxu0
      %1009 = vmatprep.mubr.bf16.mxu0 0
      %1010 = vmatmul.mubr.bf16.gmra.mrb[0].mxu0 %v792
      %v1011 = vpop.f32.mrb[0].mxu0
      %v1012 = vadd.f32 %v815, %v1011
      %v1013 = vpop.f32.mrb[0].mxu0
      %v1014 = vpop.f32.mrb[0].mxu0
      %v1015 = vadd.f32 %v815, %v1014
      %v1016 = vpop.f32.mrb[0].mxu0
      %1017 = vmatprep.mubr.bf16.mxu0 0
      %1018 = vmatmul.mubr.bf16.gmra.mrb[0].mxu0 %v793
      %v1019 = vpop.f32.mrb[0].mxu0
      %v1020 = vadd.f32 %v815, %v1019
      %v1021 = vpop.f32.mrb[0].mxu0
      %v1022 = vpop.f32.mrb[0].mxu0
      %v1023 = vadd.f32 %v815, %v1022
      %v1024 = vpop.f32.mrb[0].mxu0
      %1025 = vdwg.mxu0
      %1026 = vst [vmem:[#allocation12] sm:$0xff] %v900
      %1027 = vst [vmem:[#allocation12 + $0x8] sm:$0xff] %v903
      %1028 = vst [vmem:[#allocation12 + $0x10] sm:$0xff] %v908
      %1029 = vst [vmem:[#allocation12 + $0x18] sm:$0xff] %v911
      %1030 = vst [vmem:[#allocation12 + $0x20] sm:$0xff] %v916
      %1031 = vst [vmem:[#allocation12 + $0x28] sm:$0xff] %v919
      %1032 = vst [vmem:[#allocation12 + $0x30] sm:$0xff] %v924
      %1033 = vst [vmem:[#allocation12 + $0x38] sm:$0xff] %v927
      %1034 = vst [vmem:[#allocation12 + $0x40] sm:$0xff] %v932
      %1035 = vst [vmem:[#allocation12 + $0x48] sm:$0xff] %v935
      %1036 = vst [vmem:[#allocation12 + $0x50] sm:$0xff] %v940
      %1037 = vst [vmem:[#allocation12 + $0x58] sm:$0xff] %v943
      %1038 = vst [vmem:[#allocation12 + $0x60] sm:$0xff] %v948
      %1039 = vst [vmem:[#allocation12 + $0x68] sm:$0xff] %v951
      %1040 = vst [vmem:[#allocation12 + $0x70] sm:$0xff] %v956
      %1041 = vst [vmem:[#allocation12 + $0x78] sm:$0xff] %v959
      %1042 = vst [vmem:[#allocation12 + $0x80] sm:$0xff] %v964
      %1043 = vst [vmem:[#allocation12 + $0x88] sm:$0xff] %v967
      %1044 = vst [vmem:[#allocation12 + $0x90] sm:$0xff] %v972
      %1045 = vst [vmem:[#allocation12 + $0x98] sm:$0xff] %v975
      %1046 = vst [vmem:[#allocation12 + $0xa0] sm:$0xff] %v980
      %1047 = vst [vmem:[#allocation12 + $0xa8] sm:$0xff] %v983
      %1048 = vst [vmem:[#allocation12 + $0xb0] sm:$0xff] %v988
      %1049 = vst [vmem:[#allocation12 + $0xb8] sm:$0xff] %v991
      %1050 = vst [vmem:[#allocation12 + $0xc0] sm:$0xff] %v996
      %1051 = vst [vmem:[#allocation12 + $0xc8] sm:$0xff] %v999
      %1052 = vst [vmem:[#allocation12 + $0xd0] sm:$0xff] %v1004
      %1053 = vst [vmem:[#allocation12 + $0xd8] sm:$0xff] %v1007
      %1054 = vst [vmem:[#allocation12 + $0xe0] sm:$0xff] %v1012
      %1055 = vst [vmem:[#allocation12 + $0xe8] sm:$0xff] %v1015
      %1056 = vst [vmem:[#allocation12 + $0xf0] sm:$0xff] %v1020
      %1057 = vst [vmem:[#allocation12 + $0xf8] sm:$0xff] %v1023
    $region49: #{gcn_forward_padded.5} parent=1 // pred_fallthru
      _
    // Predicated region
    $region50: #{gcn_forward_padded.5} parent=1 // pred_check
      _
    $region51: #{gcn_forward_padded.5} parent=1 // pred_check_branch
      %1059 = sbr.rel (0) target = $region53
    $region52: #{gcn_forward_padded.5} parent=1 // pred_region
      %s1061 = ssub.s32 4096, 4096
      %1062 = vsyncadd [#allocation5], %s1061
      %s1063 = sshll.u32 [#allocation12], 4
      %s1064 = int_to_ptr.vmem [resolvable:$true] %s1063
      %1069 = dma.vmem_to_hbm [thread:$0]  %s1064, 4096, %s5, [#allocation5], 128, 128, 8
    $region53: #{gcn_forward_padded.5} parent=1 // pred_fallthru
      _
    // Predicated region
    $region54: #{gcn_forward_padded.5} parent=1 // pred_check
      _
    $region55: #{gcn_forward_padded.5} parent=1 // pred_check_branch
      %1071 = sbr.rel (0) target = $region57
    $region56: #{gcn_forward_padded.5} parent=1 // pred_region
      %1072 = dma.done [#allocation5], 4096
    $region57: #{gcn_forward_padded.5} parent=1 // pred_fallthru
      _
    %1073 = vsyncpa [#allocation4], 1
    %1074 = vsyncpa [#allocation7], 1
    %1075 = vsyncpa [#allocation10], 1
    %1076 = vsyncpa [#allocation5], 1

</llo_original>
